<compile_context>
chip_gen: v7x
topology: tpu7x:2x2x1
jax: 0.10.0
libtpu: 0.0.40
codegen_flags: <defaults>
</compile_context>

<pallas_src>
import functools

import jax
import jax.numpy as jnp
from jax.experimental import pallas as pl
from jax.experimental.pallas import tpu as pltpu


def _round_up(x, m):
    return ((x + m - 1) // m) * m


def _tpu_budgets():
    """Generation-aware (tile-selection budget, vmem_limit_bytes)."""
    kind = ""
    try:
        kind = jax.devices()[0].device_kind.lower()
    except Exception:
        pass
    if "v5 lite" in kind or "v5e" in kind:
        return 48 * 2**20, 64 * 2**20   # 128 MiB physical, 16 MiB default scoped
    if "v6" in kind:
        return 48 * 2**20, 64 * 2**20   # 128 MiB physical, 32 MiB default scoped
    if "7" in kind:
        return 24 * 2**20, 32 * 2**20   # v7x: 64 MiB physical per TensorCore
    # Unknown / older generation: stay inside the common default scoped limit.
    return 12 * 2**20, None


def _embed_width(e):
    """Lane-dense output width when cheap; no 4x inflation for tiny E."""
    if e % 128 == 0 or e < 128:
        return e
    return _round_up(e, 128)


def _reference_patch_embed(x, weight, bias, patch_size):
    """Plain-JAX reference identical to PatchEmbedding.forward (f32)."""
    P = patch_size
    E = weight.shape[0]
    y = jax.lax.conv_general_dilated(
        x, weight, window_strides=(P, P), padding="VALID",
        dimension_numbers=("NCHW", "OIHW", "NCHW"))
    y = y + bias.reshape(1, E, 1, 1)
    return y.reshape(y.shape[0], E, -1).transpose(0, 2, 1)


# --------------------------------------------------------------------------
# Fused im2col + projection kernel (preferred path)
# --------------------------------------------------------------------------

def _fused_patch_embed_kernel(x_ref, w_ref, b_ref, o_ref, *, gh_blk, gw, p, k):
    """Fused im2col + patch projection for one (image, gh-row-block) slab.

    x_ref: (1, C, gh_blk, P, Gw, P) raw pixels (f32)
    w_ref: (K, E_out) bf16, VMEM resident;  b_ref: (1, E_out) f32, resident
    o_ref: (1, gh_blk, Gw, E_out) bf16
    """
    c = x_ref.shape[1]
    rows = []
    for r in range(gh_blk):                      # static unroll over patch rows
        v = x_ref[0, :, r, :, :, :]              # (C, P, Gw, P)
        v = v.reshape(c * p, gw, p)              # collapse leading dims
        v = jnp.swapaxes(v, 1, 2)                # (C*P, P, Gw) minor-two swap
        v = v.reshape(k, gw)                     # (K, Gw), K ordered (c, ph, pw)
        rows.append(v.T)                         # (Gw, K)
    patches = rows[0] if gh_blk == 1 else jnp.concatenate(rows, axis=0)
    acc = jnp.dot(patches.astype(jnp.bfloat16), w_ref[...],
                  preferred_element_type=jnp.float32)       # (gh_blk*Gw, E_out)
    acc = acc + b_ref[...]
    o_ref[...] = acc.reshape(o_ref.shape).astype(o_ref.dtype)


def _patch_embedding_fused(x, weight, bias, patch_size):
    B, C, H, W = x.shape
    E = weight.shape[0]
    P = patch_size
    Gh, Gw = H // P, W // P
    K = C * P * P
    E_out = _embed_width(E)
    budget, vmem_limit = _tpu_budgets()

    # Free, metadata-only reshape (contiguous splits of H and W).
    x6 = x.reshape(B, C, Gh, P, Gw, P)

    # VMEM-resident bf16 weight (K, E_out) and f32 bias (1, E_out); K ordered
    # (c, ph, pw) to match the in-kernel flattening.
    w_ke = jnp.transpose(weight.reshape(E, K)).astype(jnp.bfloat16)
    b2 = bias.astype(jnp.float32).reshape(1, E)
    if E_out != E:
        w_ke = jnp.pad(w_ke, ((0, 0), (0, E_out - E)))
        b2 = jnp.pad(b2, ((0, 0), (0, E_out - E)))

    # Patch-rows per grid step: largest divisor of Gh whose (double-buffered)
    # slabs fit the generation budget while leaving >= 2 total grid steps so
    # both v7x TensorCores get work.
    def slab_bytes(g):
        return (2 * C * g * P * W * x.dtype.itemsize    # input slab (dbl buf)
                + 2 * g * Gw * E_out * 2                # output slab (dbl buf)
                + K * E_out * 2 + E_out * 4)            # resident weight/bias
    gh_blk = 1
    for d in range(Gh, 0, -1):
        if Gh % d:
            continue
        if slab_bytes(d) <= budget and (B * (Gh // d) >= 2 or d == 1):
            gh_blk = d
            break

    grid = (B, Gh // gh_blk)
    kernel = functools.partial(_fused_patch_embed_kernel,
                               gh_blk=gh_blk, gw=Gw, p=P, k=K)

    flops = 2 * B * Gh * Gw * K * E_out
    bytes_accessed = (x.size * x.dtype.itemsize + K * E_out * 2 + E_out * 4
                      + B * Gh * Gw * E_out * 2)

    out = pl.pallas_call(
        kernel,
        out_shape=jax.ShapeDtypeStruct((B, Gh, Gw, E_out), jnp.bfloat16),
        grid_spec=pltpu.PrefetchScalarGridSpec(
            num_scalar_prefetch=0,
            grid=grid,
            in_specs=[
                # Raw pixel slab: last two block dims (Gw, P) equal full dims.
                pl.BlockSpec((1, C, gh_blk, P, Gw, P),
                             lambda b, g: (b, 0, g, 0, 0, 0)),
                # Resident weight / bias: constant index map, single-buffered.
                pl.BlockSpec((K, E_out), lambda b, g: (0, 0),
                             pipeline_mode=pl.Buffered(1)),
                pl.BlockSpec((1, E_out), lambda b, g: (0, 0),
                             pipeline_mode=pl.Buffered(1)),
            ],
            out_specs=pl.BlockSpec((1, gh_blk, Gw, E_out),
                                   lambda b, g: (b, g, 0, 0)),
        ),
        compiler_params=pltpu.CompilerParams(
            dimension_semantics=("parallel", "parallel"),
            vmem_limit_bytes=vmem_limit),
        cost_estimate=pl.CostEstimate(flops=flops, transcendentals=0,
                                      bytes_accessed=bytes_accessed),
    )(x6, w_ke, b2)

    out = out.reshape(B, Gh * Gw, E_out)
    if E_out != E:
        # Only reached for E >= 128 that is not a multiple of 128; ideally the
        # consumer keeps the padded lanes instead of slicing eagerly.
        out = out[:, :, :E]
    return out


# --------------------------------------------------------------------------
# Fallback: wrapper-side im2col + streamed GEMM (previously validated path)
# --------------------------------------------------------------------------

def _patch_embed_mm_kernel(p_ref, w_ref, b_ref, o_ref):
    acc = jnp.dot(p_ref[...], w_ref[...], preferred_element_type=jnp.float32)
    o_ref[...] = (acc + b_ref[...]).astype(o_ref.dtype)


def _patch_embedding_im2col(x, weight, bias, patch_size):
    B, C, H, W = x.shape
    E = weight.shape[0]
    P = patch_size
    Gh, Gw = H // P, W // P
    N = Gh * Gw
    K = C * P * P
    E_out = _embed_width(E)
    budget, vmem_limit = _tpu_budgets()

    # im2col in bf16 (extra wrapper pass; the fused path above avoids this).
    patches = x.astype(jnp.bfloat16).reshape(B, C, Gh, P, Gw, P)
    patches = jnp.transpose(patches, (0, 2, 4, 1, 3, 5)).reshape(B * N, K)

    w_ke = jnp.transpose(weight.reshape(E, K)).astype(jnp.bfloat16)
    b2 = bias.astype(jnp.float32).reshape(1, E)
    if E_out != E:
        w_ke = jnp.pad(w_ke, ((0, 0), (0, E_out - E)))
        b2 = jnp.pad(b2, ((0, 0), (0, E_out - E)))

    M = B * N

    def vmem_use(t):                       # conservative: weight counted 2x
        return 2 * t * K * 2 + 2 * K * E_out * 2 + 2 * t * E_out * 2 + E_out * 4

    tm = min(1024, _round_up(M, 8))
    if M >= 16:                            # >= 2 grid steps for v7x's 2 TCs
        tm = min(tm, max(8, (M // 2) // 8 * 8))
    while tm > 8 and vmem_use(tm) > budget:
        tm = max(8, (tm // 2) // 8 * 8)

    # No jnp.pad of M: cdiv grid + unpadded out_shape, Pallas masks the
    # partial last block's writes.
    grid = (pl.cdiv(M, tm),)

    flops = 2 * M * K * E_out
    bytes_accessed = M * K * 2 + K * E_out * 2 + E_out * 4 + M * E_out * 2

    out = pl.pallas_call(
        _patch_embed_mm_kernel,
        out_shape=jax.ShapeDtypeStruct((M, E_out), jnp.bfloat16),
        grid_spec=pltpu.PrefetchScalarGridSpec(
            num_scalar_prefetch=0,
            grid=grid,
            in_specs=[
                pl.BlockSpec((tm, K), lambda i: (i, 0)),       # streamed tiles
                pl.BlockSpec((K, E_out), lambda i: (0, 0)),    # resident weight
                pl.BlockSpec((1, E_out), lambda i: (0, 0)),    # resident bias
            ],
            out_specs=pl.BlockSpec((tm, E_out), lambda i: (i, 0)),
        ),
        compiler_params=pltpu.CompilerParams(
            dimension_semantics=("parallel",),
            vmem_limit_bytes=vmem_limit),
        cost_estimate=pl.CostEstimate(flops=flops, transcendentals=0,
                                      bytes_accessed=bytes_accessed),
    )(patches, w_ke, b2)

    out = out.reshape(B, N, E_out)
    if E_out != E:
        out = out[:, :, :E]
    return out


def patch_embedding(x, weight, bias, patch_size):
    """Equivalent of PatchEmbedding.forward (Conv2d stride=P + flatten +
    transpose). Returns (B, num_patches, E) in bf16 (f32 accumulation)."""
    try:
        out = jax.block_until_ready(
            _patch_embedding_fused(x, weight, bias, patch_size))
        # Cheap numerical self-check on small inputs only (demo safety net).
        if x.size <= (1 << 20):
            ref = _reference_patch_embed(x, weight, bias, patch_size)
            if not jnp.allclose(out.astype(jnp.float32), ref,
                                atol=2e-2, rtol=2e-2):
                raise AssertionError("fused patch-embed self-check failed")
        return out
    except Exception:
        # TODO(synk): remove once fused-im2col lowering is verified on every
        # TPU generation; falls back to the validated im2col+GEMM path.
        return jax.block_until_ready(
            _patch_embedding_im2col(x, weight, bias, patch_size))


if __name__ == "__main__":
    # Small shapes consistent with the module: img=16, patch=4 -> 16 patches.
    B, C, H, W = 2, 4, 16, 16
    P = 4
    E = 32

    key = jax.random.PRNGKey(0)
    kx, kw, kb = jax.random.split(key, 3)

    x = jax.random.normal(kx, (B, C, H, W), dtype=jnp.float32)
    # Deterministic synthetic params (Conv2d-shaped: (E, C, P, P) and (E,)).
    weight = 0.02 * jax.random.normal(kw, (E, C, P, P), dtype=jnp.float32)
    bias = 0.01 * jax.random.normal(kb, (E,), dtype=jnp.float32)

    out = patch_embedding(x, weight, bias, P)
    out = jax.block_until_ready(out)

    ref = _reference_patch_embed(x, weight, bias, P)

    assert out.shape == (B, (H // P) * (W // P), E)
    assert out.dtype == jnp.bfloat16
    # bf16 MXU inputs + bf16 output (f32 accumulation) -> loosened tolerance.
    assert jnp.allclose(out.astype(jnp.float32), ref, atol=2e-2, rtol=2e-2)

    print("KERNEL_OK")
</pallas_src>

<mosaic_0001>
module attributes {stable_mosaic.version = 11 : i64} {
  func.func @_fused_patch_embed_kernel(%arg0: i32, %arg1: i32, %arg2: memref<1x4x4x4x4x4xf32, #tpu.memory_space<vmem>>, %arg3: memref<64x32xbf16, #tpu.memory_space<vmem>>, %arg4: memref<1x32xf32, #tpu.memory_space<vmem>>, %arg5: memref<1x4x4x32xbf16, #tpu.memory_space<vmem>>) attributes {dimension_semantics = [#tpu.dimension_semantics<parallel>, #tpu.dimension_semantics<parallel>], iteration_bounds = array<i64: 2, 1>, scalar_prefetch = 0 : i64, scratch_operands = 0 : i64, tpu.core_type = #tpu.core_type<tc>, window_params = [{transform_indices = @transform_0, window_bounds = array<i64: 1, 4, 4, 4, 4, 4>}, {pipeline_mode = #tpu.pipeline_mode<synchronous>, transform_indices = @transform_1, window_bounds = array<i64: 64, 32>}, {pipeline_mode = #tpu.pipeline_mode<synchronous>, transform_indices = @transform_2, window_bounds = array<i64: 1, 32>}, {transform_indices = @transform_3, window_bounds = array<i64: 1, 4, 4, 32>}]} {
    %c0 = arith.constant 0 : index
    %c0_0 = arith.constant 0 : index
    %c0_1 = arith.constant 0 : index
    %c0_2 = arith.constant 0 : index
    %c0_3 = arith.constant 0 : index
    %c0_4 = arith.constant 0 : index
    %0 = vector.load %arg2[%c0, %c0_0, %c0_1, %c0_2, %c0_3, %c0_4] : memref<1x4x4x4x4x4xf32, #tpu.memory_space<vmem>>, vector<1x4x1x4x4x4xf32>
    %1 = vector.shape_cast %0 : vector<1x4x1x4x4x4xf32> to vector<4x4x4x4xf32>
    %2 = vector.shape_cast %1 : vector<4x4x4x4xf32> to vector<16x4x4xf32>
    %3 = tpu.transpose %2, [0, 2, 1] : vector<16x4x4xf32> -> vector<16x4x4xf32>
    %4 = vector.shape_cast %3 : vector<16x4x4xf32> to vector<64x4xf32>
    %5 = tpu.transpose %4, [1, 0] : vector<64x4xf32> -> vector<4x64xf32>
    %c0_5 = arith.constant 0 : index
    %c0_6 = arith.constant 0 : index
    %c1 = arith.constant 1 : index
    %c0_7 = arith.constant 0 : index
    %c0_8 = arith.constant 0 : index
    %c0_9 = arith.constant 0 : index
    %6 = vector.load %arg2[%c0_5, %c0_6, %c1, %c0_7, %c0_8, %c0_9] : memref<1x4x4x4x4x4xf32, #tpu.memory_space<vmem>>, vector<1x4x1x4x4x4xf32>
    %7 = vector.shape_cast %6 : vector<1x4x1x4x4x4xf32> to vector<4x4x4x4xf32>
    %8 = vector.shape_cast %7 : vector<4x4x4x4xf32> to vector<16x4x4xf32>
    %9 = tpu.transpose %8, [0, 2, 1] : vector<16x4x4xf32> -> vector<16x4x4xf32>
    %10 = vector.shape_cast %9 : vector<16x4x4xf32> to vector<64x4xf32>
    %11 = tpu.transpose %10, [1, 0] : vector<64x4xf32> -> vector<4x64xf32>
    %c0_10 = arith.constant 0 : index
    %c0_11 = arith.constant 0 : index
    %c2 = arith.constant 2 : index
    %c0_12 = arith.constant 0 : index
    %c0_13 = arith.constant 0 : index
    %c0_14 = arith.constant 0 : index
    %12 = vector.load %arg2[%c0_10, %c0_11, %c2, %c0_12, %c0_13, %c0_14] : memref<1x4x4x4x4x4xf32, #tpu.memory_space<vmem>>, vector<1x4x1x4x4x4xf32>
    %13 = vector.shape_cast %12 : vector<1x4x1x4x4x4xf32> to vector<4x4x4x4xf32>
    %14 = vector.shape_cast %13 : vector<4x4x4x4xf32> to vector<16x4x4xf32>
    %15 = tpu.transpose %14, [0, 2, 1] : vector<16x4x4xf32> -> vector<16x4x4xf32>
    %16 = vector.shape_cast %15 : vector<16x4x4xf32> to vector<64x4xf32>
    %17 = tpu.transpose %16, [1, 0] : vector<64x4xf32> -> vector<4x64xf32>
    %c0_15 = arith.constant 0 : index
    %c0_16 = arith.constant 0 : index
    %c3 = arith.constant 3 : index
    %c0_17 = arith.constant 0 : index
    %c0_18 = arith.constant 0 : index
    %c0_19 = arith.constant 0 : index
    %18 = vector.load %arg2[%c0_15, %c0_16, %c3, %c0_17, %c0_18, %c0_19] : memref<1x4x4x4x4x4xf32, #tpu.memory_space<vmem>>, vector<1x4x1x4x4x4xf32>
    %19 = vector.shape_cast %18 : vector<1x4x1x4x4x4xf32> to vector<4x4x4x4xf32>
    %20 = vector.shape_cast %19 : vector<4x4x4x4xf32> to vector<16x4x4xf32>
    %21 = tpu.transpose %20, [0, 2, 1] : vector<16x4x4xf32> -> vector<16x4x4xf32>
    %22 = vector.shape_cast %21 : vector<16x4x4xf32> to vector<64x4xf32>
    %23 = tpu.transpose %22, [1, 0] : vector<64x4xf32> -> vector<4x64xf32>
    %24 = tpu.concatenate %5, %11, %17, %23 in 0 : vector<4x64xf32>, vector<4x64xf32>, vector<4x64xf32>, vector<4x64xf32> -> vector<16x64xf32>
    %25 = arith.truncf %24 : vector<16x64xf32> to vector<16x64xbf16>
    %c0_20 = arith.constant 0 : index
    %c0_21 = arith.constant 0 : index
    %26 = vector.load %arg3[%c0_20, %c0_21] : memref<64x32xbf16, #tpu.memory_space<vmem>>, vector<64x32xbf16>
    %cst = arith.constant dense<0.000000e+00> : vector<16x32xf32>
    %27 = tpu.matmul %25, %26, %cst {dimension_numbers = #tpu.dot_dimension_numbers<[1], [0], [0], [1], [0, 0, 1, 1], [], []>} : vector<16x64xbf16>, vector<64x32xbf16>, vector<16x32xf32> -> vector<16x32xf32>
    %c0_22 = arith.constant 0 : index
    %c0_23 = arith.constant 0 : index
    %28 = vector.load %arg4[%c0_22, %c0_23] : memref<1x32xf32, #tpu.memory_space<vmem>>, vector<1x32xf32>
    %29 = vector.broadcast %28 : vector<1x32xf32> to vector<16x32xf32>
    %30 = arith.addf %27, %29 : vector<16x32xf32>
    %31 = vector.shape_cast %30 : vector<16x32xf32> to vector<1x4x4x32xf32>
    %32 = arith.truncf %31 : vector<1x4x4x32xf32> to vector<1x4x4x32xbf16>
    %c0_24 = arith.constant 0 : index
    %c0_25 = arith.constant 0 : index
    %c0_26 = arith.constant 0 : index
    %c0_27 = arith.constant 0 : index
    %33 = vector.load %arg5[%c0_24, %c0_25, %c0_26, %c0_27] : memref<1x4x4x32xbf16, #tpu.memory_space<vmem>>, vector<1x4x4x32xbf16>
    tpu.vector_store %arg5[%c0_24, %c0_25, %c0_26, %c0_27], %32 {strides = array<i32>} : memref<1x4x4x32xbf16, #tpu.memory_space<vmem>>, vector<1x4x4x32xbf16>,
    return
  }
  func.func @transform_0(%arg0: i32, %arg1: i32) -> (i32, i32, i32, i32, i32, i32) {
    %c0_i32 = arith.constant 0 : i32
    %c0_i32_0 = arith.constant 0 : i32
    %c0_i32_1 = arith.constant 0 : i32
    %c0_i32_2 = arith.constant 0 : i32
    %c0_i32_3 = arith.constant 0 : i32
    return %arg0, %c0_i32, %arg1, %c0_i32_0, %c0_i32_1, %c0_i32_2 : i32, i32, i32, i32, i32, i32
  }
  func.func @transform_1(%arg0: i32, %arg1: i32) -> (i32, i32) {
    %c0_i32 = arith.constant 0 : i32
    %c0_i32_0 = arith.constant 0 : i32
    %c0_i32_1 = arith.constant 0 : i32
    return %c0_i32, %c0_i32_0 : i32, i32
  }
  func.func @transform_2(%arg0: i32, %arg1: i32) -> (i32, i32) {
    %c0_i32 = arith.constant 0 : i32
    %c0_i32_0 = arith.constant 0 : i32
    %c0_i32_1 = arith.constant 0 : i32
    return %c0_i32, %c0_i32_0 : i32, i32
  }
  func.func @transform_3(%arg0: i32, %arg1: i32) -> (i32, i32, i32, i32) {
    %c0_i32 = arith.constant 0 : i32
    %c0_i32_0 = arith.constant 0 : i32
    %c0_i32_1 = arith.constant 0 : i32
    return %arg0, %arg1, %c0_i32, %c0_i32_0 : i32, i32, i32, i32
  }
}

module attributes {stable_mosaic.version = 11 : i64} {
  func.func @_patch_embed_mm_kernel(%arg0: i32, %arg1: memref<16x64xbf16, #tpu.memory_space<vmem>>, %arg2: memref<64x32xbf16, #tpu.memory_space<vmem>>, %arg3: memref<1x32xf32, #tpu.memory_space<vmem>>, %arg4: memref<16x32xbf16, #tpu.memory_space<vmem>>) attributes {dimension_semantics = [#tpu.dimension_semantics<parallel>], iteration_bounds = array<i64: 2>, scalar_prefetch = 0 : i64, scratch_operands = 0 : i64, tpu.core_type = #tpu.core_type<tc>, window_params = [{transform_indices = @transform_0, window_bounds = array<i64: 16, 64>}, {pipeline_mode = #tpu.pipeline_mode<synchronous>, transform_indices = @transform_1, window_bounds = array<i64: 64, 32>}, {pipeline_mode = #tpu.pipeline_mode<synchronous>, transform_indices = @transform_2, window_bounds = array<i64: 1, 32>}, {transform_indices = @transform_3, window_bounds = array<i64: 16, 32>}]} {
    %c0 = arith.constant 0 : index
    %c0_0 = arith.constant 0 : index
    %0 = vector.load %arg1[%c0, %c0_0] : memref<16x64xbf16, #tpu.memory_space<vmem>>, vector<16x64xbf16>
    %c0_1 = arith.constant 0 : index
    %c0_2 = arith.constant 0 : index
    %1 = vector.load %arg2[%c0_1, %c0_2] : memref<64x32xbf16, #tpu.memory_space<vmem>>, vector<64x32xbf16>
    %cst = arith.constant dense<0.000000e+00> : vector<16x32xf32>
    %2 = tpu.matmul %0, %1, %cst {dimension_numbers = #tpu.dot_dimension_numbers<[1], [0], [0], [1], [0, 0, 1, 1], [], []>} : vector<16x64xbf16>, vector<64x32xbf16>, vector<16x32xf32> -> vector<16x32xf32>
    %c0_3 = arith.constant 0 : index
    %c0_4 = arith.constant 0 : index
    %3 = vector.load %arg3[%c0_3, %c0_4] : memref<1x32xf32, #tpu.memory_space<vmem>>, vector<1x32xf32>
    %4 = vector.broadcast %3 : vector<1x32xf32> to vector<16x32xf32>
    %5 = arith.addf %2, %4 : vector<16x32xf32>
    %6 = arith.truncf %5 : vector<16x32xf32> to vector<16x32xbf16>
    %c0_5 = arith.constant 0 : index
    %c0_6 = arith.constant 0 : index
    %7 = vector.load %arg4[%c0_5, %c0_6] : memref<16x32xbf16, #tpu.memory_space<vmem>>, vector<16x32xbf16>
    tpu.vector_store %arg4[%c0_5, %c0_6], %6 {strides = array<i32>} : memref<16x32xbf16, #tpu.memory_space<vmem>>, vector<16x32xbf16>,
    return
  }
  func.func @transform_0(%arg0: i32) -> (i32, i32) {
    %c0_i32 = arith.constant 0 : i32
    %c0_i32_0 = arith.constant 0 : i32
    return %arg0, %c0_i32 : i32, i32
  }
  func.func @transform_1(%arg0: i32) -> (i32, i32) {
    %c0_i32 = arith.constant 0 : i32
    %c0_i32_0 = arith.constant 0 : i32
    %c0_i32_1 = arith.constant 0 : i32
    return %c0_i32, %c0_i32_0 : i32, i32
  }
  func.func @transform_2(%arg0: i32) -> (i32, i32) {
    %c0_i32 = arith.constant 0 : i32
    %c0_i32_0 = arith.constant 0 : i32
    %c0_i32_1 = arith.constant 0 : i32
    return %c0_i32, %c0_i32_0 : i32, i32
  }
  func.func @transform_3(%arg0: i32) -> (i32, i32) {
    %c0_i32 = arith.constant 0 : i32
    %c0_i32_0 = arith.constant 0 : i32
    return %arg0, %c0_i32 : i32, i32
  }
}

</mosaic_0001>

<llo_original>
// kernel: tpu_custom_call.1
$region0: #{tpu_custom_call.1}
  #allocation0 [shape = 'u32[]', space=smem, size = 0x4, offset = 0x4, fixed_abs, tag = 'smem constant byte address 0x4 - core index']
  #allocation1 [shape = 'u32[144,128]{1,0:T(1,128)}', space=vmem, size = 0x12000, scoped, tag = 'internal scratch']
  %s0 = inlined_call_operand.hbm [shape: f32[2,4,4,4,4,4], index: 0, kind: input, shape index: {}]
  %s1 = inlined_call_operand.vmem [shape: bf16[64,32], index: 1, kind: input, shape index: {}]
  %s2 = inlined_call_operand.vmem [shape: f32[1,32], index: 2, kind: input, shape index: {}]
  %s3 = inlined_call_operand.hbm [shape: bf16[2,4,4,32], index: 3, kind: output, shape index: {}]
  %s4 = sld [smem:[#allocation0]]
  $region49: #{tpu_custom_call.1} parent=0
    _
  %s6 = ssub.s32 1, %s4
  %s7 = scalar_select 0, %s6, %s4
  $region1: #{tpu_custom_call.1} parent=0
    #allocation2 [shape = 'u8[262144]{0}', space=vmem, size = 0x40000, scoped, tag = 'input window, operand 0']
    #allocation3 [shape = 's32[2]{0}', space=sflag, size = 0x8, scoped, tag = 'scoped memory for tpu_custom_call.1']
    #allocation4 [shape = 's32[2]{0}', space=sflag, size = 0x8, scoped, tag = 'scoped memory for tpu_custom_call.1']
    #allocation5 [shape = 'u8[8192]{0}', space=vmem, size = 0x2000, scoped, tag = 'output window, operand 0']
    %8 = vsyncpa [#allocation3], 0
    %s9 = scalar_lea.sflag [#allocation3], 1
    %10 = vsyncpa %s9, 0
    %11 = vsyncpa [#allocation4], 0
    %s12 = scalar_lea.sflag [#allocation4], 1
    %13 = vsyncpa %s12, 0
    loop: start=0, step=1, limit=4
    $region2: #{tpu_custom_call.1} parent=1 // loop_pre_header
      _
    $region3: #{tpu_custom_call.1} parent=1 // loop_header
      %s15 = sphi 0, %s19
      %p16 = scmp.ge.s32.totalorder %s15, 4
      %s22 = sphi 0, %s34
      %s23 = sphi 0, %s30
      %s24 = sphi 0, %s22
      %s25 = sphi 0, %s23
      %s26 = sphi 0, %s24
      %s27 = sphi 0, %s25
      %s39 = sphi 0, %s41
      %s42 = sphi 0, %s39
      %s43 = sphi 0, %s42
      %s59 = sphi 0, %s43
      %s63 = sphi 0, %s63
      %s65 = sphi 0, %s63
      %s66 = sphi 0, %s65
      %s80 = sphi 0, %s66
      %s84 = sphi 0, %s84
      %s86 = sphi 0, %s84
      %s87 = sphi 0, %s86
      %s101 = sphi 0, %s87
      %s109 = sphi 0, %s111
      %s112 = sphi 0, %s109
      %s113 = sphi 0, %s112
      %s129 = sphi 0, %s113
    $region4: #{tpu_custom_call.1} parent=1 // loop_header_branch
      %18 = sbr.rel (%p16) target = $region8
    $region5: #{tpu_custom_call.1} parent=1 // loop_body
      %s20 = ssub.s32 %s15, 1
      %s21 = ssub.s32 %s15, 2
      %s28 = sadd.s32 1, %s23
      %p29 = scmp.ge.s32.totalorder %s28, 1
      %s30 = scalar_select %p29, 0, %s28
      %s31 = sadd.s32 1, %s22
      %s32 = scalar_select %p29, %s31, %s22
      %p33 = scmp.ge.s32.totalorder %s32, 2
      %s34 = scalar_select %p33, 0, %s32
      %s35 = ssub.s32 %s22, %s34
      %s36 = ssub.s32 %s23, %s30
      %s37 = sor.u32 %s35, %s36
      %p38 = scmp.eq.s32.totalorder %s37, 0
      %s40 = sadd.s32 %s39, 1
      %s41 = scalar_select %p38, %s39, %s40
      %p44 = pneg %p38
      %p45 = scmp.eq.s32.totalorder %s15, 1
      %p46 = por %p44, %p45
      %p47 = scmp.ne.s32.totalorder %s39, %s42
      %p48 = scmp.eq.s32.totalorder %s15, 0
      %p49 = por %p47, %p48
      %p50 = scmp.ne.s32.totalorder %s39, %s42
      %p51 = scmp.eq.s32.totalorder %s20, 1
      %p52 = por %p50, %p51
      %p53 = scmp.ne.s32.totalorder %s42, %s43
      %p54 = scmp.eq.s32.totalorder %s20, 0
      %p55 = por %p53, %p54
      %p56 = scmp.ne.s32.totalorder %s42, %s43
      %p57 = scmp.eq.s32.totalorder %s21, 1
      %p58 = por %p56, %p57
      %p60 = scmp.ne.s32.totalorder %s43, %s59
      %p61 = scmp.eq.s32.totalorder %s21, 0
      %p62 = por %p60, %p61
      %s64 = sadd.s32 %s63, 1
      %p67 = scmp.eq.s32.totalorder %s15, 1
      %p68 = scmp.ne.s32.totalorder %s63, %s65
      %p69 = scmp.eq.s32.totalorder %s15, 0
      %p70 = por %p68, %p69
      %p71 = scmp.ne.s32.totalorder %s63, %s65
      %p72 = scmp.eq.s32.totalorder %s20, 1
      %p73 = por %p71, %p72
      %p74 = scmp.ne.s32.totalorder %s65, %s66
      %p75 = scmp.eq.s32.totalorder %s20, 0
      %p76 = por %p74, %p75
      %p77 = scmp.ne.s32.totalorder %s65, %s66
      %p78 = scmp.eq.s32.totalorder %s21, 1
      %p79 = por %p77, %p78
      %p81 = scmp.ne.s32.totalorder %s66, %s80
      %p82 = scmp.eq.s32.totalorder %s21, 0
      %p83 = por %p81, %p82
      %s85 = sadd.s32 %s84, 1
      %p88 = scmp.eq.s32.totalorder %s15, 1
      %p89 = scmp.ne.s32.totalorder %s84, %s86
      %p90 = scmp.eq.s32.totalorder %s15, 0
      %p91 = por %p89, %p90
      %p92 = scmp.ne.s32.totalorder %s84, %s86
      %p93 = scmp.eq.s32.totalorder %s20, 1
      %p94 = por %p92, %p93
      %p95 = scmp.ne.s32.totalorder %s86, %s87
      %p96 = scmp.eq.s32.totalorder %s20, 0
      %p97 = por %p95, %p96
      %p98 = scmp.ne.s32.totalorder %s86, %s87
      %p99 = scmp.eq.s32.totalorder %s21, 1
      %p100 = por %p98, %p99
      %p102 = scmp.ne.s32.totalorder %s87, %s101
      %p103 = scmp.eq.s32.totalorder %s21, 0
      %p104 = por %p102, %p103
      %s105 = ssub.s32 %s22, %s34
      %s106 = ssub.s32 %s23, %s30
      %s107 = sor.u32 %s105, %s106
      %p108 = scmp.eq.s32.totalorder %s107, 0
      %s110 = sadd.s32 %s109, 1
      %s111 = scalar_select %p108, %s109, %s110
      %p114 = pneg %p108
      %p115 = scmp.eq.s32.totalorder %s15, 1
      %p116 = por %p114, %p115
      %p117 = scmp.ne.s32.totalorder %s109, %s112
      %p118 = scmp.eq.s32.totalorder %s15, 0
      %p119 = por %p117, %p118
      %p120 = scmp.ne.s32.totalorder %s109, %s112
      %p121 = scmp.eq.s32.totalorder %s20, 1
      %p122 = por %p120, %p121
      %p123 = scmp.ne.s32.totalorder %s112, %s113
      %p124 = scmp.eq.s32.totalorder %s20, 0
      %p125 = por %p123, %p124
      %p126 = scmp.ne.s32.totalorder %s112, %s113
      %p127 = scmp.eq.s32.totalorder %s21, 1
      %p128 = por %p126, %p127
      %p130 = scmp.ne.s32.totalorder %s113, %s129
      %p131 = scmp.eq.s32.totalorder %s21, 0
      %p132 = por %p130, %p131
      %p133 = scmp.le.s32.totalorder 1, %s15
      %p134 = scmp.lt.s32.totalorder %s15, 3
      %p135 = pnand %p133, %p134
      %p136 = pneg %p135
      // Predicated region
      $region9: #{tpu_custom_call.1} parent=5 // pred_check
        _
      $region10: #{tpu_custom_call.1} parent=5 // pred_check_branch
        %138 = sbr.rel (%p135) target = $region12
      $region11: #{tpu_custom_call.1} parent=5 // pred_region
        %s139 = ssub.s32 %s15, 1
        // Predicated region
        $region13: #{tpu_custom_call.1} parent=11 // pred_check
          %p140 = pneg %p76
        $region14: #{tpu_custom_call.1} parent=11 // pred_check_branch
          %142 = sbr.rel (%p140) target = $region16
        $region15: #{tpu_custom_call.1} parent=11 // pred_region
          _
        $region16: #{tpu_custom_call.1} parent=11 // pred_fallthru
          _
        // Predicated region
        $region17: #{tpu_custom_call.1} parent=11 // pred_check
          %p143 = pneg %p97
        $region18: #{tpu_custom_call.1} parent=11 // pred_check_branch
          %145 = sbr.rel (%p143) target = $region20
        $region19: #{tpu_custom_call.1} parent=11 // pred_region
          _
        $region20: #{tpu_custom_call.1} parent=11 // pred_fallthru
          _
      $region12: #{tpu_custom_call.1} parent=5 // pred_fallthru
        _
      %p146 = scmp.lt.s32.totalorder %s15, 2
      // Predicated region
      $region21: #{tpu_custom_call.1} parent=5 // pred_check
        %p147 = pneg %p146
      $region22: #{tpu_custom_call.1} parent=5 // pred_check_branch
        %149 = sbr.rel (%p147) target = $region24
      $region23: #{tpu_custom_call.1} parent=5 // pred_region
        // Predicated region
        $region25: #{tpu_custom_call.1} parent=23 // pred_check
          %p150 = pneg %p49
        $region26: #{tpu_custom_call.1} parent=23 // pred_check_branch
          %152 = sbr.rel (%p150) target = $region28
        $region27: #{tpu_custom_call.1} parent=23 // pred_region
          %s153 = sand.u32 %s39, 1
          %s154 = scalar_lea.sflag [#allocation3], %s153
          %s155 = sand.u32 %s39, 1
          %s156 = smul.addr %s155, 256
          %s157 = scalar_lea.vmem [#allocation2], %s156
          %s158 = smul.u32 4, %s23
          %s160 = ssub.s32 4096, 4096
          %161 = vsyncadd %s154, %s160
          %s162 = smul.addr %s158, 4
          %s163 = smul.addr %s22, 64
          %s164 = sadd.s32 %s162, %s163
          %s165 = smul.addr %s164, 64
          %s166 = scalar_lea.hbm %s0, %s165
          %s167 = sshll.u32 %s157, 4
          %s168 = int_to_ptr.vmem [resolvable:$true] %s167
          %173 = dma.hbm_to_vmem [thread:$0]  %s166, 4096, %s168, %s154, 64, 64, 4
        $region28: #{tpu_custom_call.1} parent=23 // pred_fallthru
          _
      $region24: #{tpu_custom_call.1} parent=5 // pred_fallthru
        _
      %p174 = scmp.le.s32.totalorder 1, %s15
      %p175 = scmp.lt.s32.totalorder %s15, 3
      %p176 = pnand %p174, %p175
      %p177 = pneg %p176
      // Predicated region
      $region29: #{tpu_custom_call.1} parent=5 // pred_check
        _
      $region30: #{tpu_custom_call.1} parent=5 // pred_check_branch
        %179 = sbr.rel (%p176) target = $region32
      $region31: #{tpu_custom_call.1} parent=5 // pred_region
        %s180 = ssub.s32 %s15, 1
        %s181 = sand.u32 %s42, 1
        %s182 = scalar_lea.sflag [#allocation3], %s181
        %s183 = sand.u32 %s42, 1
        %s184 = smul.addr %s183, 256
        %s185 = scalar_lea.vmem [#allocation2], %s184
        // Predicated region
        $region33: #{tpu_custom_call.1} parent=31 // pred_check
          %p186 = pneg %p55
        $region34: #{tpu_custom_call.1} parent=31 // pred_check_branch
          %188 = sbr.rel (%p186) target = $region36
        $region35: #{tpu_custom_call.1} parent=31 // pred_region
          %189 = dma.done %s182, 4096
        $region36: #{tpu_custom_call.1} parent=31 // pred_fallthru
          _
        %s190 = sand.u32 %s42, 1
        %s191 = scalar_lea.sflag [#allocation3], %s190
        %s192 = sand.u32 %s42, 1
        %s193 = smul.addr %s192, 256
        %s194 = scalar_lea.vmem [#allocation2], %s193
        %p195 = pneg %p55
        %p196 = pneg %p52
        %p197 = pneg %p76
        %p198 = pneg %p73
        %p199 = pneg %p97
        %p200 = pneg %p94
        %p201 = pneg %p125
        %p202 = pneg %p122
        %s203 = sand.u32 %s112, 1
        %s204 = scalar_lea.sflag [#allocation4], %s203
        %s205 = sand.u32 %s112, 1
        %s206 = smul.addr %s205, 8
        %s207 = scalar_lea.vmem [#allocation5], %s206
        %s208 = smul.u32 4, %s25
        %s209 = smul.u32 4, %s25
        %v211 = vld [vmem:[%s185] sm:$0xf]
        %v212 = vld [vmem:[%s185 + $0x4] sm:$0xf]
        %v213 = vld [vmem:[%s185 + $0x8] sm:$0xf]
        %v214 = vld [vmem:[%s185 + $0xc] sm:$0xf]
        %v215 = vld [vmem:[%s185 + $0x40] sm:$0xf]
        %v216 = vld [vmem:[%s185 + $0x44] sm:$0xf]
        %v217 = vld [vmem:[%s185 + $0x48] sm:$0xf]
        %v218 = vld [vmem:[%s185 + $0x4c] sm:$0xf]
        %v219 = vld [vmem:[%s185 + $0x80] sm:$0xf]
        %v220 = vld [vmem:[%s185 + $0x84] sm:$0xf]
        %v221 = vld [vmem:[%s185 + $0x88] sm:$0xf]
        %v222 = vld [vmem:[%s185 + $0x8c] sm:$0xf]
        %v223 = vld [vmem:[%s185 + $0xc0] sm:$0xf]
        %v224 = vld [vmem:[%s185 + $0xc4] sm:$0xf]
        %v225 = vld [vmem:[%s185 + $0xc8] sm:$0xf]
        %v226 = vld [vmem:[%s185 + $0xcc] sm:$0xf]
        %227 = vxpose.xlu0.b32.start [1/16] %v211, 128
        %228 = vxpose.xlu0.b32.cont [2/16] 0.0, 128
        %229 = vxpose.xlu0.b32.cont [3/16] 0.0, 128
        %230 = vxpose.xlu0.b32.cont [4/16] 0.0, 128
        %231 = vxpose.xlu0.b32.cont [5/16] 0.0, 128
        %232 = vxpose.xlu0.b32.cont [6/16] 0.0, 128
        %233 = vxpose.xlu0.b32.cont [7/16] 0.0, 128
        %234 = vxpose.xlu0.b32.cont [8/16] 0.0, 128
        %235 = vxpose.xlu0.b32.cont [9/16] 0.0, 128
        %236 = vxpose.xlu0.b32.cont [10/16] 0.0, 128
        %237 = vxpose.xlu0.b32.cont [11/16] 0.0, 128
        %238 = vxpose.xlu0.b32.cont [12/16] 0.0, 128
        %239 = vxpose.xlu0.b32.cont [13/16] 0.0, 128
        %240 = vxpose.xlu0.b32.cont [14/16] 0.0, 128
        %241 = vxpose.xlu0.b32.cont [15/16] 0.0, 128
        %242 = vxpose.xlu0.b32.end [16/16] 0.0, 128
        %v243 = vpop.trf.xlu0
        %v244 = vpop.trf.xlu0
        %v245 = vpop.trf.xlu0
        %v246 = vpop.trf.xlu0
        %v247 = vpop.trf.xlu0
        %v248 = vpop.trf.xlu0
        %v249 = vpop.trf.xlu0
        %v250 = vpop.trf.xlu0
        %v251 = vpop.trf.xlu0
        %v252 = vpop.trf.xlu0
        %v253 = vpop.trf.xlu0
        %v254 = vpop.trf.xlu0
        %v255 = vpop.trf.xlu0
        %v256 = vpop.trf.xlu0
        %v257 = vpop.trf.xlu0
        %v258 = vpop.trf.xlu0
        %259 = vxpose.xlu0.b32.start [1/16] %v212, 128
        %260 = vxpose.xlu0.b32.cont [2/16] 0.0, 128
        %261 = vxpose.xlu0.b32.cont [3/16] 0.0, 128
        %262 = vxpose.xlu0.b32.cont [4/16] 0.0, 128
        %263 = vxpose.xlu0.b32.cont [5/16] 0.0, 128
        %264 = vxpose.xlu0.b32.cont [6/16] 0.0, 128
        %265 = vxpose.xlu0.b32.cont [7/16] 0.0, 128
        %266 = vxpose.xlu0.b32.cont [8/16] 0.0, 128
        %267 = vxpose.xlu0.b32.cont [9/16] 0.0, 128
        %268 = vxpose.xlu0.b32.cont [10/16] 0.0, 128
        %269 = vxpose.xlu0.b32.cont [11/16] 0.0, 128
        %270 = vxpose.xlu0.b32.cont [12/16] 0.0, 128
        %271 = vxpose.xlu0.b32.cont [13/16] 0.0, 128
        %272 = vxpose.xlu0.b32.cont [14/16] 0.0, 128
        %273 = vxpose.xlu0.b32.cont [15/16] 0.0, 128
        %274 = vxpose.xlu0.b32.end [16/16] 0.0, 128
        %v275 = vpop.trf.xlu0
        %v276 = vpop.trf.xlu0
        %v277 = vpop.trf.xlu0
        %v278 = vpop.trf.xlu0
        %v279 = vpop.trf.xlu0
        %v280 = vpop.trf.xlu0
        %v281 = vpop.trf.xlu0
        %v282 = vpop.trf.xlu0
        %v283 = vpop.trf.xlu0
        %v284 = vpop.trf.xlu0
        %v285 = vpop.trf.xlu0
        %v286 = vpop.trf.xlu0
        %v287 = vpop.trf.xlu0
        %v288 = vpop.trf.xlu0
        %v289 = vpop.trf.xlu0
        %v290 = vpop.trf.xlu0
        %291 = vxpose.xlu0.b32.start [1/16] %v213, 128
        %292 = vxpose.xlu0.b32.cont [2/16] 0.0, 128
        %293 = vxpose.xlu0.b32.cont [3/16] 0.0, 128
        %294 = vxpose.xlu0.b32.cont [4/16] 0.0, 128
        %295 = vxpose.xlu0.b32.cont [5/16] 0.0, 128
        %296 = vxpose.xlu0.b32.cont [6/16] 0.0, 128
        %297 = vxpose.xlu0.b32.cont [7/16] 0.0, 128
        %298 = vxpose.xlu0.b32.cont [8/16] 0.0, 128
        %299 = vxpose.xlu0.b32.cont [9/16] 0.0, 128
        %300 = vxpose.xlu0.b32.cont [10/16] 0.0, 128
        %301 = vxpose.xlu0.b32.cont [11/16] 0.0, 128
        %302 = vxpose.xlu0.b32.cont [12/16] 0.0, 128
        %303 = vxpose.xlu0.b32.cont [13/16] 0.0, 128
        %304 = vxpose.xlu0.b32.cont [14/16] 0.0, 128
        %305 = vxpose.xlu0.b32.cont [15/16] 0.0, 128
        %306 = vxpose.xlu0.b32.end [16/16] 0.0, 128
        %v307 = vpop.trf.xlu0
        %v308 = vpop.trf.xlu0
        %v309 = vpop.trf.xlu0
        %v310 = vpop.trf.xlu0
        %v311 = vpop.trf.xlu0
        %v312 = vpop.trf.xlu0
        %v313 = vpop.trf.xlu0
        %v314 = vpop.trf.xlu0
        %v315 = vpop.trf.xlu0
        %v316 = vpop.trf.xlu0
        %v317 = vpop.trf.xlu0
        %v318 = vpop.trf.xlu0
        %v319 = vpop.trf.xlu0
        %v320 = vpop.trf.xlu0
        %v321 = vpop.trf.xlu0
        %v322 = vpop.trf.xlu0
        %323 = vxpose.xlu0.b32.start [1/16] %v214, 128
        %324 = vxpose.xlu0.b32.cont [2/16] 0.0, 128
        %325 = vxpose.xlu0.b32.cont [3/16] 0.0, 128
        %326 = vxpose.xlu0.b32.cont [4/16] 0.0, 128
        %327 = vxpose.xlu0.b32.cont [5/16] 0.0, 128
        %328 = vxpose.xlu0.b32.cont [6/16] 0.0, 128
        %329 = vxpose.xlu0.b32.cont [7/16] 0.0, 128
        %330 = vxpose.xlu0.b32.cont [8/16] 0.0, 128
        %331 = vxpose.xlu0.b32.cont [9/16] 0.0, 128
        %332 = vxpose.xlu0.b32.cont [10/16] 0.0, 128
        %333 = vxpose.xlu0.b32.cont [11/16] 0.0, 128
        %334 = vxpose.xlu0.b32.cont [12/16] 0.0, 128
        %335 = vxpose.xlu0.b32.cont [13/16] 0.0, 128
        %336 = vxpose.xlu0.b32.cont [14/16] 0.0, 128
        %337 = vxpose.xlu0.b32.cont [15/16] 0.0, 128
        %338 = vxpose.xlu0.b32.end [16/16] 0.0, 128
        %v339 = vpop.trf.xlu0
        %v340 = vpop.trf.xlu0
        %v341 = vpop.trf.xlu0
        %v342 = vpop.trf.xlu0
        %v343 = vpop.trf.xlu0
        %v344 = vpop.trf.xlu0
        %v345 = vpop.trf.xlu0
        %v346 = vpop.trf.xlu0
        %v347 = vpop.trf.xlu0
        %v348 = vpop.trf.xlu0
        %v349 = vpop.trf.xlu0
        %v350 = vpop.trf.xlu0
        %v351 = vpop.trf.xlu0
        %v352 = vpop.trf.xlu0
        %v353 = vpop.trf.xlu0
        %v354 = vpop.trf.xlu0
        %355 = vxpose.xlu0.b32.start [1/16] %v215, 128
        %356 = vxpose.xlu0.b32.cont [2/16] 0.0, 128
        %357 = vxpose.xlu0.b32.cont [3/16] 0.0, 128
        %358 = vxpose.xlu0.b32.cont [4/16] 0.0, 128
        %359 = vxpose.xlu0.b32.cont [5/16] 0.0, 128
        %360 = vxpose.xlu0.b32.cont [6/16] 0.0, 128
        %361 = vxpose.xlu0.b32.cont [7/16] 0.0, 128
        %362 = vxpose.xlu0.b32.cont [8/16] 0.0, 128
        %363 = vxpose.xlu0.b32.cont [9/16] 0.0, 128
        %364 = vxpose.xlu0.b32.cont [10/16] 0.0, 128
        %365 = vxpose.xlu0.b32.cont [11/16] 0.0, 128
        %366 = vxpose.xlu0.b32.cont [12/16] 0.0, 128
        %367 = vxpose.xlu0.b32.cont [13/16] 0.0, 128
        %368 = vxpose.xlu0.b32.cont [14/16] 0.0, 128
        %369 = vxpose.xlu0.b32.cont [15/16] 0.0, 128
        %370 = vxpose.xlu0.b32.end [16/16] 0.0, 128
        %v371 = vpop.trf.xlu0
        %v372 = vpop.trf.xlu0
        %v373 = vpop.trf.xlu0
        %v374 = vpop.trf.xlu0
        %v375 = vpop.trf.xlu0
        %v376 = vpop.trf.xlu0
        %v377 = vpop.trf.xlu0
        %v378 = vpop.trf.xlu0
        %v379 = vpop.trf.xlu0
        %v380 = vpop.trf.xlu0
        %v381 = vpop.trf.xlu0
        %v382 = vpop.trf.xlu0
        %v383 = vpop.trf.xlu0
        %v384 = vpop.trf.xlu0
        %v385 = vpop.trf.xlu0
        %v386 = vpop.trf.xlu0
        %387 = vxpose.xlu0.b32.start [1/16] %v216, 128
        %388 = vxpose.xlu0.b32.cont [2/16] 0.0, 128
        %389 = vxpose.xlu0.b32.cont [3/16] 0.0, 128
        %390 = vxpose.xlu0.b32.cont [4/16] 0.0, 128
        %391 = vxpose.xlu0.b32.cont [5/16] 0.0, 128
        %392 = vxpose.xlu0.b32.cont [6/16] 0.0, 128
        %393 = vxpose.xlu0.b32.cont [7/16] 0.0, 128
        %394 = vxpose.xlu0.b32.cont [8/16] 0.0, 128
        %395 = vxpose.xlu0.b32.cont [9/16] 0.0, 128
        %396 = vxpose.xlu0.b32.cont [10/16] 0.0, 128
        %397 = vxpose.xlu0.b32.cont [11/16] 0.0, 128
        %398 = vxpose.xlu0.b32.cont [12/16] 0.0, 128
        %399 = vxpose.xlu0.b32.cont [13/16] 0.0, 128
        %400 = vxpose.xlu0.b32.cont [14/16] 0.0, 128
        %401 = vxpose.xlu0.b32.cont [15/16] 0.0, 128
        %402 = vxpose.xlu0.b32.end [16/16] 0.0, 128
        %v403 = vpop.trf.xlu0
        %v404 = vpop.trf.xlu0
        %v405 = vpop.trf.xlu0
        %v406 = vpop.trf.xlu0
        %v407 = vpop.trf.xlu0
        %v408 = vpop.trf.xlu0
        %v409 = vpop.trf.xlu0
        %v410 = vpop.trf.xlu0
        %v411 = vpop.trf.xlu0
        %v412 = vpop.trf.xlu0
        %v413 = vpop.trf.xlu0
        %v414 = vpop.trf.xlu0
        %v415 = vpop.trf.xlu0
        %v416 = vpop.trf.xlu0
        %v417 = vpop.trf.xlu0
        %v418 = vpop.trf.xlu0
        %419 = vxpose.xlu0.b32.start [1/16] %v217, 128
        %420 = vxpose.xlu0.b32.cont [2/16] 0.0, 128
        %421 = vxpose.xlu0.b32.cont [3/16] 0.0, 128
        %422 = vxpose.xlu0.b32.cont [4/16] 0.0, 128
        %423 = vxpose.xlu0.b32.cont [5/16] 0.0, 128
        %424 = vxpose.xlu0.b32.cont [6/16] 0.0, 128
        %425 = vxpose.xlu0.b32.cont [7/16] 0.0, 128
        %426 = vxpose.xlu0.b32.cont [8/16] 0.0, 128
        %427 = vxpose.xlu0.b32.cont [9/16] 0.0, 128
        %428 = vxpose.xlu0.b32.cont [10/16] 0.0, 128
        %429 = vxpose.xlu0.b32.cont [11/16] 0.0, 128
        %430 = vxpose.xlu0.b32.cont [12/16] 0.0, 128
        %431 = vxpose.xlu0.b32.cont [13/16] 0.0, 128
        %432 = vxpose.xlu0.b32.cont [14/16] 0.0, 128
        %433 = vxpose.xlu0.b32.cont [15/16] 0.0, 128
        %434 = vxpose.xlu0.b32.end [16/16] 0.0, 128
        %v435 = vpop.trf.xlu0
        %v436 = vpop.trf.xlu0
        %v437 = vpop.trf.xlu0
        %v438 = vpop.trf.xlu0
        %v439 = vpop.trf.xlu0
        %v440 = vpop.trf.xlu0
        %v441 = vpop.trf.xlu0
        %v442 = vpop.trf.xlu0
        %v443 = vpop.trf.xlu0
        %v444 = vpop.trf.xlu0
        %v445 = vpop.trf.xlu0
        %v446 = vpop.trf.xlu0
        %v447 = vpop.trf.xlu0
        %v448 = vpop.trf.xlu0
        %v449 = vpop.trf.xlu0
        %v450 = vpop.trf.xlu0
        %451 = vxpose.xlu0.b32.start [1/16] %v218, 128
        %452 = vxpose.xlu0.b32.cont [2/16] 0.0, 128
        %453 = vxpose.xlu0.b32.cont [3/16] 0.0, 128
        %454 = vxpose.xlu0.b32.cont [4/16] 0.0, 128
        %455 = vxpose.xlu0.b32.cont [5/16] 0.0, 128
        %456 = vxpose.xlu0.b32.cont [6/16] 0.0, 128
        %457 = vxpose.xlu0.b32.cont [7/16] 0.0, 128
        %458 = vxpose.xlu0.b32.cont [8/16] 0.0, 128
        %459 = vxpose.xlu0.b32.cont [9/16] 0.0, 128
        %460 = vxpose.xlu0.b32.cont [10/16] 0.0, 128
        %461 = vxpose.xlu0.b32.cont [11/16] 0.0, 128
        %462 = vxpose.xlu0.b32.cont [12/16] 0.0, 128
        %463 = vxpose.xlu0.b32.cont [13/16] 0.0, 128
        %464 = vxpose.xlu0.b32.cont [14/16] 0.0, 128
        %465 = vxpose.xlu0.b32.cont [15/16] 0.0, 128
        %466 = vxpose.xlu0.b32.end [16/16] 0.0, 128
        %v467 = vpop.trf.xlu0
        %v468 = vpop.trf.xlu0
        %v469 = vpop.trf.xlu0
        %v470 = vpop.trf.xlu0
        %v471 = vpop.trf.xlu0
        %v472 = vpop.trf.xlu0
        %v473 = vpop.trf.xlu0
        %v474 = vpop.trf.xlu0
        %v475 = vpop.trf.xlu0
        %v476 = vpop.trf.xlu0
        %v477 = vpop.trf.xlu0
        %v478 = vpop.trf.xlu0
        %v479 = vpop.trf.xlu0
        %v480 = vpop.trf.xlu0
        %v481 = vpop.trf.xlu0
        %v482 = vpop.trf.xlu0
        %483 = vxpose.xlu0.b32.start [1/16] %v219, 128
        %484 = vxpose.xlu0.b32.cont [2/16] 0.0, 128
        %485 = vxpose.xlu0.b32.cont [3/16] 0.0, 128
        %486 = vxpose.xlu0.b32.cont [4/16] 0.0, 128
        %487 = vxpose.xlu0.b32.cont [5/16] 0.0, 128
        %488 = vxpose.xlu0.b32.cont [6/16] 0.0, 128
        %489 = vxpose.xlu0.b32.cont [7/16] 0.0, 128
        %490 = vxpose.xlu0.b32.cont [8/16] 0.0, 128
        %491 = vxpose.xlu0.b32.cont [9/16] 0.0, 128
        %492 = vxpose.xlu0.b32.cont [10/16] 0.0, 128
        %493 = vxpose.xlu0.b32.cont [11/16] 0.0, 128
        %494 = vxpose.xlu0.b32.cont [12/16] 0.0, 128
        %495 = vxpose.xlu0.b32.cont [13/16] 0.0, 128
        %496 = vxpose.xlu0.b32.cont [14/16] 0.0, 128
        %497 = vxpose.xlu0.b32.cont [15/16] 0.0, 128
        %498 = vxpose.xlu0.b32.end [16/16] 0.0, 128
        %v499 = vpop.trf.xlu0
        %v500 = vpop.trf.xlu0
        %v501 = vpop.trf.xlu0
        %v502 = vpop.trf.xlu0
        %v503 = vpop.trf.xlu0
        %v504 = vpop.trf.xlu0
        %v505 = vpop.trf.xlu0
        %v506 = vpop.trf.xlu0
        %v507 = vpop.trf.xlu0
        %v508 = vpop.trf.xlu0
        %v509 = vpop.trf.xlu0
        %v510 = vpop.trf.xlu0
        %v511 = vpop.trf.xlu0
        %v512 = vpop.trf.xlu0
        %v513 = vpop.trf.xlu0
        %v514 = vpop.trf.xlu0
        %515 = vxpose.xlu0.b32.start [1/16] %v220, 128
        %516 = vxpose.xlu0.b32.cont [2/16] 0.0, 128
        %517 = vxpose.xlu0.b32.cont [3/16] 0.0, 128
        %518 = vxpose.xlu0.b32.cont [4/16] 0.0, 128
        %519 = vxpose.xlu0.b32.cont [5/16] 0.0, 128
        %520 = vxpose.xlu0.b32.cont [6/16] 0.0, 128
        %521 = vxpose.xlu0.b32.cont [7/16] 0.0, 128
        %522 = vxpose.xlu0.b32.cont [8/16] 0.0, 128
        %523 = vxpose.xlu0.b32.cont [9/16] 0.0, 128
        %524 = vxpose.xlu0.b32.cont [10/16] 0.0, 128
        %525 = vxpose.xlu0.b32.cont [11/16] 0.0, 128
        %526 = vxpose.xlu0.b32.cont [12/16] 0.0, 128
        %527 = vxpose.xlu0.b32.cont [13/16] 0.0, 128
        %528 = vxpose.xlu0.b32.cont [14/16] 0.0, 128
        %529 = vxpose.xlu0.b32.cont [15/16] 0.0, 128
        %530 = vxpose.xlu0.b32.end [16/16] 0.0, 128
        %v531 = vpop.trf.xlu0
        %v532 = vpop.trf.xlu0
        %v533 = vpop.trf.xlu0
        %v534 = vpop.trf.xlu0
        %v535 = vpop.trf.xlu0
        %v536 = vpop.trf.xlu0
        %v537 = vpop.trf.xlu0
        %v538 = vpop.trf.xlu0
        %v539 = vpop.trf.xlu0
        %v540 = vpop.trf.xlu0
        %v541 = vpop.trf.xlu0
        %v542 = vpop.trf.xlu0
        %v543 = vpop.trf.xlu0
        %v544 = vpop.trf.xlu0
        %v545 = vpop.trf.xlu0
        %v546 = vpop.trf.xlu0
        %547 = vxpose.xlu0.b32.start [1/16] %v221, 128
        %548 = vxpose.xlu0.b32.cont [2/16] 0.0, 128
        %549 = vxpose.xlu0.b32.cont [3/16] 0.0, 128
        %550 = vxpose.xlu0.b32.cont [4/16] 0.0, 128
        %551 = vxpose.xlu0.b32.cont [5/16] 0.0, 128
        %552 = vxpose.xlu0.b32.cont [6/16] 0.0, 128
        %553 = vxpose.xlu0.b32.cont [7/16] 0.0, 128
        %554 = vxpose.xlu0.b32.cont [8/16] 0.0, 128
        %555 = vxpose.xlu0.b32.cont [9/16] 0.0, 128
        %556 = vxpose.xlu0.b32.cont [10/16] 0.0, 128
        %557 = vxpose.xlu0.b32.cont [11/16] 0.0, 128
        %558 = vxpose.xlu0.b32.cont [12/16] 0.0, 128
        %559 = vxpose.xlu0.b32.cont [13/16] 0.0, 128
        %560 = vxpose.xlu0.b32.cont [14/16] 0.0, 128
        %561 = vxpose.xlu0.b32.cont [15/16] 0.0, 128
        %562 = vxpose.xlu0.b32.end [16/16] 0.0, 128
        %v563 = vpop.trf.xlu0
        %v564 = vpop.trf.xlu0
        %v565 = vpop.trf.xlu0
        %v566 = vpop.trf.xlu0
        %v567 = vpop.trf.xlu0
        %v568 = vpop.trf.xlu0
        %v569 = vpop.trf.xlu0
        %v570 = vpop.trf.xlu0
        %v571 = vpop.trf.xlu0
        %v572 = vpop.trf.xlu0
        %v573 = vpop.trf.xlu0
        %v574 = vpop.trf.xlu0
        %v575 = vpop.trf.xlu0
        %v576 = vpop.trf.xlu0
        %v577 = vpop.trf.xlu0
        %v578 = vpop.trf.xlu0
        %579 = vxpose.xlu0.b32.start [1/16] %v222, 128
        %580 = vxpose.xlu0.b32.cont [2/16] 0.0, 128
        %581 = vxpose.xlu0.b32.cont [3/16] 0.0, 128
        %582 = vxpose.xlu0.b32.cont [4/16] 0.0, 128
        %583 = vxpose.xlu0.b32.cont [5/16] 0.0, 128
        %584 = vxpose.xlu0.b32.cont [6/16] 0.0, 128
        %585 = vxpose.xlu0.b32.cont [7/16] 0.0, 128
        %586 = vxpose.xlu0.b32.cont [8/16] 0.0, 128
        %587 = vxpose.xlu0.b32.cont [9/16] 0.0, 128
        %588 = vxpose.xlu0.b32.cont [10/16] 0.0, 128
        %589 = vxpose.xlu0.b32.cont [11/16] 0.0, 128
        %590 = vxpose.xlu0.b32.cont [12/16] 0.0, 128
        %591 = vxpose.xlu0.b32.cont [13/16] 0.0, 128
        %592 = vxpose.xlu0.b32.cont [14/16] 0.0, 128
        %593 = vxpose.xlu0.b32.cont [15/16] 0.0, 128
        %594 = vxpose.xlu0.b32.end [16/16] 0.0, 128
        %v595 = vpop.trf.xlu0
        %v596 = vpop.trf.xlu0
        %v597 = vpop.trf.xlu0
        %v598 = vpop.trf.xlu0
        %v599 = vpop.trf.xlu0
        %v600 = vpop.trf.xlu0
        %v601 = vpop.trf.xlu0
        %v602 = vpop.trf.xlu0
        %v603 = vpop.trf.xlu0
        %v604 = vpop.trf.xlu0
        %v605 = vpop.trf.xlu0
        %v606 = vpop.trf.xlu0
        %v607 = vpop.trf.xlu0
        %v608 = vpop.trf.xlu0
        %v609 = vpop.trf.xlu0
        %v610 = vpop.trf.xlu0
        %611 = vxpose.xlu0.b32.start [1/16] %v223, 128
        %612 = vxpose.xlu0.b32.cont [2/16] 0.0, 128
        %613 = vxpose.xlu0.b32.cont [3/16] 0.0, 128
        %614 = vxpose.xlu0.b32.cont [4/16] 0.0, 128
        %615 = vxpose.xlu0.b32.cont [5/16] 0.0, 128
        %616 = vxpose.xlu0.b32.cont [6/16] 0.0, 128
        %617 = vxpose.xlu0.b32.cont [7/16] 0.0, 128
        %618 = vxpose.xlu0.b32.cont [8/16] 0.0, 128
        %619 = vxpose.xlu0.b32.cont [9/16] 0.0, 128
        %620 = vxpose.xlu0.b32.cont [10/16] 0.0, 128
        %621 = vxpose.xlu0.b32.cont [11/16] 0.0, 128
        %622 = vxpose.xlu0.b32.cont [12/16] 0.0, 128
        %623 = vxpose.xlu0.b32.cont [13/16] 0.0, 128
        %624 = vxpose.xlu0.b32.cont [14/16] 0.0, 128
        %625 = vxpose.xlu0.b32.cont [15/16] 0.0, 128
        %626 = vxpose.xlu0.b32.end [16/16] 0.0, 128
        %v627 = vpop.trf.xlu0
        %v628 = vpop.trf.xlu0
        %v629 = vpop.trf.xlu0
        %v630 = vpop.trf.xlu0
        %v631 = vpop.trf.xlu0
        %v632 = vpop.trf.xlu0
        %v633 = vpop.trf.xlu0
        %v634 = vpop.trf.xlu0
        %v635 = vpop.trf.xlu0
        %v636 = vpop.trf.xlu0
        %v637 = vpop.trf.xlu0
        %v638 = vpop.trf.xlu0
        %v639 = vpop.trf.xlu0
        %v640 = vpop.trf.xlu0
        %v641 = vpop.trf.xlu0
        %v642 = vpop.trf.xlu0
        %643 = vxpose.xlu0.b32.start [1/16] %v224, 128
        %644 = vxpose.xlu0.b32.cont [2/16] 0.0, 128
        %645 = vxpose.xlu0.b32.cont [3/16] 0.0, 128
        %646 = vxpose.xlu0.b32.cont [4/16] 0.0, 128
        %647 = vxpose.xlu0.b32.cont [5/16] 0.0, 128
        %648 = vxpose.xlu0.b32.cont [6/16] 0.0, 128
        %649 = vxpose.xlu0.b32.cont [7/16] 0.0, 128
        %650 = vxpose.xlu0.b32.cont [8/16] 0.0, 128
        %651 = vxpose.xlu0.b32.cont [9/16] 0.0, 128
        %652 = vxpose.xlu0.b32.cont [10/16] 0.0, 128
        %653 = vxpose.xlu0.b32.cont [11/16] 0.0, 128
        %654 = vxpose.xlu0.b32.cont [12/16] 0.0, 128
        %655 = vxpose.xlu0.b32.cont [13/16] 0.0, 128
        %656 = vxpose.xlu0.b32.cont [14/16] 0.0, 128
        %657 = vxpose.xlu0.b32.cont [15/16] 0.0, 128
        %658 = vxpose.xlu0.b32.end [16/16] 0.0, 128
        %v659 = vpop.trf.xlu0
        %v660 = vpop.trf.xlu0
        %v661 = vpop.trf.xlu0
        %v662 = vpop.trf.xlu0
        %v663 = vpop.trf.xlu0
        %v664 = vpop.trf.xlu0
        %v665 = vpop.trf.xlu0
        %v666 = vpop.trf.xlu0
        %v667 = vpop.trf.xlu0
        %v668 = vpop.trf.xlu0
        %v669 = vpop.trf.xlu0
        %v670 = vpop.trf.xlu0
        %v671 = vpop.trf.xlu0
        %v672 = vpop.trf.xlu0
        %v673 = vpop.trf.xlu0
        %v674 = vpop.trf.xlu0
        %675 = vxpose.xlu0.b32.start [1/16] %v225, 128
        %676 = vxpose.xlu0.b32.cont [2/16] 0.0, 128
        %677 = vxpose.xlu0.b32.cont [3/16] 0.0, 128
        %678 = vxpose.xlu0.b32.cont [4/16] 0.0, 128
        %679 = vxpose.xlu0.b32.cont [5/16] 0.0, 128
        %680 = vxpose.xlu0.b32.cont [6/16] 0.0, 128
        %681 = vxpose.xlu0.b32.cont [7/16] 0.0, 128
        %682 = vxpose.xlu0.b32.cont [8/16] 0.0, 128
        %683 = vxpose.xlu0.b32.cont [9/16] 0.0, 128
        %684 = vxpose.xlu0.b32.cont [10/16] 0.0, 128
        %685 = vxpose.xlu0.b32.cont [11/16] 0.0, 128
        %686 = vxpose.xlu0.b32.cont [12/16] 0.0, 128
        %687 = vxpose.xlu0.b32.cont [13/16] 0.0, 128
        %688 = vxpose.xlu0.b32.cont [14/16] 0.0, 128
        %689 = vxpose.xlu0.b32.cont [15/16] 0.0, 128
        %690 = vxpose.xlu0.b32.end [16/16] 0.0, 128
        %v691 = vpop.trf.xlu0
        %v692 = vpop.trf.xlu0
        %v693 = vpop.trf.xlu0
        %v694 = vpop.trf.xlu0
        %v695 = vpop.trf.xlu0
        %v696 = vpop.trf.xlu0
        %v697 = vpop.trf.xlu0
        %v698 = vpop.trf.xlu0
        %v699 = vpop.trf.xlu0
        %v700 = vpop.trf.xlu0
        %v701 = vpop.trf.xlu0
        %v702 = vpop.trf.xlu0
        %v703 = vpop.trf.xlu0
        %v704 = vpop.trf.xlu0
        %v705 = vpop.trf.xlu0
        %v706 = vpop.trf.xlu0
        %707 = vxpose.xlu0.b32.start [1/16] %v226, 128
        %708 = vxpose.xlu0.b32.cont [2/16] 0.0, 128
        %709 = vxpose.xlu0.b32.cont [3/16] 0.0, 128
        %710 = vxpose.xlu0.b32.cont [4/16] 0.0, 128
        %711 = vxpose.xlu0.b32.cont [5/16] 0.0, 128
        %712 = vxpose.xlu0.b32.cont [6/16] 0.0, 128
        %713 = vxpose.xlu0.b32.cont [7/16] 0.0, 128
        %714 = vxpose.xlu0.b32.cont [8/16] 0.0, 128
        %715 = vxpose.xlu0.b32.cont [9/16] 0.0, 128
        %716 = vxpose.xlu0.b32.cont [10/16] 0.0, 128
        %717 = vxpose.xlu0.b32.cont [11/16] 0.0, 128
        %718 = vxpose.xlu0.b32.cont [12/16] 0.0, 128
        %719 = vxpose.xlu0.b32.cont [13/16] 0.0, 128
        %720 = vxpose.xlu0.b32.cont [14/16] 0.0, 128
        %721 = vxpose.xlu0.b32.cont [15/16] 0.0, 128
        %722 = vxpose.xlu0.b32.end [16/16] 0.0, 128
        %v723 = vpop.trf.xlu0
        %v724 = vpop.trf.xlu0
        %v725 = vpop.trf.xlu0
        %v726 = vpop.trf.xlu0
        %v727 = vpop.trf.xlu0
        %v728 = vpop.trf.xlu0
        %v729 = vpop.trf.xlu0
        %v730 = vpop.trf.xlu0
        %v731 = vpop.trf.xlu0
        %v732 = vpop.trf.xlu0
        %v733 = vpop.trf.xlu0
        %v734 = vpop.trf.xlu0
        %v735 = vpop.trf.xlu0
        %v736 = vpop.trf.xlu0
        %v737 = vpop.trf.xlu0
        %v738 = vpop.trf.xlu0
        %v755 = vcombine.low %v243, %v275
        %v756 = vcombine.low %v307, %v339
        %v757 = vcombine.low %v371, %v403
        %v758 = vcombine.low %v435, %v467
        %v759 = vcombine.low %v499, %v531
        %v760 = vcombine.low %v563, %v595
        %v761 = vcombine.low %v627, %v659
        %v762 = vcombine.low %v691, %v723
        %771 = vxpose.xlu0.b32.start [1/16] %v755, 128
        %772 = vxpose.xlu0.b32.cont [2/16] %v756, 128
        %773 = vxpose.xlu0.b32.cont [3/16] %v757, 128
        %774 = vxpose.xlu0.b32.cont [4/16] %v758, 128
        %775 = vxpose.xlu0.b32.cont [5/16] %v759, 128
        %776 = vxpose.xlu0.b32.cont [6/16] %v760, 128
        %777 = vxpose.xlu0.b32.cont [7/16] %v761, 128
        %778 = vxpose.xlu0.b32.cont [8/16] %v762, 128
        %779 = vxpose.xlu0.b32.cont [9/16] 0.0, 128
        %780 = vxpose.xlu0.b32.cont [10/16] 0.0, 128
        %781 = vxpose.xlu0.b32.cont [11/16] 0.0, 128
        %782 = vxpose.xlu0.b32.cont [12/16] 0.0, 128
        %783 = vxpose.xlu0.b32.cont [13/16] 0.0, 128
        %784 = vxpose.xlu0.b32.cont [14/16] 0.0, 128
        %785 = vxpose.xlu0.b32.cont [15/16] 0.0, 128
        %786 = vxpose.xlu0.b32.end [16/16] 0.0, 128
        %v787 = vpop.trf.xlu0
        %v788 = vpop.trf.xlu0
        %v789 = vpop.trf.xlu0
        %v790 = vpop.trf.xlu0
        %v791 = vpop.trf.xlu0
        %v792 = vpop.trf.xlu0
        %v793 = vpop.trf.xlu0
        %v794 = vpop.trf.xlu0
        %v795 = vpop.trf.xlu0
        %v796 = vpop.trf.xlu0
        %v797 = vpop.trf.xlu0
        %v798 = vpop.trf.xlu0
        %v799 = vpop.trf.xlu0
        %v800 = vpop.trf.xlu0
        %v801 = vpop.trf.xlu0
        %v802 = vpop.trf.xlu0
        %s803 = scalar_lea.vmem %s185, 16 [#allocation2]
        %v804 = vld [vmem:[%s803] sm:$0xf]
        %v805 = vld [vmem:[%s803 + $0x4] sm:$0xf]
        %v806 = vld [vmem:[%s803 + $0x8] sm:$0xf]
        %v807 = vld [vmem:[%s803 + $0xc] sm:$0xf]
        %v808 = vld [vmem:[%s803 + $0x40] sm:$0xf]
        %v809 = vld [vmem:[%s803 + $0x44] sm:$0xf]
        %v810 = vld [vmem:[%s803 + $0x48] sm:$0xf]
        %v811 = vld [vmem:[%s803 + $0x4c] sm:$0xf]
        %v812 = vld [vmem:[%s803 + $0x80] sm:$0xf]
        %v813 = vld [vmem:[%s803 + $0x84] sm:$0xf]
        %v814 = vld [vmem:[%s803 + $0x88] sm:$0xf]
        %v815 = vld [vmem:[%s803 + $0x8c] sm:$0xf]
        %v816 = vld [vmem:[%s803 + $0xc0] sm:$0xf]
        %v817 = vld [vmem:[%s803 + $0xc4] sm:$0xf]
        %v818 = vld [vmem:[%s803 + $0xc8] sm:$0xf]
        %v819 = vld [vmem:[%s803 + $0xcc] sm:$0xf]
        %820 = vxpose.xlu0.b32.start [1/16] %v804, 128
        %821 = vxpose.xlu0.b32.cont [2/16] 0.0, 128
        %822 = vxpose.xlu0.b32.cont [3/16] 0.0, 128
        %823 = vxpose.xlu0.b32.cont [4/16] 0.0, 128
        %824 = vxpose.xlu0.b32.cont [5/16] 0.0, 128
        %825 = vxpose.xlu0.b32.cont [6/16] 0.0, 128
        %826 = vxpose.xlu0.b32.cont [7/16] 0.0, 128
        %827 = vxpose.xlu0.b32.cont [8/16] 0.0, 128
        %828 = vxpose.xlu0.b32.cont [9/16] 0.0, 128
        %829 = vxpose.xlu0.b32.cont [10/16] 0.0, 128
        %830 = vxpose.xlu0.b32.cont [11/16] 0.0, 128
        %831 = vxpose.xlu0.b32.cont [12/16] 0.0, 128
        %832 = vxpose.xlu0.b32.cont [13/16] 0.0, 128
        %833 = vxpose.xlu0.b32.cont [14/16] 0.0, 128
        %834 = vxpose.xlu0.b32.cont [15/16] 0.0, 128
        %835 = vxpose.xlu0.b32.end [16/16] 0.0, 128
        %v836 = vpop.trf.xlu0
        %v837 = vpop.trf.xlu0
        %v838 = vpop.trf.xlu0
        %v839 = vpop.trf.xlu0
        %v840 = vpop.trf.xlu0
        %v841 = vpop.trf.xlu0
        %v842 = vpop.trf.xlu0
        %v843 = vpop.trf.xlu0
        %v844 = vpop.trf.xlu0
        %v845 = vpop.trf.xlu0
        %v846 = vpop.trf.xlu0
        %v847 = vpop.trf.xlu0
        %v848 = vpop.trf.xlu0
        %v849 = vpop.trf.xlu0
        %v850 = vpop.trf.xlu0
        %v851 = vpop.trf.xlu0
        %852 = vxpose.xlu0.b32.start [1/16] %v805, 128
        %853 = vxpose.xlu0.b32.cont [2/16] 0.0, 128
        %854 = vxpose.xlu0.b32.cont [3/16] 0.0, 128
        %855 = vxpose.xlu0.b32.cont [4/16] 0.0, 128
        %856 = vxpose.xlu0.b32.cont [5/16] 0.0, 128
        %857 = vxpose.xlu0.b32.cont [6/16] 0.0, 128
        %858 = vxpose.xlu0.b32.cont [7/16] 0.0, 128
        %859 = vxpose.xlu0.b32.cont [8/16] 0.0, 128
        %860 = vxpose.xlu0.b32.cont [9/16] 0.0, 128
        %861 = vxpose.xlu0.b32.cont [10/16] 0.0, 128
        %862 = vxpose.xlu0.b32.cont [11/16] 0.0, 128
        %863 = vxpose.xlu0.b32.cont [12/16] 0.0, 128
        %864 = vxpose.xlu0.b32.cont [13/16] 0.0, 128
        %865 = vxpose.xlu0.b32.cont [14/16] 0.0, 128
        %866 = vxpose.xlu0.b32.cont [15/16] 0.0, 128
        %867 = vxpose.xlu0.b32.end [16/16] 0.0, 128
        %v868 = vpop.trf.xlu0
        %v869 = vpop.trf.xlu0
        %v870 = vpop.trf.xlu0
        %v871 = vpop.trf.xlu0
        %v872 = vpop.trf.xlu0
        %v873 = vpop.trf.xlu0
        %v874 = vpop.trf.xlu0
        %v875 = vpop.trf.xlu0
        %v876 = vpop.trf.xlu0
        %v877 = vpop.trf.xlu0
        %v878 = vpop.trf.xlu0
        %v879 = vpop.trf.xlu0
        %v880 = vpop.trf.xlu0
        %v881 = vpop.trf.xlu0
        %v882 = vpop.trf.xlu0
        %v883 = vpop.trf.xlu0
        %884 = vxpose.xlu0.b32.start [1/16] %v806, 128
        %885 = vxpose.xlu0.b32.cont [2/16] 0.0, 128
        %886 = vxpose.xlu0.b32.cont [3/16] 0.0, 128
        %887 = vxpose.xlu0.b32.cont [4/16] 0.0, 128
        %888 = vxpose.xlu0.b32.cont [5/16] 0.0, 128
        %889 = vxpose.xlu0.b32.cont [6/16] 0.0, 128
        %890 = vxpose.xlu0.b32.cont [7/16] 0.0, 128
        %891 = vxpose.xlu0.b32.cont [8/16] 0.0, 128
        %892 = vxpose.xlu0.b32.cont [9/16] 0.0, 128
        %893 = vxpose.xlu0.b32.cont [10/16] 0.0, 128
        %894 = vxpose.xlu0.b32.cont [11/16] 0.0, 128
        %895 = vxpose.xlu0.b32.cont [12/16] 0.0, 128
        %896 = vxpose.xlu0.b32.cont [13/16] 0.0, 128
        %897 = vxpose.xlu0.b32.cont [14/16] 0.0, 128
        %898 = vxpose.xlu0.b32.cont [15/16] 0.0, 128
        %899 = vxpose.xlu0.b32.end [16/16] 0.0, 128
        %v900 = vpop.trf.xlu0
        %v901 = vpop.trf.xlu0
        %v902 = vpop.trf.xlu0
        %v903 = vpop.trf.xlu0
        %v904 = vpop.trf.xlu0
        %v905 = vpop.trf.xlu0
        %v906 = vpop.trf.xlu0
        %v907 = vpop.trf.xlu0
        %v908 = vpop.trf.xlu0
        %v909 = vpop.trf.xlu0
        %v910 = vpop.trf.xlu0
        %v911 = vpop.trf.xlu0
        %v912 = vpop.trf.xlu0
        %v913 = vpop.trf.xlu0
        %v914 = vpop.trf.xlu0
        %v915 = vpop.trf.xlu0
        %916 = vxpose.xlu0.b32.start [1/16] %v807, 128
        %917 = vxpose.xlu0.b32.cont [2/16] 0.0, 128
        %918 = vxpose.xlu0.b32.cont [3/16] 0.0, 128
        %919 = vxpose.xlu0.b32.cont [4/16] 0.0, 128
        %920 = vxpose.xlu0.b32.cont [5/16] 0.0, 128
        %921 = vxpose.xlu0.b32.cont [6/16] 0.0, 128
        %922 = vxpose.xlu0.b32.cont [7/16] 0.0, 128
        %923 = vxpose.xlu0.b32.cont [8/16] 0.0, 128
        %924 = vxpose.xlu0.b32.cont [9/16] 0.0, 128
        %925 = vxpose.xlu0.b32.cont [10/16] 0.0, 128
        %926 = vxpose.xlu0.b32.cont [11/16] 0.0, 128
        %927 = vxpose.xlu0.b32.cont [12/16] 0.0, 128
        %928 = vxpose.xlu0.b32.cont [13/16] 0.0, 128
        %929 = vxpose.xlu0.b32.cont [14/16] 0.0, 128
        %930 = vxpose.xlu0.b32.cont [15/16] 0.0, 128
        %931 = vxpose.xlu0.b32.end [16/16] 0.0, 128
        %v932 = vpop.trf.xlu0
        %v933 = vpop.trf.xlu0
        %v934 = vpop.trf.xlu0
        %v935 = vpop.trf.xlu0
        %v936 = vpop.trf.xlu0
        %v937 = vpop.trf.xlu0
        %v938 = vpop.trf.xlu0
        %v939 = vpop.trf.xlu0
        %v940 = vpop.trf.xlu0
        %v941 = vpop.trf.xlu0
        %v942 = vpop.trf.xlu0
        %v943 = vpop.trf.xlu0
        %v944 = vpop.trf.xlu0
        %v945 = vpop.trf.xlu0
        %v946 = vpop.trf.xlu0
        %v947 = vpop.trf.xlu0
        %948 = vxpose.xlu0.b32.start [1/16] %v808, 128
        %949 = vxpose.xlu0.b32.cont [2/16] 0.0, 128
        %950 = vxpose.xlu0.b32.cont [3/16] 0.0, 128
        %951 = vxpose.xlu0.b32.cont [4/16] 0.0, 128
        %952 = vxpose.xlu0.b32.cont [5/16] 0.0, 128
        %953 = vxpose.xlu0.b32.cont [6/16] 0.0, 128
        %954 = vxpose.xlu0.b32.cont [7/16] 0.0, 128
        %955 = vxpose.xlu0.b32.cont [8/16] 0.0, 128
        %956 = vxpose.xlu0.b32.cont [9/16] 0.0, 128
        %957 = vxpose.xlu0.b32.cont [10/16] 0.0, 128
        %958 = vxpose.xlu0.b32.cont [11/16] 0.0, 128
        %959 = vxpose.xlu0.b32.cont [12/16] 0.0, 128
        %960 = vxpose.xlu0.b32.cont [13/16] 0.0, 128
        %961 = vxpose.xlu0.b32.cont [14/16] 0.0, 128
        %962 = vxpose.xlu0.b32.cont [15/16] 0.0, 128
        %963 = vxpose.xlu0.b32.end [16/16] 0.0, 128
        %v964 = vpop.trf.xlu0
        %v965 = vpop.trf.xlu0
        %v966 = vpop.trf.xlu0
        %v967 = vpop.trf.xlu0
        %v968 = vpop.trf.xlu0
        %v969 = vpop.trf.xlu0
        %v970 = vpop.trf.xlu0
        %v971 = vpop.trf.xlu0
        %v972 = vpop.trf.xlu0
        %v973 = vpop.trf.xlu0
        %v974 = vpop.trf.xlu0
        %v975 = vpop.trf.xlu0
        %v976 = vpop.trf.xlu0
        %v977 = vpop.trf.xlu0
        %v978 = vpop.trf.xlu0
        %v979 = vpop.trf.xlu0
        %980 = vxpose.xlu0.b32.start [1/16] %v809, 128
        %981 = vxpose.xlu0.b32.cont [2/16] 0.0, 128
        %982 = vxpose.xlu0.b32.cont [3/16] 0.0, 128
        %983 = vxpose.xlu0.b32.cont [4/16] 0.0, 128
        %984 = vxpose.xlu0.b32.cont [5/16] 0.0, 128
        %985 = vxpose.xlu0.b32.cont [6/16] 0.0, 128
        %986 = vxpose.xlu0.b32.cont [7/16] 0.0, 128
        %987 = vxpose.xlu0.b32.cont [8/16] 0.0, 128
        %988 = vxpose.xlu0.b32.cont [9/16] 0.0, 128
        %989 = vxpose.xlu0.b32.cont [10/16] 0.0, 128
        %990 = vxpose.xlu0.b32.cont [11/16] 0.0, 128
        %991 = vxpose.xlu0.b32.cont [12/16] 0.0, 128
        %992 = vxpose.xlu0.b32.cont [13/16] 0.0, 128
        %993 = vxpose.xlu0.b32.cont [14/16] 0.0, 128
        %994 = vxpose.xlu0.b32.cont [15/16] 0.0, 128
        %995 = vxpose.xlu0.b32.end [16/16] 0.0, 128
        %v996 = vpop.trf.xlu0
        %v997 = vpop.trf.xlu0
        %v998 = vpop.trf.xlu0
        %v999 = vpop.trf.xlu0
        %v1000 = vpop.trf.xlu0
        %v1001 = vpop.trf.xlu0
        %v1002 = vpop.trf.xlu0
        %v1003 = vpop.trf.xlu0
        %v1004 = vpop.trf.xlu0
        %v1005 = vpop.trf.xlu0
        %v1006 = vpop.trf.xlu0
        %v1007 = vpop.trf.xlu0
        %v1008 = vpop.trf.xlu0
        %v1009 = vpop.trf.xlu0
        %v1010 = vpop.trf.xlu0
        %v1011 = vpop.trf.xlu0
        %1012 = vxpose.xlu0.b32.start [1/16] %v810, 128
        %1013 = vxpose.xlu0.b32.cont [2/16] 0.0, 128
        %1014 = vxpose.xlu0.b32.cont [3/16] 0.0, 128
        %1015 = vxpose.xlu0.b32.cont [4/16] 0.0, 128
        %1016 = vxpose.xlu0.b32.cont [5/16] 0.0, 128
        %1017 = vxpose.xlu0.b32.cont [6/16] 0.0, 128
        %1018 = vxpose.xlu0.b32.cont [7/16] 0.0, 128
        %1019 = vxpose.xlu0.b32.cont [8/16] 0.0, 128
        %1020 = vxpose.xlu0.b32.cont [9/16] 0.0, 128
        %1021 = vxpose.xlu0.b32.cont [10/16] 0.0, 128
        %1022 = vxpose.xlu0.b32.cont [11/16] 0.0, 128
        %1023 = vxpose.xlu0.b32.cont [12/16] 0.0, 128
        %1024 = vxpose.xlu0.b32.cont [13/16] 0.0, 128
        %1025 = vxpose.xlu0.b32.cont [14/16] 0.0, 128
        %1026 = vxpose.xlu0.b32.cont [15/16] 0.0, 128
        %1027 = vxpose.xlu0.b32.end [16/16] 0.0, 128
        %v1028 = vpop.trf.xlu0
        %v1029 = vpop.trf.xlu0
        %v1030 = vpop.trf.xlu0
        %v1031 = vpop.trf.xlu0
        %v1032 = vpop.trf.xlu0
        %v1033 = vpop.trf.xlu0
        %v1034 = vpop.trf.xlu0
        %v1035 = vpop.trf.xlu0
        %v1036 = vpop.trf.xlu0
        %v1037 = vpop.trf.xlu0
        %v1038 = vpop.trf.xlu0
        %v1039 = vpop.trf.xlu0
        %v1040 = vpop.trf.xlu0
        %v1041 = vpop.trf.xlu0
        %v1042 = vpop.trf.xlu0
        %v1043 = vpop.trf.xlu0
        %1044 = vxpose.xlu0.b32.start [1/16] %v811, 128
        %1045 = vxpose.xlu0.b32.cont [2/16] 0.0, 128
        %1046 = vxpose.xlu0.b32.cont [3/16] 0.0, 128
        %1047 = vxpose.xlu0.b32.cont [4/16] 0.0, 128
        %1048 = vxpose.xlu0.b32.cont [5/16] 0.0, 128
        %1049 = vxpose.xlu0.b32.cont [6/16] 0.0, 128
        %1050 = vxpose.xlu0.b32.cont [7/16] 0.0, 128
        %1051 = vxpose.xlu0.b32.cont [8/16] 0.0, 128
        %1052 = vxpose.xlu0.b32.cont [9/16] 0.0, 128
        %1053 = vxpose.xlu0.b32.cont [10/16] 0.0, 128
        %1054 = vxpose.xlu0.b32.cont [11/16] 0.0, 128
        %1055 = vxpose.xlu0.b32.cont [12/16] 0.0, 128
        %1056 = vxpose.xlu0.b32.cont [13/16] 0.0, 128
        %1057 = vxpose.xlu0.b32.cont [14/16] 0.0, 128
        %1058 = vxpose.xlu0.b32.cont [15/16] 0.0, 128
        %1059 = vxpose.xlu0.b32.end [16/16] 0.0, 128
        %v1060 = vpop.trf.xlu0
        %v1061 = vpop.trf.xlu0
        %v1062 = vpop.trf.xlu0
        %v1063 = vpop.trf.xlu0
        %v1064 = vpop.trf.xlu0
        %v1065 = vpop.trf.xlu0
        %v1066 = vpop.trf.xlu0
        %v1067 = vpop.trf.xlu0
        %v1068 = vpop.trf.xlu0
        %v1069 = vpop.trf.xlu0
        %v1070 = vpop.trf.xlu0
        %v1071 = vpop.trf.xlu0
        %v1072 = vpop.trf.xlu0
        %v1073 = vpop.trf.xlu0
        %v1074 = vpop.trf.xlu0
        %v1075 = vpop.trf.xlu0
        %1076 = vxpose.xlu0.b32.start [1/16] %v812, 128
        %1077 = vxpose.xlu0.b32.cont [2/16] 0.0, 128
        %1078 = vxpose.xlu0.b32.cont [3/16] 0.0, 128
        %1079 = vxpose.xlu0.b32.cont [4/16] 0.0, 128
        %1080 = vxpose.xlu0.b32.cont [5/16] 0.0, 128
        %1081 = vxpose.xlu0.b32.cont [6/16] 0.0, 128
        %1082 = vxpose.xlu0.b32.cont [7/16] 0.0, 128
        %1083 = vxpose.xlu0.b32.cont [8/16] 0.0, 128
        %1084 = vxpose.xlu0.b32.cont [9/16] 0.0, 128
        %1085 = vxpose.xlu0.b32.cont [10/16] 0.0, 128
        %1086 = vxpose.xlu0.b32.cont [11/16] 0.0, 128
        %1087 = vxpose.xlu0.b32.cont [12/16] 0.0, 128
        %1088 = vxpose.xlu0.b32.cont [13/16] 0.0, 128
        %1089 = vxpose.xlu0.b32.cont [14/16] 0.0, 128
        %1090 = vxpose.xlu0.b32.cont [15/16] 0.0, 128
        %1091 = vxpose.xlu0.b32.end [16/16] 0.0, 128
        %v1092 = vpop.trf.xlu0
        %v1093 = vpop.trf.xlu0
        %v1094 = vpop.trf.xlu0
        %v1095 = vpop.trf.xlu0
        %v1096 = vpop.trf.xlu0
        %v1097 = vpop.trf.xlu0
        %v1098 = vpop.trf.xlu0
        %v1099 = vpop.trf.xlu0
        %v1100 = vpop.trf.xlu0
        %v1101 = vpop.trf.xlu0
        %v1102 = vpop.trf.xlu0
        %v1103 = vpop.trf.xlu0
        %v1104 = vpop.trf.xlu0
        %v1105 = vpop.trf.xlu0
        %v1106 = vpop.trf.xlu0
        %v1107 = vpop.trf.xlu0
        %1108 = vxpose.xlu0.b32.start [1/16] %v813, 128
        %1109 = vxpose.xlu0.b32.cont [2/16] 0.0, 128
        %1110 = vxpose.xlu0.b32.cont [3/16] 0.0, 128
        %1111 = vxpose.xlu0.b32.cont [4/16] 0.0, 128
        %1112 = vxpose.xlu0.b32.cont [5/16] 0.0, 128
        %1113 = vxpose.xlu0.b32.cont [6/16] 0.0, 128
        %1114 = vxpose.xlu0.b32.cont [7/16] 0.0, 128
        %1115 = vxpose.xlu0.b32.cont [8/16] 0.0, 128
        %1116 = vxpose.xlu0.b32.cont [9/16] 0.0, 128
        %1117 = vxpose.xlu0.b32.cont [10/16] 0.0, 128
        %1118 = vxpose.xlu0.b32.cont [11/16] 0.0, 128
        %1119 = vxpose.xlu0.b32.cont [12/16] 0.0, 128
        %1120 = vxpose.xlu0.b32.cont [13/16] 0.0, 128
        %1121 = vxpose.xlu0.b32.cont [14/16] 0.0, 128
        %1122 = vxpose.xlu0.b32.cont [15/16] 0.0, 128
        %1123 = vxpose.xlu0.b32.end [16/16] 0.0, 128
        %v1124 = vpop.trf.xlu0
        %v1125 = vpop.trf.xlu0
        %v1126 = vpop.trf.xlu0
        %v1127 = vpop.trf.xlu0
        %v1128 = vpop.trf.xlu0
        %v1129 = vpop.trf.xlu0
        %v1130 = vpop.trf.xlu0
        %v1131 = vpop.trf.xlu0
        %v1132 = vpop.trf.xlu0
        %v1133 = vpop.trf.xlu0
        %v1134 = vpop.trf.xlu0
        %v1135 = vpop.trf.xlu0
        %v1136 = vpop.trf.xlu0
        %v1137 = vpop.trf.xlu0
        %v1138 = vpop.trf.xlu0
        %v1139 = vpop.trf.xlu0
        %1140 = vxpose.xlu0.b32.start [1/16] %v814, 128
        %1141 = vxpose.xlu0.b32.cont [2/16] 0.0, 128
        %1142 = vxpose.xlu0.b32.cont [3/16] 0.0, 128
        %1143 = vxpose.xlu0.b32.cont [4/16] 0.0, 128
        %1144 = vxpose.xlu0.b32.cont [5/16] 0.0, 128
        %1145 = vxpose.xlu0.b32.cont [6/16] 0.0, 128
        %1146 = vxpose.xlu0.b32.cont [7/16] 0.0, 128
        %1147 = vxpose.xlu0.b32.cont [8/16] 0.0, 128
        %1148 = vxpose.xlu0.b32.cont [9/16] 0.0, 128
        %1149 = vxpose.xlu0.b32.cont [10/16] 0.0, 128
        %1150 = vxpose.xlu0.b32.cont [11/16] 0.0, 128
        %1151 = vxpose.xlu0.b32.cont [12/16] 0.0, 128
        %1152 = vxpose.xlu0.b32.cont [13/16] 0.0, 128
        %1153 = vxpose.xlu0.b32.cont [14/16] 0.0, 128
        %1154 = vxpose.xlu0.b32.cont [15/16] 0.0, 128
        %1155 = vxpose.xlu0.b32.end [16/16] 0.0, 128
        %v1156 = vpop.trf.xlu0
        %v1157 = vpop.trf.xlu0
        %v1158 = vpop.trf.xlu0
        %v1159 = vpop.trf.xlu0
        %v1160 = vpop.trf.xlu0
        %v1161 = vpop.trf.xlu0
        %v1162 = vpop.trf.xlu0
        %v1163 = vpop.trf.xlu0
        %v1164 = vpop.trf.xlu0
        %v1165 = vpop.trf.xlu0
        %v1166 = vpop.trf.xlu0
        %v1167 = vpop.trf.xlu0
        %v1168 = vpop.trf.xlu0
        %v1169 = vpop.trf.xlu0
        %v1170 = vpop.trf.xlu0
        %v1171 = vpop.trf.xlu0
        %1172 = vxpose.xlu0.b32.start [1/16] %v815, 128
        %1173 = vxpose.xlu0.b32.cont [2/16] 0.0, 128
        %1174 = vxpose.xlu0.b32.cont [3/16] 0.0, 128
        %1175 = vxpose.xlu0.b32.cont [4/16] 0.0, 128
        %1176 = vxpose.xlu0.b32.cont [5/16] 0.0, 128
        %1177 = vxpose.xlu0.b32.cont [6/16] 0.0, 128
        %1178 = vxpose.xlu0.b32.cont [7/16] 0.0, 128
        %1179 = vxpose.xlu0.b32.cont [8/16] 0.0, 128
        %1180 = vxpose.xlu0.b32.cont [9/16] 0.0, 128
        %1181 = vxpose.xlu0.b32.cont [10/16] 0.0, 128
        %1182 = vxpose.xlu0.b32.cont [11/16] 0.0, 128
        %1183 = vxpose.xlu0.b32.cont [12/16] 0.0, 128
        %1184 = vxpose.xlu0.b32.cont [13/16] 0.0, 128
        %1185 = vxpose.xlu0.b32.cont [14/16] 0.0, 128
        %1186 = vxpose.xlu0.b32.cont [15/16] 0.0, 128
        %1187 = vxpose.xlu0.b32.end [16/16] 0.0, 128
        %v1188 = vpop.trf.xlu0
        %v1189 = vpop.trf.xlu0
        %v1190 = vpop.trf.xlu0
        %v1191 = vpop.trf.xlu0
        %v1192 = vpop.trf.xlu0
        %v1193 = vpop.trf.xlu0
        %v1194 = vpop.trf.xlu0
        %v1195 = vpop.trf.xlu0
        %v1196 = vpop.trf.xlu0
        %v1197 = vpop.trf.xlu0
        %v1198 = vpop.trf.xlu0
        %v1199 = vpop.trf.xlu0
        %v1200 = vpop.trf.xlu0
        %v1201 = vpop.trf.xlu0
        %v1202 = vpop.trf.xlu0
        %v1203 = vpop.trf.xlu0
        %1204 = vxpose.xlu0.b32.start [1/16] %v816, 128
        %1205 = vxpose.xlu0.b32.cont [2/16] 0.0, 128
        %1206 = vxpose.xlu0.b32.cont [3/16] 0.0, 128
        %1207 = vxpose.xlu0.b32.cont [4/16] 0.0, 128
        %1208 = vxpose.xlu0.b32.cont [5/16] 0.0, 128
        %1209 = vxpose.xlu0.b32.cont [6/16] 0.0, 128
        %1210 = vxpose.xlu0.b32.cont [7/16] 0.0, 128
        %1211 = vxpose.xlu0.b32.cont [8/16] 0.0, 128
        %1212 = vxpose.xlu0.b32.cont [9/16] 0.0, 128
        %1213 = vxpose.xlu0.b32.cont [10/16] 0.0, 128
        %1214 = vxpose.xlu0.b32.cont [11/16] 0.0, 128
        %1215 = vxpose.xlu0.b32.cont [12/16] 0.0, 128
        %1216 = vxpose.xlu0.b32.cont [13/16] 0.0, 128
        %1217 = vxpose.xlu0.b32.cont [14/16] 0.0, 128
        %1218 = vxpose.xlu0.b32.cont [15/16] 0.0, 128
        %1219 = vxpose.xlu0.b32.end [16/16] 0.0, 128
        %v1220 = vpop.trf.xlu0
        %v1221 = vpop.trf.xlu0
        %v1222 = vpop.trf.xlu0
        %v1223 = vpop.trf.xlu0
        %v1224 = vpop.trf.xlu0
        %v1225 = vpop.trf.xlu0
        %v1226 = vpop.trf.xlu0
        %v1227 = vpop.trf.xlu0
        %v1228 = vpop.trf.xlu0
        %v1229 = vpop.trf.xlu0
        %v1230 = vpop.trf.xlu0
        %v1231 = vpop.trf.xlu0
        %v1232 = vpop.trf.xlu0
        %v1233 = vpop.trf.xlu0
        %v1234 = vpop.trf.xlu0
        %v1235 = vpop.trf.xlu0
        %1236 = vxpose.xlu0.b32.start [1/16] %v817, 128
        %1237 = vxpose.xlu0.b32.cont [2/16] 0.0, 128
        %1238 = vxpose.xlu0.b32.cont [3/16] 0.0, 128
        %1239 = vxpose.xlu0.b32.cont [4/16] 0.0, 128
        %1240 = vxpose.xlu0.b32.cont [5/16] 0.0, 128
        %1241 = vxpose.xlu0.b32.cont [6/16] 0.0, 128
        %1242 = vxpose.xlu0.b32.cont [7/16] 0.0, 128
        %1243 = vxpose.xlu0.b32.cont [8/16] 0.0, 128
        %1244 = vxpose.xlu0.b32.cont [9/16] 0.0, 128
        %1245 = vxpose.xlu0.b32.cont [10/16] 0.0, 128
        %1246 = vxpose.xlu0.b32.cont [11/16] 0.0, 128
        %1247 = vxpose.xlu0.b32.cont [12/16] 0.0, 128
        %1248 = vxpose.xlu0.b32.cont [13/16] 0.0, 128
        %1249 = vxpose.xlu0.b32.cont [14/16] 0.0, 128
        %1250 = vxpose.xlu0.b32.cont [15/16] 0.0, 128
        %1251 = vxpose.xlu0.b32.end [16/16] 0.0, 128
        %v1252 = vpop.trf.xlu0
        %v1253 = vpop.trf.xlu0
        %v1254 = vpop.trf.xlu0
        %v1255 = vpop.trf.xlu0
        %v1256 = vpop.trf.xlu0
        %v1257 = vpop.trf.xlu0
        %v1258 = vpop.trf.xlu0
        %v1259 = vpop.trf.xlu0
        %v1260 = vpop.trf.xlu0
        %v1261 = vpop.trf.xlu0
        %v1262 = vpop.trf.xlu0
        %v1263 = vpop.trf.xlu0
        %v1264 = vpop.trf.xlu0
        %v1265 = vpop.trf.xlu0
        %v1266 = vpop.trf.xlu0
        %v1267 = vpop.trf.xlu0
        %1268 = vxpose.xlu0.b32.start [1/16] %v818, 128
        %1269 = vxpose.xlu0.b32.cont [2/16] 0.0, 128
        %1270 = vxpose.xlu0.b32.cont [3/16] 0.0, 128
        %1271 = vxpose.xlu0.b32.cont [4/16] 0.0, 128
        %1272 = vxpose.xlu0.b32.cont [5/16] 0.0, 128
        %1273 = vxpose.xlu0.b32.cont [6/16] 0.0, 128
        %1274 = vxpose.xlu0.b32.cont [7/16] 0.0, 128
        %1275 = vxpose.xlu0.b32.cont [8/16] 0.0, 128
        %1276 = vxpose.xlu0.b32.cont [9/16] 0.0, 128
        %1277 = vxpose.xlu0.b32.cont [10/16] 0.0, 128
        %1278 = vxpose.xlu0.b32.cont [11/16] 0.0, 128
        %1279 = vxpose.xlu0.b32.cont [12/16] 0.0, 128
        %1280 = vxpose.xlu0.b32.cont [13/16] 0.0, 128
        %1281 = vxpose.xlu0.b32.cont [14/16] 0.0, 128
        %1282 = vxpose.xlu0.b32.cont [15/16] 0.0, 128
        %1283 = vxpose.xlu0.b32.end [16/16] 0.0, 128
        %v1284 = vpop.trf.xlu0
        %v1285 = vpop.trf.xlu0
        %v1286 = vpop.trf.xlu0
        %v1287 = vpop.trf.xlu0
        %v1288 = vpop.trf.xlu0
        %v1289 = vpop.trf.xlu0
        %v1290 = vpop.trf.xlu0
        %v1291 = vpop.trf.xlu0
        %v1292 = vpop.trf.xlu0
        %v1293 = vpop.trf.xlu0
        %v1294 = vpop.trf.xlu0
        %v1295 = vpop.trf.xlu0
        %v1296 = vpop.trf.xlu0
        %v1297 = vpop.trf.xlu0
        %v1298 = vpop.trf.xlu0
        %v1299 = vpop.trf.xlu0
        %1300 = vxpose.xlu0.b32.start [1/16] %v819, 128
        %1301 = vxpose.xlu0.b32.cont [2/16] 0.0, 128
        %1302 = vxpose.xlu0.b32.cont [3/16] 0.0, 128
        %1303 = vxpose.xlu0.b32.cont [4/16] 0.0, 128
        %1304 = vxpose.xlu0.b32.cont [5/16] 0.0, 128
        %1305 = vxpose.xlu0.b32.cont [6/16] 0.0, 128
        %1306 = vxpose.xlu0.b32.cont [7/16] 0.0, 128
        %1307 = vxpose.xlu0.b32.cont [8/16] 0.0, 128
        %1308 = vxpose.xlu0.b32.cont [9/16] 0.0, 128
        %1309 = vxpose.xlu0.b32.cont [10/16] 0.0, 128
        %1310 = vxpose.xlu0.b32.cont [11/16] 0.0, 128
        %1311 = vxpose.xlu0.b32.cont [12/16] 0.0, 128
        %1312 = vxpose.xlu0.b32.cont [13/16] 0.0, 128
        %1313 = vxpose.xlu0.b32.cont [14/16] 0.0, 128
        %1314 = vxpose.xlu0.b32.cont [15/16] 0.0, 128
        %1315 = vxpose.xlu0.b32.end [16/16] 0.0, 128
        %v1316 = vpop.trf.xlu0
        %v1317 = vpop.trf.xlu0
        %v1318 = vpop.trf.xlu0
        %v1319 = vpop.trf.xlu0
        %v1320 = vpop.trf.xlu0
        %v1321 = vpop.trf.xlu0
        %v1322 = vpop.trf.xlu0
        %v1323 = vpop.trf.xlu0
        %v1324 = vpop.trf.xlu0
        %v1325 = vpop.trf.xlu0
        %v1326 = vpop.trf.xlu0
        %v1327 = vpop.trf.xlu0
        %v1328 = vpop.trf.xlu0
        %v1329 = vpop.trf.xlu0
        %v1330 = vpop.trf.xlu0
        %v1331 = vpop.trf.xlu0
        %v1348 = vcombine.low %v836, %v868
        %v1349 = vcombine.low %v900, %v932
        %v1350 = vcombine.low %v964, %v996
        %v1351 = vcombine.low %v1028, %v1060
        %v1352 = vcombine.low %v1092, %v1124
        %v1353 = vcombine.low %v1156, %v1188
        %v1354 = vcombine.low %v1220, %v1252
        %v1355 = vcombine.low %v1284, %v1316
        %1364 = vxpose.xlu0.b32.start [1/16] %v1348, 128
        %1365 = vxpose.xlu0.b32.cont [2/16] %v1349, 128
        %1366 = vxpose.xlu0.b32.cont [3/16] %v1350, 128
        %1367 = vxpose.xlu0.b32.cont [4/16] %v1351, 128
        %1368 = vxpose.xlu0.b32.cont [5/16] %v1352, 128
        %1369 = vxpose.xlu0.b32.cont [6/16] %v1353, 128
        %1370 = vxpose.xlu0.b32.cont [7/16] %v1354, 128
        %1371 = vxpose.xlu0.b32.cont [8/16] %v1355, 128
        %1372 = vxpose.xlu0.b32.cont [9/16] 0.0, 128
        %1373 = vxpose.xlu0.b32.cont [10/16] 0.0, 128
        %1374 = vxpose.xlu0.b32.cont [11/16] 0.0, 128
        %1375 = vxpose.xlu0.b32.cont [12/16] 0.0, 128
        %1376 = vxpose.xlu0.b32.cont [13/16] 0.0, 128
        %1377 = vxpose.xlu0.b32.cont [14/16] 0.0, 128
        %1378 = vxpose.xlu0.b32.cont [15/16] 0.0, 128
        %1379 = vxpose.xlu0.b32.end [16/16] 0.0, 128
        %v1380 = vpop.trf.xlu0
        %v1381 = vpop.trf.xlu0
        %v1382 = vpop.trf.xlu0
        %v1383 = vpop.trf.xlu0
        %v1384 = vpop.trf.xlu0
        %v1385 = vpop.trf.xlu0
        %v1386 = vpop.trf.xlu0
        %v1387 = vpop.trf.xlu0
        %v1388 = vpop.trf.xlu0
        %v1389 = vpop.trf.xlu0
        %v1390 = vpop.trf.xlu0
        %v1391 = vpop.trf.xlu0
        %v1392 = vpop.trf.xlu0
        %v1393 = vpop.trf.xlu0
        %v1394 = vpop.trf.xlu0
        %v1395 = vpop.trf.xlu0
        %s1396 = scalar_lea.vmem %s185, 32 [#allocation2]
        %v1397 = vld [vmem:[%s1396] sm:$0xf]
        %v1398 = vld [vmem:[%s1396 + $0x4] sm:$0xf]
        %v1399 = vld [vmem:[%s1396 + $0x8] sm:$0xf]
        %v1400 = vld [vmem:[%s1396 + $0xc] sm:$0xf]
        %v1401 = vld [vmem:[%s1396 + $0x40] sm:$0xf]
        %v1402 = vld [vmem:[%s1396 + $0x44] sm:$0xf]
        %v1403 = vld [vmem:[%s1396 + $0x48] sm:$0xf]
        %v1404 = vld [vmem:[%s1396 + $0x4c] sm:$0xf]
        %v1405 = vld [vmem:[%s1396 + $0x80] sm:$0xf]
        %v1406 = vld [vmem:[%s1396 + $0x84] sm:$0xf]
        %v1407 = vld [vmem:[%s1396 + $0x88] sm:$0xf]
        %v1408 = vld [vmem:[%s1396 + $0x8c] sm:$0xf]
        %v1409 = vld [vmem:[%s1396 + $0xc0] sm:$0xf]
        %v1410 = vld [vmem:[%s1396 + $0xc4] sm:$0xf]
        %v1411 = vld [vmem:[%s1396 + $0xc8] sm:$0xf]
        %v1412 = vld [vmem:[%s1396 + $0xcc] sm:$0xf]
        %1413 = vxpose.xlu0.b32.start [1/16] %v1397, 128
        %1414 = vxpose.xlu0.b32.cont [2/16] 0.0, 128
        %1415 = vxpose.xlu0.b32.cont [3/16] 0.0, 128
        %1416 = vxpose.xlu0.b32.cont [4/16] 0.0, 128
        %1417 = vxpose.xlu0.b32.cont [5/16] 0.0, 128
        %1418 = vxpose.xlu0.b32.cont [6/16] 0.0, 128
        %1419 = vxpose.xlu0.b32.cont [7/16] 0.0, 128
        %1420 = vxpose.xlu0.b32.cont [8/16] 0.0, 128
        %1421 = vxpose.xlu0.b32.cont [9/16] 0.0, 128
        %1422 = vxpose.xlu0.b32.cont [10/16] 0.0, 128
        %1423 = vxpose.xlu0.b32.cont [11/16] 0.0, 128
        %1424 = vxpose.xlu0.b32.cont [12/16] 0.0, 128
        %1425 = vxpose.xlu0.b32.cont [13/16] 0.0, 128
        %1426 = vxpose.xlu0.b32.cont [14/16] 0.0, 128
        %1427 = vxpose.xlu0.b32.cont [15/16] 0.0, 128
        %1428 = vxpose.xlu0.b32.end [16/16] 0.0, 128
        %v1429 = vpop.trf.xlu0
        %v1430 = vpop.trf.xlu0
        %v1431 = vpop.trf.xlu0
        %v1432 = vpop.trf.xlu0
        %v1433 = vpop.trf.xlu0
        %v1434 = vpop.trf.xlu0
        %v1435 = vpop.trf.xlu0
        %v1436 = vpop.trf.xlu0
        %v1437 = vpop.trf.xlu0
        %v1438 = vpop.trf.xlu0
        %v1439 = vpop.trf.xlu0
        %v1440 = vpop.trf.xlu0
        %v1441 = vpop.trf.xlu0
        %v1442 = vpop.trf.xlu0
        %v1443 = vpop.trf.xlu0
        %v1444 = vpop.trf.xlu0
        %1445 = vxpose.xlu0.b32.start [1/16] %v1398, 128
        %1446 = vxpose.xlu0.b32.cont [2/16] 0.0, 128
        %1447 = vxpose.xlu0.b32.cont [3/16] 0.0, 128
        %1448 = vxpose.xlu0.b32.cont [4/16] 0.0, 128
        %1449 = vxpose.xlu0.b32.cont [5/16] 0.0, 128
        %1450 = vxpose.xlu0.b32.cont [6/16] 0.0, 128
        %1451 = vxpose.xlu0.b32.cont [7/16] 0.0, 128
        %1452 = vxpose.xlu0.b32.cont [8/16] 0.0, 128
        %1453 = vxpose.xlu0.b32.cont [9/16] 0.0, 128
        %1454 = vxpose.xlu0.b32.cont [10/16] 0.0, 128
        %1455 = vxpose.xlu0.b32.cont [11/16] 0.0, 128
        %1456 = vxpose.xlu0.b32.cont [12/16] 0.0, 128
        %1457 = vxpose.xlu0.b32.cont [13/16] 0.0, 128
        %1458 = vxpose.xlu0.b32.cont [14/16] 0.0, 128
        %1459 = vxpose.xlu0.b32.cont [15/16] 0.0, 128
        %1460 = vxpose.xlu0.b32.end [16/16] 0.0, 128
        %v1461 = vpop.trf.xlu0
        %v1462 = vpop.trf.xlu0
        %v1463 = vpop.trf.xlu0
        %v1464 = vpop.trf.xlu0
        %v1465 = vpop.trf.xlu0
        %v1466 = vpop.trf.xlu0
        %v1467 = vpop.trf.xlu0
        %v1468 = vpop.trf.xlu0
        %v1469 = vpop.trf.xlu0
        %v1470 = vpop.trf.xlu0
        %v1471 = vpop.trf.xlu0
        %v1472 = vpop.trf.xlu0
        %v1473 = vpop.trf.xlu0
        %v1474 = vpop.trf.xlu0
        %v1475 = vpop.trf.xlu0
        %v1476 = vpop.trf.xlu0
        %1477 = vxpose.xlu0.b32.start [1/16] %v1399, 128
        %1478 = vxpose.xlu0.b32.cont [2/16] 0.0, 128
        %1479 = vxpose.xlu0.b32.cont [3/16] 0.0, 128
        %1480 = vxpose.xlu0.b32.cont [4/16] 0.0, 128
        %1481 = vxpose.xlu0.b32.cont [5/16] 0.0, 128
        %1482 = vxpose.xlu0.b32.cont [6/16] 0.0, 128
        %1483 = vxpose.xlu0.b32.cont [7/16] 0.0, 128
        %1484 = vxpose.xlu0.b32.cont [8/16] 0.0, 128
        %1485 = vxpose.xlu0.b32.cont [9/16] 0.0, 128
        %1486 = vxpose.xlu0.b32.cont [10/16] 0.0, 128
        %1487 = vxpose.xlu0.b32.cont [11/16] 0.0, 128
        %1488 = vxpose.xlu0.b32.cont [12/16] 0.0, 128
        %1489 = vxpose.xlu0.b32.cont [13/16] 0.0, 128
        %1490 = vxpose.xlu0.b32.cont [14/16] 0.0, 128
        %1491 = vxpose.xlu0.b32.cont [15/16] 0.0, 128
        %1492 = vxpose.xlu0.b32.end [16/16] 0.0, 128
        %v1493 = vpop.trf.xlu0
        %v1494 = vpop.trf.xlu0
        %v1495 = vpop.trf.xlu0
        %v1496 = vpop.trf.xlu0
        %v1497 = vpop.trf.xlu0
        %v1498 = vpop.trf.xlu0
        %v1499 = vpop.trf.xlu0
        %v1500 = vpop.trf.xlu0
        %v1501 = vpop.trf.xlu0
        %v1502 = vpop.trf.xlu0
        %v1503 = vpop.trf.xlu0
        %v1504 = vpop.trf.xlu0
        %v1505 = vpop.trf.xlu0
        %v1506 = vpop.trf.xlu0
        %v1507 = vpop.trf.xlu0
        %v1508 = vpop.trf.xlu0
        %1509 = vxpose.xlu0.b32.start [1/16] %v1400, 128
        %1510 = vxpose.xlu0.b32.cont [2/16] 0.0, 128
        %1511 = vxpose.xlu0.b32.cont [3/16] 0.0, 128
        %1512 = vxpose.xlu0.b32.cont [4/16] 0.0, 128
        %1513 = vxpose.xlu0.b32.cont [5/16] 0.0, 128
        %1514 = vxpose.xlu0.b32.cont [6/16] 0.0, 128
        %1515 = vxpose.xlu0.b32.cont [7/16] 0.0, 128
        %1516 = vxpose.xlu0.b32.cont [8/16] 0.0, 128
        %1517 = vxpose.xlu0.b32.cont [9/16] 0.0, 128
        %1518 = vxpose.xlu0.b32.cont [10/16] 0.0, 128
        %1519 = vxpose.xlu0.b32.cont [11/16] 0.0, 128
        %1520 = vxpose.xlu0.b32.cont [12/16] 0.0, 128
        %1521 = vxpose.xlu0.b32.cont [13/16] 0.0, 128
        %1522 = vxpose.xlu0.b32.cont [14/16] 0.0, 128
        %1523 = vxpose.xlu0.b32.cont [15/16] 0.0, 128
        %1524 = vxpose.xlu0.b32.end [16/16] 0.0, 128
        %v1525 = vpop.trf.xlu0
        %v1526 = vpop.trf.xlu0
        %v1527 = vpop.trf.xlu0
        %v1528 = vpop.trf.xlu0
        %v1529 = vpop.trf.xlu0
        %v1530 = vpop.trf.xlu0
        %v1531 = vpop.trf.xlu0
        %v1532 = vpop.trf.xlu0
        %v1533 = vpop.trf.xlu0
        %v1534 = vpop.trf.xlu0
        %v1535 = vpop.trf.xlu0
        %v1536 = vpop.trf.xlu0
        %v1537 = vpop.trf.xlu0
        %v1538 = vpop.trf.xlu0
        %v1539 = vpop.trf.xlu0
        %v1540 = vpop.trf.xlu0
        %1541 = vxpose.xlu0.b32.start [1/16] %v1401, 128
        %1542 = vxpose.xlu0.b32.cont [2/16] 0.0, 128
        %1543 = vxpose.xlu0.b32.cont [3/16] 0.0, 128
        %1544 = vxpose.xlu0.b32.cont [4/16] 0.0, 128
        %1545 = vxpose.xlu0.b32.cont [5/16] 0.0, 128
        %1546 = vxpose.xlu0.b32.cont [6/16] 0.0, 128
        %1547 = vxpose.xlu0.b32.cont [7/16] 0.0, 128
        %1548 = vxpose.xlu0.b32.cont [8/16] 0.0, 128
        %1549 = vxpose.xlu0.b32.cont [9/16] 0.0, 128
        %1550 = vxpose.xlu0.b32.cont [10/16] 0.0, 128
        %1551 = vxpose.xlu0.b32.cont [11/16] 0.0, 128
        %1552 = vxpose.xlu0.b32.cont [12/16] 0.0, 128
        %1553 = vxpose.xlu0.b32.cont [13/16] 0.0, 128
        %1554 = vxpose.xlu0.b32.cont [14/16] 0.0, 128
        %1555 = vxpose.xlu0.b32.cont [15/16] 0.0, 128
        %1556 = vxpose.xlu0.b32.end [16/16] 0.0, 128
        %v1557 = vpop.trf.xlu0
        %v1558 = vpop.trf.xlu0
        %v1559 = vpop.trf.xlu0
        %v1560 = vpop.trf.xlu0
        %v1561 = vpop.trf.xlu0
        %v1562 = vpop.trf.xlu0
        %v1563 = vpop.trf.xlu0
        %v1564 = vpop.trf.xlu0
        %v1565 = vpop.trf.xlu0
        %v1566 = vpop.trf.xlu0
        %v1567 = vpop.trf.xlu0
        %v1568 = vpop.trf.xlu0
        %v1569 = vpop.trf.xlu0
        %v1570 = vpop.trf.xlu0
        %v1571 = vpop.trf.xlu0
        %v1572 = vpop.trf.xlu0
        %1573 = vxpose.xlu0.b32.start [1/16] %v1402, 128
        %1574 = vxpose.xlu0.b32.cont [2/16] 0.0, 128
        %1575 = vxpose.xlu0.b32.cont [3/16] 0.0, 128
        %1576 = vxpose.xlu0.b32.cont [4/16] 0.0, 128
        %1577 = vxpose.xlu0.b32.cont [5/16] 0.0, 128
        %1578 = vxpose.xlu0.b32.cont [6/16] 0.0, 128
        %1579 = vxpose.xlu0.b32.cont [7/16] 0.0, 128
        %1580 = vxpose.xlu0.b32.cont [8/16] 0.0, 128
        %1581 = vxpose.xlu0.b32.cont [9/16] 0.0, 128
        %1582 = vxpose.xlu0.b32.cont [10/16] 0.0, 128
        %1583 = vxpose.xlu0.b32.cont [11/16] 0.0, 128
        %1584 = vxpose.xlu0.b32.cont [12/16] 0.0, 128
        %1585 = vxpose.xlu0.b32.cont [13/16] 0.0, 128
        %1586 = vxpose.xlu0.b32.cont [14/16] 0.0, 128
        %1587 = vxpose.xlu0.b32.cont [15/16] 0.0, 128
        %1588 = vxpose.xlu0.b32.end [16/16] 0.0, 128
        %v1589 = vpop.trf.xlu0
        %v1590 = vpop.trf.xlu0
        %v1591 = vpop.trf.xlu0
        %v1592 = vpop.trf.xlu0
        %v1593 = vpop.trf.xlu0
        %v1594 = vpop.trf.xlu0
        %v1595 = vpop.trf.xlu0
        %v1596 = vpop.trf.xlu0
        %v1597 = vpop.trf.xlu0
        %v1598 = vpop.trf.xlu0
        %v1599 = vpop.trf.xlu0
        %v1600 = vpop.trf.xlu0
        %v1601 = vpop.trf.xlu0
        %v1602 = vpop.trf.xlu0
        %v1603 = vpop.trf.xlu0
        %v1604 = vpop.trf.xlu0
        %1605 = vxpose.xlu0.b32.start [1/16] %v1403, 128
        %1606 = vxpose.xlu0.b32.cont [2/16] 0.0, 128
        %1607 = vxpose.xlu0.b32.cont [3/16] 0.0, 128
        %1608 = vxpose.xlu0.b32.cont [4/16] 0.0, 128
        %1609 = vxpose.xlu0.b32.cont [5/16] 0.0, 128
        %1610 = vxpose.xlu0.b32.cont [6/16] 0.0, 128
        %1611 = vxpose.xlu0.b32.cont [7/16] 0.0, 128
        %1612 = vxpose.xlu0.b32.cont [8/16] 0.0, 128
        %1613 = vxpose.xlu0.b32.cont [9/16] 0.0, 128
        %1614 = vxpose.xlu0.b32.cont [10/16] 0.0, 128
        %1615 = vxpose.xlu0.b32.cont [11/16] 0.0, 128
        %1616 = vxpose.xlu0.b32.cont [12/16] 0.0, 128
        %1617 = vxpose.xlu0.b32.cont [13/16] 0.0, 128
        %1618 = vxpose.xlu0.b32.cont [14/16] 0.0, 128
        %1619 = vxpose.xlu0.b32.cont [15/16] 0.0, 128
        %1620 = vxpose.xlu0.b32.end [16/16] 0.0, 128
        %v1621 = vpop.trf.xlu0
        %v1622 = vpop.trf.xlu0
        %v1623 = vpop.trf.xlu0
        %v1624 = vpop.trf.xlu0
        %v1625 = vpop.trf.xlu0
        %v1626 = vpop.trf.xlu0
        %v1627 = vpop.trf.xlu0
        %v1628 = vpop.trf.xlu0
        %v1629 = vpop.trf.xlu0
        %v1630 = vpop.trf.xlu0
        %v1631 = vpop.trf.xlu0
        %v1632 = vpop.trf.xlu0
        %v1633 = vpop.trf.xlu0
        %v1634 = vpop.trf.xlu0
        %v1635 = vpop.trf.xlu0
        %v1636 = vpop.trf.xlu0
        %1637 = vxpose.xlu0.b32.start [1/16] %v1404, 128
        %1638 = vxpose.xlu0.b32.cont [2/16] 0.0, 128
        %1639 = vxpose.xlu0.b32.cont [3/16] 0.0, 128
        %1640 = vxpose.xlu0.b32.cont [4/16] 0.0, 128
        %1641 = vxpose.xlu0.b32.cont [5/16] 0.0, 128
        %1642 = vxpose.xlu0.b32.cont [6/16] 0.0, 128
        %1643 = vxpose.xlu0.b32.cont [7/16] 0.0, 128
        %1644 = vxpose.xlu0.b32.cont [8/16] 0.0, 128
        %1645 = vxpose.xlu0.b32.cont [9/16] 0.0, 128
        %1646 = vxpose.xlu0.b32.cont [10/16] 0.0, 128
        %1647 = vxpose.xlu0.b32.cont [11/16] 0.0, 128
        %1648 = vxpose.xlu0.b32.cont [12/16] 0.0, 128
        %1649 = vxpose.xlu0.b32.cont [13/16] 0.0, 128
        %1650 = vxpose.xlu0.b32.cont [14/16] 0.0, 128
        %1651 = vxpose.xlu0.b32.cont [15/16] 0.0, 128
        %1652 = vxpose.xlu0.b32.end [16/16] 0.0, 128
        %v1653 = vpop.trf.xlu0
        %v1654 = vpop.trf.xlu0
        %v1655 = vpop.trf.xlu0
        %v1656 = vpop.trf.xlu0
        %v1657 = vpop.trf.xlu0
        %v1658 = vpop.trf.xlu0
        %v1659 = vpop.trf.xlu0
        %v1660 = vpop.trf.xlu0
        %v1661 = vpop.trf.xlu0
        %v1662 = vpop.trf.xlu0
        %v1663 = vpop.trf.xlu0
        %v1664 = vpop.trf.xlu0
        %v1665 = vpop.trf.xlu0
        %v1666 = vpop.trf.xlu0
        %v1667 = vpop.trf.xlu0
        %v1668 = vpop.trf.xlu0
        %1669 = vxpose.xlu0.b32.start [1/16] %v1405, 128
        %1670 = vxpose.xlu0.b32.cont [2/16] 0.0, 128
        %1671 = vxpose.xlu0.b32.cont [3/16] 0.0, 128
        %1672 = vxpose.xlu0.b32.cont [4/16] 0.0, 128
        %1673 = vxpose.xlu0.b32.cont [5/16] 0.0, 128
        %1674 = vxpose.xlu0.b32.cont [6/16] 0.0, 128
        %1675 = vxpose.xlu0.b32.cont [7/16] 0.0, 128
        %1676 = vxpose.xlu0.b32.cont [8/16] 0.0, 128
        %1677 = vxpose.xlu0.b32.cont [9/16] 0.0, 128
        %1678 = vxpose.xlu0.b32.cont [10/16] 0.0, 128
        %1679 = vxpose.xlu0.b32.cont [11/16] 0.0, 128
        %1680 = vxpose.xlu0.b32.cont [12/16] 0.0, 128
        %1681 = vxpose.xlu0.b32.cont [13/16] 0.0, 128
        %1682 = vxpose.xlu0.b32.cont [14/16] 0.0, 128
        %1683 = vxpose.xlu0.b32.cont [15/16] 0.0, 128
        %1684 = vxpose.xlu0.b32.end [16/16] 0.0, 128
        %v1685 = vpop.trf.xlu0
        %v1686 = vpop.trf.xlu0
        %v1687 = vpop.trf.xlu0
        %v1688 = vpop.trf.xlu0
        %v1689 = vpop.trf.xlu0
        %v1690 = vpop.trf.xlu0
        %v1691 = vpop.trf.xlu0
        %v1692 = vpop.trf.xlu0
        %v1693 = vpop.trf.xlu0
        %v1694 = vpop.trf.xlu0
        %v1695 = vpop.trf.xlu0
        %v1696 = vpop.trf.xlu0
        %v1697 = vpop.trf.xlu0
        %v1698 = vpop.trf.xlu0
        %v1699 = vpop.trf.xlu0
        %v1700 = vpop.trf.xlu0
        %1701 = vxpose.xlu0.b32.start [1/16] %v1406, 128
        %1702 = vxpose.xlu0.b32.cont [2/16] 0.0, 128
        %1703 = vxpose.xlu0.b32.cont [3/16] 0.0, 128
        %1704 = vxpose.xlu0.b32.cont [4/16] 0.0, 128
        %1705 = vxpose.xlu0.b32.cont [5/16] 0.0, 128
        %1706 = vxpose.xlu0.b32.cont [6/16] 0.0, 128
        %1707 = vxpose.xlu0.b32.cont [7/16] 0.0, 128
        %1708 = vxpose.xlu0.b32.cont [8/16] 0.0, 128
        %1709 = vxpose.xlu0.b32.cont [9/16] 0.0, 128
        %1710 = vxpose.xlu0.b32.cont [10/16] 0.0, 128
        %1711 = vxpose.xlu0.b32.cont [11/16] 0.0, 128
        %1712 = vxpose.xlu0.b32.cont [12/16] 0.0, 128
        %1713 = vxpose.xlu0.b32.cont [13/16] 0.0, 128
        %1714 = vxpose.xlu0.b32.cont [14/16] 0.0, 128
        %1715 = vxpose.xlu0.b32.cont [15/16] 0.0, 128
        %1716 = vxpose.xlu0.b32.end [16/16] 0.0, 128
        %v1717 = vpop.trf.xlu0
        %v1718 = vpop.trf.xlu0
        %v1719 = vpop.trf.xlu0
        %v1720 = vpop.trf.xlu0
        %v1721 = vpop.trf.xlu0
        %v1722 = vpop.trf.xlu0
        %v1723 = vpop.trf.xlu0
        %v1724 = vpop.trf.xlu0
        %v1725 = vpop.trf.xlu0
        %v1726 = vpop.trf.xlu0
        %v1727 = vpop.trf.xlu0
        %v1728 = vpop.trf.xlu0
        %v1729 = vpop.trf.xlu0
        %v1730 = vpop.trf.xlu0
        %v1731 = vpop.trf.xlu0
        %v1732 = vpop.trf.xlu0
        %1733 = vxpose.xlu0.b32.start [1/16] %v1407, 128
        %1734 = vxpose.xlu0.b32.cont [2/16] 0.0, 128
        %1735 = vxpose.xlu0.b32.cont [3/16] 0.0, 128
        %1736 = vxpose.xlu0.b32.cont [4/16] 0.0, 128
        %1737 = vxpose.xlu0.b32.cont [5/16] 0.0, 128
        %1738 = vxpose.xlu0.b32.cont [6/16] 0.0, 128
        %1739 = vxpose.xlu0.b32.cont [7/16] 0.0, 128
        %1740 = vxpose.xlu0.b32.cont [8/16] 0.0, 128
        %1741 = vxpose.xlu0.b32.cont [9/16] 0.0, 128
        %1742 = vxpose.xlu0.b32.cont [10/16] 0.0, 128
        %1743 = vxpose.xlu0.b32.cont [11/16] 0.0, 128
        %1744 = vxpose.xlu0.b32.cont [12/16] 0.0, 128
        %1745 = vxpose.xlu0.b32.cont [13/16] 0.0, 128
        %1746 = vxpose.xlu0.b32.cont [14/16] 0.0, 128
        %1747 = vxpose.xlu0.b32.cont [15/16] 0.0, 128
        %1748 = vxpose.xlu0.b32.end [16/16] 0.0, 128
        %v1749 = vpop.trf.xlu0
        %v1750 = vpop.trf.xlu0
        %v1751 = vpop.trf.xlu0
        %v1752 = vpop.trf.xlu0
        %v1753 = vpop.trf.xlu0
        %v1754 = vpop.trf.xlu0
        %v1755 = vpop.trf.xlu0
        %v1756 = vpop.trf.xlu0
        %v1757 = vpop.trf.xlu0
        %v1758 = vpop.trf.xlu0
        %v1759 = vpop.trf.xlu0
        %v1760 = vpop.trf.xlu0
        %v1761 = vpop.trf.xlu0
        %v1762 = vpop.trf.xlu0
        %v1763 = vpop.trf.xlu0
        %v1764 = vpop.trf.xlu0
        %1765 = vxpose.xlu0.b32.start [1/16] %v1408, 128
        %1766 = vxpose.xlu0.b32.cont [2/16] 0.0, 128
        %1767 = vxpose.xlu0.b32.cont [3/16] 0.0, 128
        %1768 = vxpose.xlu0.b32.cont [4/16] 0.0, 128
        %1769 = vxpose.xlu0.b32.cont [5/16] 0.0, 128
        %1770 = vxpose.xlu0.b32.cont [6/16] 0.0, 128
        %1771 = vxpose.xlu0.b32.cont [7/16] 0.0, 128
        %1772 = vxpose.xlu0.b32.cont [8/16] 0.0, 128
        %1773 = vxpose.xlu0.b32.cont [9/16] 0.0, 128
        %1774 = vxpose.xlu0.b32.cont [10/16] 0.0, 128
        %1775 = vxpose.xlu0.b32.cont [11/16] 0.0, 128
        %1776 = vxpose.xlu0.b32.cont [12/16] 0.0, 128
        %1777 = vxpose.xlu0.b32.cont [13/16] 0.0, 128
        %1778 = vxpose.xlu0.b32.cont [14/16] 0.0, 128
        %1779 = vxpose.xlu0.b32.cont [15/16] 0.0, 128
        %1780 = vxpose.xlu0.b32.end [16/16] 0.0, 128
        %v1781 = vpop.trf.xlu0
        %v1782 = vpop.trf.xlu0
        %v1783 = vpop.trf.xlu0
        %v1784 = vpop.trf.xlu0
        %v1785 = vpop.trf.xlu0
        %v1786 = vpop.trf.xlu0
        %v1787 = vpop.trf.xlu0
        %v1788 = vpop.trf.xlu0
        %v1789 = vpop.trf.xlu0
        %v1790 = vpop.trf.xlu0
        %v1791 = vpop.trf.xlu0
        %v1792 = vpop.trf.xlu0
        %v1793 = vpop.trf.xlu0
        %v1794 = vpop.trf.xlu0
        %v1795 = vpop.trf.xlu0
        %v1796 = vpop.trf.xlu0
        %1797 = vxpose.xlu0.b32.start [1/16] %v1409, 128
        %1798 = vxpose.xlu0.b32.cont [2/16] 0.0, 128
        %1799 = vxpose.xlu0.b32.cont [3/16] 0.0, 128
        %1800 = vxpose.xlu0.b32.cont [4/16] 0.0, 128
        %1801 = vxpose.xlu0.b32.cont [5/16] 0.0, 128
        %1802 = vxpose.xlu0.b32.cont [6/16] 0.0, 128
        %1803 = vxpose.xlu0.b32.cont [7/16] 0.0, 128
        %1804 = vxpose.xlu0.b32.cont [8/16] 0.0, 128
        %1805 = vxpose.xlu0.b32.cont [9/16] 0.0, 128
        %1806 = vxpose.xlu0.b32.cont [10/16] 0.0, 128
        %1807 = vxpose.xlu0.b32.cont [11/16] 0.0, 128
        %1808 = vxpose.xlu0.b32.cont [12/16] 0.0, 128
        %1809 = vxpose.xlu0.b32.cont [13/16] 0.0, 128
        %1810 = vxpose.xlu0.b32.cont [14/16] 0.0, 128
        %1811 = vxpose.xlu0.b32.cont [15/16] 0.0, 128
        %1812 = vxpose.xlu0.b32.end [16/16] 0.0, 128
        %v1813 = vpop.trf.xlu0
        %v1814 = vpop.trf.xlu0
        %v1815 = vpop.trf.xlu0
        %v1816 = vpop.trf.xlu0
        %v1817 = vpop.trf.xlu0
        %v1818 = vpop.trf.xlu0
        %v1819 = vpop.trf.xlu0
        %v1820 = vpop.trf.xlu0
        %v1821 = vpop.trf.xlu0
        %v1822 = vpop.trf.xlu0
        %v1823 = vpop.trf.xlu0
        %v1824 = vpop.trf.xlu0
        %v1825 = vpop.trf.xlu0
        %v1826 = vpop.trf.xlu0
        %v1827 = vpop.trf.xlu0
        %v1828 = vpop.trf.xlu0
        %1829 = vxpose.xlu0.b32.start [1/16] %v1410, 128
        %1830 = vxpose.xlu0.b32.cont [2/16] 0.0, 128
        %1831 = vxpose.xlu0.b32.cont [3/16] 0.0, 128
        %1832 = vxpose.xlu0.b32.cont [4/16] 0.0, 128
        %1833 = vxpose.xlu0.b32.cont [5/16] 0.0, 128
        %1834 = vxpose.xlu0.b32.cont [6/16] 0.0, 128
        %1835 = vxpose.xlu0.b32.cont [7/16] 0.0, 128
        %1836 = vxpose.xlu0.b32.cont [8/16] 0.0, 128
        %1837 = vxpose.xlu0.b32.cont [9/16] 0.0, 128
        %1838 = vxpose.xlu0.b32.cont [10/16] 0.0, 128
        %1839 = vxpose.xlu0.b32.cont [11/16] 0.0, 128
        %1840 = vxpose.xlu0.b32.cont [12/16] 0.0, 128
        %1841 = vxpose.xlu0.b32.cont [13/16] 0.0, 128
        %1842 = vxpose.xlu0.b32.cont [14/16] 0.0, 128
        %1843 = vxpose.xlu0.b32.cont [15/16] 0.0, 128
        %1844 = vxpose.xlu0.b32.end [16/16] 0.0, 128
        %v1845 = vpop.trf.xlu0
        %v1846 = vpop.trf.xlu0
        %v1847 = vpop.trf.xlu0
        %v1848 = vpop.trf.xlu0
        %v1849 = vpop.trf.xlu0
        %v1850 = vpop.trf.xlu0
        %v1851 = vpop.trf.xlu0
        %v1852 = vpop.trf.xlu0
        %v1853 = vpop.trf.xlu0
        %v1854 = vpop.trf.xlu0
        %v1855 = vpop.trf.xlu0
        %v1856 = vpop.trf.xlu0
        %v1857 = vpop.trf.xlu0
        %v1858 = vpop.trf.xlu0
        %v1859 = vpop.trf.xlu0
        %v1860 = vpop.trf.xlu0
        %1861 = vxpose.xlu0.b32.start [1/16] %v1411, 128
        %1862 = vxpose.xlu0.b32.cont [2/16] 0.0, 128
        %1863 = vxpose.xlu0.b32.cont [3/16] 0.0, 128
        %1864 = vxpose.xlu0.b32.cont [4/16] 0.0, 128
        %1865 = vxpose.xlu0.b32.cont [5/16] 0.0, 128
        %1866 = vxpose.xlu0.b32.cont [6/16] 0.0, 128
        %1867 = vxpose.xlu0.b32.cont [7/16] 0.0, 128
        %1868 = vxpose.xlu0.b32.cont [8/16] 0.0, 128
        %1869 = vxpose.xlu0.b32.cont [9/16] 0.0, 128
        %1870 = vxpose.xlu0.b32.cont [10/16] 0.0, 128
        %1871 = vxpose.xlu0.b32.cont [11/16] 0.0, 128
        %1872 = vxpose.xlu0.b32.cont [12/16] 0.0, 128
        %1873 = vxpose.xlu0.b32.cont [13/16] 0.0, 128
        %1874 = vxpose.xlu0.b32.cont [14/16] 0.0, 128
        %1875 = vxpose.xlu0.b32.cont [15/16] 0.0, 128
        %1876 = vxpose.xlu0.b32.end [16/16] 0.0, 128
        %v1877 = vpop.trf.xlu0
        %v1878 = vpop.trf.xlu0
        %v1879 = vpop.trf.xlu0
        %v1880 = vpop.trf.xlu0
        %v1881 = vpop.trf.xlu0
        %v1882 = vpop.trf.xlu0
        %v1883 = vpop.trf.xlu0
        %v1884 = vpop.trf.xlu0
        %v1885 = vpop.trf.xlu0
        %v1886 = vpop.trf.xlu0
        %v1887 = vpop.trf.xlu0
        %v1888 = vpop.trf.xlu0
        %v1889 = vpop.trf.xlu0
        %v1890 = vpop.trf.xlu0
        %v1891 = vpop.trf.xlu0
        %v1892 = vpop.trf.xlu0
        %1893 = vxpose.xlu0.b32.start [1/16] %v1412, 128
        %1894 = vxpose.xlu0.b32.cont [2/16] 0.0, 128
        %1895 = vxpose.xlu0.b32.cont [3/16] 0.0, 128
        %1896 = vxpose.xlu0.b32.cont [4/16] 0.0, 128
        %1897 = vxpose.xlu0.b32.cont [5/16] 0.0, 128
        %1898 = vxpose.xlu0.b32.cont [6/16] 0.0, 128
        %1899 = vxpose.xlu0.b32.cont [7/16] 0.0, 128
        %1900 = vxpose.xlu0.b32.cont [8/16] 0.0, 128
        %1901 = vxpose.xlu0.b32.cont [9/16] 0.0, 128
        %1902 = vxpose.xlu0.b32.cont [10/16] 0.0, 128
        %1903 = vxpose.xlu0.b32.cont [11/16] 0.0, 128
        %1904 = vxpose.xlu0.b32.cont [12/16] 0.0, 128
        %1905 = vxpose.xlu0.b32.cont [13/16] 0.0, 128
        %1906 = vxpose.xlu0.b32.cont [14/16] 0.0, 128
        %1907 = vxpose.xlu0.b32.cont [15/16] 0.0, 128
        %1908 = vxpose.xlu0.b32.end [16/16] 0.0, 128
        %v1909 = vpop.trf.xlu0
        %v1910 = vpop.trf.xlu0
        %v1911 = vpop.trf.xlu0
        %v1912 = vpop.trf.xlu0
        %v1913 = vpop.trf.xlu0
        %v1914 = vpop.trf.xlu0
        %v1915 = vpop.trf.xlu0
        %v1916 = vpop.trf.xlu0
        %v1917 = vpop.trf.xlu0
        %v1918 = vpop.trf.xlu0
        %v1919 = vpop.trf.xlu0
        %v1920 = vpop.trf.xlu0
        %v1921 = vpop.trf.xlu0
        %v1922 = vpop.trf.xlu0
        %v1923 = vpop.trf.xlu0
        %v1924 = vpop.trf.xlu0
        %v1941 = vcombine.low %v1429, %v1461
        %v1942 = vcombine.low %v1493, %v1525
        %v1943 = vcombine.low %v1557, %v1589
        %v1944 = vcombine.low %v1621, %v1653
        %v1945 = vcombine.low %v1685, %v1717
        %v1946 = vcombine.low %v1749, %v1781
        %v1947 = vcombine.low %v1813, %v1845
        %v1948 = vcombine.low %v1877, %v1909
        %1957 = vxpose.xlu0.b32.start [1/16] %v1941, 128
        %1958 = vxpose.xlu0.b32.cont [2/16] %v1942, 128
        %1959 = vxpose.xlu0.b32.cont [3/16] %v1943, 128
        %1960 = vxpose.xlu0.b32.cont [4/16] %v1944, 128
        %1961 = vxpose.xlu0.b32.cont [5/16] %v1945, 128
        %1962 = vxpose.xlu0.b32.cont [6/16] %v1946, 128
        %1963 = vxpose.xlu0.b32.cont [7/16] %v1947, 128
        %1964 = vxpose.xlu0.b32.cont [8/16] %v1948, 128
        %1965 = vxpose.xlu0.b32.cont [9/16] 0.0, 128
        %1966 = vxpose.xlu0.b32.cont [10/16] 0.0, 128
        %1967 = vxpose.xlu0.b32.cont [11/16] 0.0, 128
        %1968 = vxpose.xlu0.b32.cont [12/16] 0.0, 128
        %1969 = vxpose.xlu0.b32.cont [13/16] 0.0, 128
        %1970 = vxpose.xlu0.b32.cont [14/16] 0.0, 128
        %1971 = vxpose.xlu0.b32.cont [15/16] 0.0, 128
        %1972 = vxpose.xlu0.b32.end [16/16] 0.0, 128
        %v1973 = vpop.trf.xlu0
        %v1974 = vpop.trf.xlu0
        %v1975 = vpop.trf.xlu0
        %v1976 = vpop.trf.xlu0
        %v1977 = vpop.trf.xlu0
        %v1978 = vpop.trf.xlu0
        %v1979 = vpop.trf.xlu0
        %v1980 = vpop.trf.xlu0
        %v1981 = vpop.trf.xlu0
        %v1982 = vpop.trf.xlu0
        %v1983 = vpop.trf.xlu0
        %v1984 = vpop.trf.xlu0
        %v1985 = vpop.trf.xlu0
        %v1986 = vpop.trf.xlu0
        %v1987 = vpop.trf.xlu0
        %v1988 = vpop.trf.xlu0
        %s1989 = scalar_lea.vmem %s185, 48 [#allocation2]
        %v1990 = vld [vmem:[%s1989] sm:$0xf]
        %v1991 = vld [vmem:[%s1989 + $0x4] sm:$0xf]
        %v1992 = vld [vmem:[%s1989 + $0x8] sm:$0xf]
        %v1993 = vld [vmem:[%s1989 + $0xc] sm:$0xf]
        %v1994 = vld [vmem:[%s1989 + $0x40] sm:$0xf]
        %v1995 = vld [vmem:[%s1989 + $0x44] sm:$0xf]
        %v1996 = vld [vmem:[%s1989 + $0x48] sm:$0xf]
        %v1997 = vld [vmem:[%s1989 + $0x4c] sm:$0xf]
        %v1998 = vld [vmem:[%s1989 + $0x80] sm:$0xf]
        %v1999 = vld [vmem:[%s1989 + $0x84] sm:$0xf]
        %v2000 = vld [vmem:[%s1989 + $0x88] sm:$0xf]
        %v2001 = vld [vmem:[%s1989 + $0x8c] sm:$0xf]
        %v2002 = vld [vmem:[%s1989 + $0xc0] sm:$0xf]
        %v2003 = vld [vmem:[%s1989 + $0xc4] sm:$0xf]
        %v2004 = vld [vmem:[%s1989 + $0xc8] sm:$0xf]
        %v2005 = vld [vmem:[%s1989 + $0xcc] sm:$0xf]
        %2006 = vxpose.xlu0.b32.start [1/16] %v1990, 128
        %2007 = vxpose.xlu0.b32.cont [2/16] 0.0, 128
        %2008 = vxpose.xlu0.b32.cont [3/16] 0.0, 128
        %2009 = vxpose.xlu0.b32.cont [4/16] 0.0, 128
        %2010 = vxpose.xlu0.b32.cont [5/16] 0.0, 128
        %2011 = vxpose.xlu0.b32.cont [6/16] 0.0, 128
        %2012 = vxpose.xlu0.b32.cont [7/16] 0.0, 128
        %2013 = vxpose.xlu0.b32.cont [8/16] 0.0, 128
        %2014 = vxpose.xlu0.b32.cont [9/16] 0.0, 128
        %2015 = vxpose.xlu0.b32.cont [10/16] 0.0, 128
        %2016 = vxpose.xlu0.b32.cont [11/16] 0.0, 128
        %2017 = vxpose.xlu0.b32.cont [12/16] 0.0, 128
        %2018 = vxpose.xlu0.b32.cont [13/16] 0.0, 128
        %2019 = vxpose.xlu0.b32.cont [14/16] 0.0, 128
        %2020 = vxpose.xlu0.b32.cont [15/16] 0.0, 128
        %2021 = vxpose.xlu0.b32.end [16/16] 0.0, 128
        %v2022 = vpop.trf.xlu0
        %v2023 = vpop.trf.xlu0
        %v2024 = vpop.trf.xlu0
        %v2025 = vpop.trf.xlu0
        %v2026 = vpop.trf.xlu0
        %v2027 = vpop.trf.xlu0
        %v2028 = vpop.trf.xlu0
        %v2029 = vpop.trf.xlu0
        %v2030 = vpop.trf.xlu0
        %v2031 = vpop.trf.xlu0
        %v2032 = vpop.trf.xlu0
        %v2033 = vpop.trf.xlu0
        %v2034 = vpop.trf.xlu0
        %v2035 = vpop.trf.xlu0
        %v2036 = vpop.trf.xlu0
        %v2037 = vpop.trf.xlu0
        %2038 = vxpose.xlu0.b32.start [1/16] %v1991, 128
        %2039 = vxpose.xlu0.b32.cont [2/16] 0.0, 128
        %2040 = vxpose.xlu0.b32.cont [3/16] 0.0, 128
        %2041 = vxpose.xlu0.b32.cont [4/16] 0.0, 128
        %2042 = vxpose.xlu0.b32.cont [5/16] 0.0, 128
        %2043 = vxpose.xlu0.b32.cont [6/16] 0.0, 128
        %2044 = vxpose.xlu0.b32.cont [7/16] 0.0, 128
        %2045 = vxpose.xlu0.b32.cont [8/16] 0.0, 128
        %2046 = vxpose.xlu0.b32.cont [9/16] 0.0, 128
        %2047 = vxpose.xlu0.b32.cont [10/16] 0.0, 128
        %2048 = vxpose.xlu0.b32.cont [11/16] 0.0, 128
        %2049 = vxpose.xlu0.b32.cont [12/16] 0.0, 128
        %2050 = vxpose.xlu0.b32.cont [13/16] 0.0, 128
        %2051 = vxpose.xlu0.b32.cont [14/16] 0.0, 128
        %2052 = vxpose.xlu0.b32.cont [15/16] 0.0, 128
        %2053 = vxpose.xlu0.b32.end [16/16] 0.0, 128
        %v2054 = vpop.trf.xlu0
        %v2055 = vpop.trf.xlu0
        %v2056 = vpop.trf.xlu0
        %v2057 = vpop.trf.xlu0
        %v2058 = vpop.trf.xlu0
        %v2059 = vpop.trf.xlu0
        %v2060 = vpop.trf.xlu0
        %v2061 = vpop.trf.xlu0
        %v2062 = vpop.trf.xlu0
        %v2063 = vpop.trf.xlu0
        %v2064 = vpop.trf.xlu0
        %v2065 = vpop.trf.xlu0
        %v2066 = vpop.trf.xlu0
        %v2067 = vpop.trf.xlu0
        %v2068 = vpop.trf.xlu0
        %v2069 = vpop.trf.xlu0
        %2070 = vxpose.xlu0.b32.start [1/16] %v1992, 128
        %2071 = vxpose.xlu0.b32.cont [2/16] 0.0, 128
        %2072 = vxpose.xlu0.b32.cont [3/16] 0.0, 128
        %2073 = vxpose.xlu0.b32.cont [4/16] 0.0, 128
        %2074 = vxpose.xlu0.b32.cont [5/16] 0.0, 128
        %2075 = vxpose.xlu0.b32.cont [6/16] 0.0, 128
        %2076 = vxpose.xlu0.b32.cont [7/16] 0.0, 128
        %2077 = vxpose.xlu0.b32.cont [8/16] 0.0, 128
        %2078 = vxpose.xlu0.b32.cont [9/16] 0.0, 128
        %2079 = vxpose.xlu0.b32.cont [10/16] 0.0, 128
        %2080 = vxpose.xlu0.b32.cont [11/16] 0.0, 128
        %2081 = vxpose.xlu0.b32.cont [12/16] 0.0, 128
        %2082 = vxpose.xlu0.b32.cont [13/16] 0.0, 128
        %2083 = vxpose.xlu0.b32.cont [14/16] 0.0, 128
        %2084 = vxpose.xlu0.b32.cont [15/16] 0.0, 128
        %2085 = vxpose.xlu0.b32.end [16/16] 0.0, 128
        %v2086 = vpop.trf.xlu0
        %v2087 = vpop.trf.xlu0
        %v2088 = vpop.trf.xlu0
        %v2089 = vpop.trf.xlu0
        %v2090 = vpop.trf.xlu0
        %v2091 = vpop.trf.xlu0
        %v2092 = vpop.trf.xlu0
        %v2093 = vpop.trf.xlu0
        %v2094 = vpop.trf.xlu0
        %v2095 = vpop.trf.xlu0
        %v2096 = vpop.trf.xlu0
        %v2097 = vpop.trf.xlu0
        %v2098 = vpop.trf.xlu0
        %v2099 = vpop.trf.xlu0
        %v2100 = vpop.trf.xlu0
        %v2101 = vpop.trf.xlu0
        %2102 = vxpose.xlu0.b32.start [1/16] %v1993, 128
        %2103 = vxpose.xlu0.b32.cont [2/16] 0.0, 128
        %2104 = vxpose.xlu0.b32.cont [3/16] 0.0, 128
        %2105 = vxpose.xlu0.b32.cont [4/16] 0.0, 128
        %2106 = vxpose.xlu0.b32.cont [5/16] 0.0, 128
        %2107 = vxpose.xlu0.b32.cont [6/16] 0.0, 128
        %2108 = vxpose.xlu0.b32.cont [7/16] 0.0, 128
        %2109 = vxpose.xlu0.b32.cont [8/16] 0.0, 128
        %2110 = vxpose.xlu0.b32.cont [9/16] 0.0, 128
        %2111 = vxpose.xlu0.b32.cont [10/16] 0.0, 128
        %2112 = vxpose.xlu0.b32.cont [11/16] 0.0, 128
        %2113 = vxpose.xlu0.b32.cont [12/16] 0.0, 128
        %2114 = vxpose.xlu0.b32.cont [13/16] 0.0, 128
        %2115 = vxpose.xlu0.b32.cont [14/16] 0.0, 128
        %2116 = vxpose.xlu0.b32.cont [15/16] 0.0, 128
        %2117 = vxpose.xlu0.b32.end [16/16] 0.0, 128
        %v2118 = vpop.trf.xlu0
        %v2119 = vpop.trf.xlu0
        %v2120 = vpop.trf.xlu0
        %v2121 = vpop.trf.xlu0
        %v2122 = vpop.trf.xlu0
        %v2123 = vpop.trf.xlu0
        %v2124 = vpop.trf.xlu0
        %v2125 = vpop.trf.xlu0
        %v2126 = vpop.trf.xlu0
        %v2127 = vpop.trf.xlu0
        %v2128 = vpop.trf.xlu0
        %v2129 = vpop.trf.xlu0
        %v2130 = vpop.trf.xlu0
        %v2131 = vpop.trf.xlu0
        %v2132 = vpop.trf.xlu0
        %v2133 = vpop.trf.xlu0
        %2134 = vxpose.xlu0.b32.start [1/16] %v1994, 128
        %2135 = vxpose.xlu0.b32.cont [2/16] 0.0, 128
        %2136 = vxpose.xlu0.b32.cont [3/16] 0.0, 128
        %2137 = vxpose.xlu0.b32.cont [4/16] 0.0, 128
        %2138 = vxpose.xlu0.b32.cont [5/16] 0.0, 128
        %2139 = vxpose.xlu0.b32.cont [6/16] 0.0, 128
        %2140 = vxpose.xlu0.b32.cont [7/16] 0.0, 128
        %2141 = vxpose.xlu0.b32.cont [8/16] 0.0, 128
        %2142 = vxpose.xlu0.b32.cont [9/16] 0.0, 128
        %2143 = vxpose.xlu0.b32.cont [10/16] 0.0, 128
        %2144 = vxpose.xlu0.b32.cont [11/16] 0.0, 128
        %2145 = vxpose.xlu0.b32.cont [12/16] 0.0, 128
        %2146 = vxpose.xlu0.b32.cont [13/16] 0.0, 128
        %2147 = vxpose.xlu0.b32.cont [14/16] 0.0, 128
        %2148 = vxpose.xlu0.b32.cont [15/16] 0.0, 128
        %2149 = vxpose.xlu0.b32.end [16/16] 0.0, 128
        %v2150 = vpop.trf.xlu0
        %v2151 = vpop.trf.xlu0
        %v2152 = vpop.trf.xlu0
        %v2153 = vpop.trf.xlu0
        %v2154 = vpop.trf.xlu0
        %v2155 = vpop.trf.xlu0
        %v2156 = vpop.trf.xlu0
        %v2157 = vpop.trf.xlu0
        %v2158 = vpop.trf.xlu0
        %v2159 = vpop.trf.xlu0
        %v2160 = vpop.trf.xlu0
        %v2161 = vpop.trf.xlu0
        %v2162 = vpop.trf.xlu0
        %v2163 = vpop.trf.xlu0
        %v2164 = vpop.trf.xlu0
        %v2165 = vpop.trf.xlu0
        %2166 = vxpose.xlu0.b32.start [1/16] %v1995, 128
        %2167 = vxpose.xlu0.b32.cont [2/16] 0.0, 128
        %2168 = vxpose.xlu0.b32.cont [3/16] 0.0, 128
        %2169 = vxpose.xlu0.b32.cont [4/16] 0.0, 128
        %2170 = vxpose.xlu0.b32.cont [5/16] 0.0, 128
        %2171 = vxpose.xlu0.b32.cont [6/16] 0.0, 128
        %2172 = vxpose.xlu0.b32.cont [7/16] 0.0, 128
        %2173 = vxpose.xlu0.b32.cont [8/16] 0.0, 128
        %2174 = vxpose.xlu0.b32.cont [9/16] 0.0, 128
        %2175 = vxpose.xlu0.b32.cont [10/16] 0.0, 128
        %2176 = vxpose.xlu0.b32.cont [11/16] 0.0, 128
        %2177 = vxpose.xlu0.b32.cont [12/16] 0.0, 128
        %2178 = vxpose.xlu0.b32.cont [13/16] 0.0, 128
        %2179 = vxpose.xlu0.b32.cont [14/16] 0.0, 128
        %2180 = vxpose.xlu0.b32.cont [15/16] 0.0, 128
        %2181 = vxpose.xlu0.b32.end [16/16] 0.0, 128
        %v2182 = vpop.trf.xlu0
        %v2183 = vpop.trf.xlu0
        %v2184 = vpop.trf.xlu0
        %v2185 = vpop.trf.xlu0
        %v2186 = vpop.trf.xlu0
        %v2187 = vpop.trf.xlu0
        %v2188 = vpop.trf.xlu0
        %v2189 = vpop.trf.xlu0
        %v2190 = vpop.trf.xlu0
        %v2191 = vpop.trf.xlu0
        %v2192 = vpop.trf.xlu0
        %v2193 = vpop.trf.xlu0
        %v2194 = vpop.trf.xlu0
        %v2195 = vpop.trf.xlu0
        %v2196 = vpop.trf.xlu0
        %v2197 = vpop.trf.xlu0
        %2198 = vxpose.xlu0.b32.start [1/16] %v1996, 128
        %2199 = vxpose.xlu0.b32.cont [2/16] 0.0, 128
        %2200 = vxpose.xlu0.b32.cont [3/16] 0.0, 128
        %2201 = vxpose.xlu0.b32.cont [4/16] 0.0, 128
        %2202 = vxpose.xlu0.b32.cont [5/16] 0.0, 128
        %2203 = vxpose.xlu0.b32.cont [6/16] 0.0, 128
        %2204 = vxpose.xlu0.b32.cont [7/16] 0.0, 128
        %2205 = vxpose.xlu0.b32.cont [8/16] 0.0, 128
        %2206 = vxpose.xlu0.b32.cont [9/16] 0.0, 128
        %2207 = vxpose.xlu0.b32.cont [10/16] 0.0, 128
        %2208 = vxpose.xlu0.b32.cont [11/16] 0.0, 128
        %2209 = vxpose.xlu0.b32.cont [12/16] 0.0, 128
        %2210 = vxpose.xlu0.b32.cont [13/16] 0.0, 128
        %2211 = vxpose.xlu0.b32.cont [14/16] 0.0, 128
        %2212 = vxpose.xlu0.b32.cont [15/16] 0.0, 128
        %2213 = vxpose.xlu0.b32.end [16/16] 0.0, 128
        %v2214 = vpop.trf.xlu0
        %v2215 = vpop.trf.xlu0
        %v2216 = vpop.trf.xlu0
        %v2217 = vpop.trf.xlu0
        %v2218 = vpop.trf.xlu0
        %v2219 = vpop.trf.xlu0
        %v2220 = vpop.trf.xlu0
        %v2221 = vpop.trf.xlu0
        %v2222 = vpop.trf.xlu0
        %v2223 = vpop.trf.xlu0
        %v2224 = vpop.trf.xlu0
        %v2225 = vpop.trf.xlu0
        %v2226 = vpop.trf.xlu0
        %v2227 = vpop.trf.xlu0
        %v2228 = vpop.trf.xlu0
        %v2229 = vpop.trf.xlu0
        %2230 = vxpose.xlu0.b32.start [1/16] %v1997, 128
        %2231 = vxpose.xlu0.b32.cont [2/16] 0.0, 128
        %2232 = vxpose.xlu0.b32.cont [3/16] 0.0, 128
        %2233 = vxpose.xlu0.b32.cont [4/16] 0.0, 128
        %2234 = vxpose.xlu0.b32.cont [5/16] 0.0, 128
        %2235 = vxpose.xlu0.b32.cont [6/16] 0.0, 128
        %2236 = vxpose.xlu0.b32.cont [7/16] 0.0, 128
        %2237 = vxpose.xlu0.b32.cont [8/16] 0.0, 128
        %2238 = vxpose.xlu0.b32.cont [9/16] 0.0, 128
        %2239 = vxpose.xlu0.b32.cont [10/16] 0.0, 128
        %2240 = vxpose.xlu0.b32.cont [11/16] 0.0, 128
        %2241 = vxpose.xlu0.b32.cont [12/16] 0.0, 128
        %2242 = vxpose.xlu0.b32.cont [13/16] 0.0, 128
        %2243 = vxpose.xlu0.b32.cont [14/16] 0.0, 128
        %2244 = vxpose.xlu0.b32.cont [15/16] 0.0, 128
        %2245 = vxpose.xlu0.b32.end [16/16] 0.0, 128
        %v2246 = vpop.trf.xlu0
        %v2247 = vpop.trf.xlu0
        %v2248 = vpop.trf.xlu0
        %v2249 = vpop.trf.xlu0
        %v2250 = vpop.trf.xlu0
        %v2251 = vpop.trf.xlu0
        %v2252 = vpop.trf.xlu0
        %v2253 = vpop.trf.xlu0
        %v2254 = vpop.trf.xlu0
        %v2255 = vpop.trf.xlu0
        %v2256 = vpop.trf.xlu0
        %v2257 = vpop.trf.xlu0
        %v2258 = vpop.trf.xlu0
        %v2259 = vpop.trf.xlu0
        %v2260 = vpop.trf.xlu0
        %v2261 = vpop.trf.xlu0
        %2262 = vxpose.xlu0.b32.start [1/16] %v1998, 128
        %2263 = vxpose.xlu0.b32.cont [2/16] 0.0, 128
        %2264 = vxpose.xlu0.b32.cont [3/16] 0.0, 128
        %2265 = vxpose.xlu0.b32.cont [4/16] 0.0, 128
        %2266 = vxpose.xlu0.b32.cont [5/16] 0.0, 128
        %2267 = vxpose.xlu0.b32.cont [6/16] 0.0, 128
        %2268 = vxpose.xlu0.b32.cont [7/16] 0.0, 128
        %2269 = vxpose.xlu0.b32.cont [8/16] 0.0, 128
        %2270 = vxpose.xlu0.b32.cont [9/16] 0.0, 128
        %2271 = vxpose.xlu0.b32.cont [10/16] 0.0, 128
        %2272 = vxpose.xlu0.b32.cont [11/16] 0.0, 128
        %2273 = vxpose.xlu0.b32.cont [12/16] 0.0, 128
        %2274 = vxpose.xlu0.b32.cont [13/16] 0.0, 128
        %2275 = vxpose.xlu0.b32.cont [14/16] 0.0, 128
        %2276 = vxpose.xlu0.b32.cont [15/16] 0.0, 128
        %2277 = vxpose.xlu0.b32.end [16/16] 0.0, 128
        %v2278 = vpop.trf.xlu0
        %v2279 = vpop.trf.xlu0
        %v2280 = vpop.trf.xlu0
        %v2281 = vpop.trf.xlu0
        %v2282 = vpop.trf.xlu0
        %v2283 = vpop.trf.xlu0
        %v2284 = vpop.trf.xlu0
        %v2285 = vpop.trf.xlu0
        %v2286 = vpop.trf.xlu0
        %v2287 = vpop.trf.xlu0
        %v2288 = vpop.trf.xlu0
        %v2289 = vpop.trf.xlu0
        %v2290 = vpop.trf.xlu0
        %v2291 = vpop.trf.xlu0
        %v2292 = vpop.trf.xlu0
        %v2293 = vpop.trf.xlu0
        %2294 = vxpose.xlu0.b32.start [1/16] %v1999, 128
        %2295 = vxpose.xlu0.b32.cont [2/16] 0.0, 128
        %2296 = vxpose.xlu0.b32.cont [3/16] 0.0, 128
        %2297 = vxpose.xlu0.b32.cont [4/16] 0.0, 128
        %2298 = vxpose.xlu0.b32.cont [5/16] 0.0, 128
        %2299 = vxpose.xlu0.b32.cont [6/16] 0.0, 128
        %2300 = vxpose.xlu0.b32.cont [7/16] 0.0, 128
        %2301 = vxpose.xlu0.b32.cont [8/16] 0.0, 128
        %2302 = vxpose.xlu0.b32.cont [9/16] 0.0, 128
        %2303 = vxpose.xlu0.b32.cont [10/16] 0.0, 128
        %2304 = vxpose.xlu0.b32.cont [11/16] 0.0, 128
        %2305 = vxpose.xlu0.b32.cont [12/16] 0.0, 128
        %2306 = vxpose.xlu0.b32.cont [13/16] 0.0, 128
        %2307 = vxpose.xlu0.b32.cont [14/16] 0.0, 128
        %2308 = vxpose.xlu0.b32.cont [15/16] 0.0, 128
        %2309 = vxpose.xlu0.b32.end [16/16] 0.0, 128
        %v2310 = vpop.trf.xlu0
        %v2311 = vpop.trf.xlu0
        %v2312 = vpop.trf.xlu0
        %v2313 = vpop.trf.xlu0
        %v2314 = vpop.trf.xlu0
        %v2315 = vpop.trf.xlu0
        %v2316 = vpop.trf.xlu0
        %v2317 = vpop.trf.xlu0
        %v2318 = vpop.trf.xlu0
        %v2319 = vpop.trf.xlu0
        %v2320 = vpop.trf.xlu0
        %v2321 = vpop.trf.xlu0
        %v2322 = vpop.trf.xlu0
        %v2323 = vpop.trf.xlu0
        %v2324 = vpop.trf.xlu0
        %v2325 = vpop.trf.xlu0
        %2326 = vxpose.xlu0.b32.start [1/16] %v2000, 128
        %2327 = vxpose.xlu0.b32.cont [2/16] 0.0, 128
        %2328 = vxpose.xlu0.b32.cont [3/16] 0.0, 128
        %2329 = vxpose.xlu0.b32.cont [4/16] 0.0, 128
        %2330 = vxpose.xlu0.b32.cont [5/16] 0.0, 128
        %2331 = vxpose.xlu0.b32.cont [6/16] 0.0, 128
        %2332 = vxpose.xlu0.b32.cont [7/16] 0.0, 128
        %2333 = vxpose.xlu0.b32.cont [8/16] 0.0, 128
        %2334 = vxpose.xlu0.b32.cont [9/16] 0.0, 128
        %2335 = vxpose.xlu0.b32.cont [10/16] 0.0, 128
        %2336 = vxpose.xlu0.b32.cont [11/16] 0.0, 128
        %2337 = vxpose.xlu0.b32.cont [12/16] 0.0, 128
        %2338 = vxpose.xlu0.b32.cont [13/16] 0.0, 128
        %2339 = vxpose.xlu0.b32.cont [14/16] 0.0, 128
        %2340 = vxpose.xlu0.b32.cont [15/16] 0.0, 128
        %2341 = vxpose.xlu0.b32.end [16/16] 0.0, 128
        %v2342 = vpop.trf.xlu0
        %v2343 = vpop.trf.xlu0
        %v2344 = vpop.trf.xlu0
        %v2345 = vpop.trf.xlu0
        %v2346 = vpop.trf.xlu0
        %v2347 = vpop.trf.xlu0
        %v2348 = vpop.trf.xlu0
        %v2349 = vpop.trf.xlu0
        %v2350 = vpop.trf.xlu0
        %v2351 = vpop.trf.xlu0
        %v2352 = vpop.trf.xlu0
        %v2353 = vpop.trf.xlu0
        %v2354 = vpop.trf.xlu0
        %v2355 = vpop.trf.xlu0
        %v2356 = vpop.trf.xlu0
        %v2357 = vpop.trf.xlu0
        %2358 = vxpose.xlu0.b32.start [1/16] %v2001, 128
        %2359 = vxpose.xlu0.b32.cont [2/16] 0.0, 128
        %2360 = vxpose.xlu0.b32.cont [3/16] 0.0, 128
        %2361 = vxpose.xlu0.b32.cont [4/16] 0.0, 128
        %2362 = vxpose.xlu0.b32.cont [5/16] 0.0, 128
        %2363 = vxpose.xlu0.b32.cont [6/16] 0.0, 128
        %2364 = vxpose.xlu0.b32.cont [7/16] 0.0, 128
        %2365 = vxpose.xlu0.b32.cont [8/16] 0.0, 128
        %2366 = vxpose.xlu0.b32.cont [9/16] 0.0, 128
        %2367 = vxpose.xlu0.b32.cont [10/16] 0.0, 128
        %2368 = vxpose.xlu0.b32.cont [11/16] 0.0, 128
        %2369 = vxpose.xlu0.b32.cont [12/16] 0.0, 128
        %2370 = vxpose.xlu0.b32.cont [13/16] 0.0, 128
        %2371 = vxpose.xlu0.b32.cont [14/16] 0.0, 128
        %2372 = vxpose.xlu0.b32.cont [15/16] 0.0, 128
        %2373 = vxpose.xlu0.b32.end [16/16] 0.0, 128
        %v2374 = vpop.trf.xlu0
        %v2375 = vpop.trf.xlu0
        %v2376 = vpop.trf.xlu0
        %v2377 = vpop.trf.xlu0
        %v2378 = vpop.trf.xlu0
        %v2379 = vpop.trf.xlu0
        %v2380 = vpop.trf.xlu0
        %v2381 = vpop.trf.xlu0
        %v2382 = vpop.trf.xlu0
        %v2383 = vpop.trf.xlu0
        %v2384 = vpop.trf.xlu0
        %v2385 = vpop.trf.xlu0
        %v2386 = vpop.trf.xlu0
        %v2387 = vpop.trf.xlu0
        %v2388 = vpop.trf.xlu0
        %v2389 = vpop.trf.xlu0
        %2390 = vxpose.xlu0.b32.start [1/16] %v2002, 128
        %2391 = vxpose.xlu0.b32.cont [2/16] 0.0, 128
        %2392 = vxpose.xlu0.b32.cont [3/16] 0.0, 128
        %2393 = vxpose.xlu0.b32.cont [4/16] 0.0, 128
        %2394 = vxpose.xlu0.b32.cont [5/16] 0.0, 128
        %2395 = vxpose.xlu0.b32.cont [6/16] 0.0, 128
        %2396 = vxpose.xlu0.b32.cont [7/16] 0.0, 128
        %2397 = vxpose.xlu0.b32.cont [8/16] 0.0, 128
        %2398 = vxpose.xlu0.b32.cont [9/16] 0.0, 128
        %2399 = vxpose.xlu0.b32.cont [10/16] 0.0, 128
        %2400 = vxpose.xlu0.b32.cont [11/16] 0.0, 128
        %2401 = vxpose.xlu0.b32.cont [12/16] 0.0, 128
        %2402 = vxpose.xlu0.b32.cont [13/16] 0.0, 128
        %2403 = vxpose.xlu0.b32.cont [14/16] 0.0, 128
        %2404 = vxpose.xlu0.b32.cont [15/16] 0.0, 128
        %2405 = vxpose.xlu0.b32.end [16/16] 0.0, 128
        %v2406 = vpop.trf.xlu0
        %v2407 = vpop.trf.xlu0
        %v2408 = vpop.trf.xlu0
        %v2409 = vpop.trf.xlu0
        %v2410 = vpop.trf.xlu0
        %v2411 = vpop.trf.xlu0
        %v2412 = vpop.trf.xlu0
        %v2413 = vpop.trf.xlu0
        %v2414 = vpop.trf.xlu0
        %v2415 = vpop.trf.xlu0
        %v2416 = vpop.trf.xlu0
        %v2417 = vpop.trf.xlu0
        %v2418 = vpop.trf.xlu0
        %v2419 = vpop.trf.xlu0
        %v2420 = vpop.trf.xlu0
        %v2421 = vpop.trf.xlu0
        %2422 = vxpose.xlu0.b32.start [1/16] %v2003, 128
        %2423 = vxpose.xlu0.b32.cont [2/16] 0.0, 128
        %2424 = vxpose.xlu0.b32.cont [3/16] 0.0, 128
        %2425 = vxpose.xlu0.b32.cont [4/16] 0.0, 128
        %2426 = vxpose.xlu0.b32.cont [5/16] 0.0, 128
        %2427 = vxpose.xlu0.b32.cont [6/16] 0.0, 128
        %2428 = vxpose.xlu0.b32.cont [7/16] 0.0, 128
        %2429 = vxpose.xlu0.b32.cont [8/16] 0.0, 128
        %2430 = vxpose.xlu0.b32.cont [9/16] 0.0, 128
        %2431 = vxpose.xlu0.b32.cont [10/16] 0.0, 128
        %2432 = vxpose.xlu0.b32.cont [11/16] 0.0, 128
        %2433 = vxpose.xlu0.b32.cont [12/16] 0.0, 128
        %2434 = vxpose.xlu0.b32.cont [13/16] 0.0, 128
        %2435 = vxpose.xlu0.b32.cont [14/16] 0.0, 128
        %2436 = vxpose.xlu0.b32.cont [15/16] 0.0, 128
        %2437 = vxpose.xlu0.b32.end [16/16] 0.0, 128
        %v2438 = vpop.trf.xlu0
        %v2439 = vpop.trf.xlu0
        %v2440 = vpop.trf.xlu0
        %v2441 = vpop.trf.xlu0
        %v2442 = vpop.trf.xlu0
        %v2443 = vpop.trf.xlu0
        %v2444 = vpop.trf.xlu0
        %v2445 = vpop.trf.xlu0
        %v2446 = vpop.trf.xlu0
        %v2447 = vpop.trf.xlu0
        %v2448 = vpop.trf.xlu0
        %v2449 = vpop.trf.xlu0
        %v2450 = vpop.trf.xlu0
        %v2451 = vpop.trf.xlu0
        %v2452 = vpop.trf.xlu0
        %v2453 = vpop.trf.xlu0
        %2454 = vxpose.xlu0.b32.start [1/16] %v2004, 128
        %2455 = vxpose.xlu0.b32.cont [2/16] 0.0, 128
        %2456 = vxpose.xlu0.b32.cont [3/16] 0.0, 128
        %2457 = vxpose.xlu0.b32.cont [4/16] 0.0, 128
        %2458 = vxpose.xlu0.b32.cont [5/16] 0.0, 128
        %2459 = vxpose.xlu0.b32.cont [6/16] 0.0, 128
        %2460 = vxpose.xlu0.b32.cont [7/16] 0.0, 128
        %2461 = vxpose.xlu0.b32.cont [8/16] 0.0, 128
        %2462 = vxpose.xlu0.b32.cont [9/16] 0.0, 128
        %2463 = vxpose.xlu0.b32.cont [10/16] 0.0, 128
        %2464 = vxpose.xlu0.b32.cont [11/16] 0.0, 128
        %2465 = vxpose.xlu0.b32.cont [12/16] 0.0, 128
        %2466 = vxpose.xlu0.b32.cont [13/16] 0.0, 128
        %2467 = vxpose.xlu0.b32.cont [14/16] 0.0, 128
        %2468 = vxpose.xlu0.b32.cont [15/16] 0.0, 128
        %2469 = vxpose.xlu0.b32.end [16/16] 0.0, 128
        %v2470 = vpop.trf.xlu0
        %v2471 = vpop.trf.xlu0
        %v2472 = vpop.trf.xlu0
        %v2473 = vpop.trf.xlu0
        %v2474 = vpop.trf.xlu0
        %v2475 = vpop.trf.xlu0
        %v2476 = vpop.trf.xlu0
        %v2477 = vpop.trf.xlu0
        %v2478 = vpop.trf.xlu0
        %v2479 = vpop.trf.xlu0
        %v2480 = vpop.trf.xlu0
        %v2481 = vpop.trf.xlu0
        %v2482 = vpop.trf.xlu0
        %v2483 = vpop.trf.xlu0
        %v2484 = vpop.trf.xlu0
        %v2485 = vpop.trf.xlu0
        %2486 = vxpose.xlu0.b32.start [1/16] %v2005, 128
        %2487 = vxpose.xlu0.b32.cont [2/16] 0.0, 128
        %2488 = vxpose.xlu0.b32.cont [3/16] 0.0, 128
        %2489 = vxpose.xlu0.b32.cont [4/16] 0.0, 128
        %2490 = vxpose.xlu0.b32.cont [5/16] 0.0, 128
        %2491 = vxpose.xlu0.b32.cont [6/16] 0.0, 128
        %2492 = vxpose.xlu0.b32.cont [7/16] 0.0, 128
        %2493 = vxpose.xlu0.b32.cont [8/16] 0.0, 128
        %2494 = vxpose.xlu0.b32.cont [9/16] 0.0, 128
        %2495 = vxpose.xlu0.b32.cont [10/16] 0.0, 128
        %2496 = vxpose.xlu0.b32.cont [11/16] 0.0, 128
        %2497 = vxpose.xlu0.b32.cont [12/16] 0.0, 128
        %2498 = vxpose.xlu0.b32.cont [13/16] 0.0, 128
        %2499 = vxpose.xlu0.b32.cont [14/16] 0.0, 128
        %2500 = vxpose.xlu0.b32.cont [15/16] 0.0, 128
        %2501 = vxpose.xlu0.b32.end [16/16] 0.0, 128
        %v2502 = vpop.trf.xlu0
        %v2503 = vpop.trf.xlu0
        %v2504 = vpop.trf.xlu0
        %v2505 = vpop.trf.xlu0
        %v2506 = vpop.trf.xlu0
        %v2507 = vpop.trf.xlu0
        %v2508 = vpop.trf.xlu0
        %v2509 = vpop.trf.xlu0
        %v2510 = vpop.trf.xlu0
        %v2511 = vpop.trf.xlu0
        %v2512 = vpop.trf.xlu0
        %v2513 = vpop.trf.xlu0
        %v2514 = vpop.trf.xlu0
        %v2515 = vpop.trf.xlu0
        %v2516 = vpop.trf.xlu0
        %v2517 = vpop.trf.xlu0
        %v2534 = vcombine.low %v2022, %v2054
        %v2535 = vcombine.low %v2086, %v2118
        %v2536 = vcombine.low %v2150, %v2182
        %v2537 = vcombine.low %v2214, %v2246
        %v2538 = vcombine.low %v2278, %v2310
        %v2539 = vcombine.low %v2342, %v2374
        %v2540 = vcombine.low %v2406, %v2438
        %v2541 = vcombine.low %v2470, %v2502
        %2550 = vxpose.xlu0.b32.start [1/16] %v2534, 128
        %2551 = vxpose.xlu0.b32.cont [2/16] %v2535, 128
        %2552 = vxpose.xlu0.b32.cont [3/16] %v2536, 128
        %2553 = vxpose.xlu0.b32.cont [4/16] %v2537, 128
        %2554 = vxpose.xlu0.b32.cont [5/16] %v2538, 128
        %2555 = vxpose.xlu0.b32.cont [6/16] %v2539, 128
        %2556 = vxpose.xlu0.b32.cont [7/16] %v2540, 128
        %2557 = vxpose.xlu0.b32.cont [8/16] %v2541, 128
        %2558 = vxpose.xlu0.b32.cont [9/16] 0.0, 128
        %2559 = vxpose.xlu0.b32.cont [10/16] 0.0, 128
        %2560 = vxpose.xlu0.b32.cont [11/16] 0.0, 128
        %2561 = vxpose.xlu0.b32.cont [12/16] 0.0, 128
        %2562 = vxpose.xlu0.b32.cont [13/16] 0.0, 128
        %2563 = vxpose.xlu0.b32.cont [14/16] 0.0, 128
        %2564 = vxpose.xlu0.b32.cont [15/16] 0.0, 128
        %2565 = vxpose.xlu0.b32.end [16/16] 0.0, 128
        %v2566 = vpop.trf.xlu0
        %v2567 = vpop.trf.xlu0
        %v2568 = vpop.trf.xlu0
        %v2569 = vpop.trf.xlu0
        %v2570 = vpop.trf.xlu0
        %v2571 = vpop.trf.xlu0
        %v2572 = vpop.trf.xlu0
        %v2573 = vpop.trf.xlu0
        %v2574 = vpop.trf.xlu0
        %v2575 = vpop.trf.xlu0
        %v2576 = vpop.trf.xlu0
        %v2577 = vpop.trf.xlu0
        %v2578 = vpop.trf.xlu0
        %v2579 = vpop.trf.xlu0
        %v2580 = vpop.trf.xlu0
        %v2581 = vpop.trf.xlu0
        %v2583 = vrot.slane %v1380, 4
        %v2586 = vrot.slane %v2566, 4
        %vm2588 = vcmask 1043456
        %v2589 = vsel %vm2588, %v787, %v2583
        %v2590 = vsel %vm2588, %v1973, %v2586
        %v2591 = vpack.c.bf16 %v2590, %v2589
        %v2592 = vld [vmem:[%s1] sm:$0xf]
        %v2593 = vld [vmem:[%s1 + $0x4] sm:$0xf]
        %v2594 = vld [vmem:[%s1 + $0x8] sm:$0xf]
        %v2595 = vld [vmem:[%s1 + $0xc] sm:$0xf]
        %v2596 = vld [vmem:[%s1 + $0x10] sm:$0xf]
        %v2597 = vld [vmem:[%s1 + $0x14] sm:$0xf]
        %v2598 = vld [vmem:[%s1 + $0x18] sm:$0xf]
        %v2599 = vld [vmem:[%s1 + $0x1c] sm:$0xf]
        %v2600 = vld [vmem:[%s2] sm:$0x1]
        %v2602 = vlaneseq
        %v2603 = vshrl.u32 %v2602, 7
        %v2604 = vsub.s32 0, %v2603
        %v2605 = vrot.slane %v2600, %v2604
        %v2615 = vunpack.c.l.b16 %v2592
        %v2616 = vunpack.c.l.b16 %v2593
        %v2617 = vunpack.c.l.b16 %v2594
        %v2618 = vunpack.c.l.b16 %v2595
        %v2619 = vunpack.c.l.b16 %v2596
        %v2620 = vunpack.c.l.b16 %v2597
        %v2621 = vunpack.c.l.b16 %v2598
        %v2622 = vunpack.c.l.b16 %v2599
        %v2623 = vpack.c.b16 %v2616, %v2615
        %v2624 = vpack.c.b16 %v2618, %v2617
        %v2625 = vpack.c.b16 %v2620, %v2619
        %v2626 = vpack.c.b16 %v2622, %v2621
        %vm2631 = vcmask 523264
        %v2633 = vsel %vm2631, %v2591, 0
        %2635 = vmatprep.subr.bf16.mxu0 0
        %2636 = vmatpush1.bf16.msra.mxu0 %v2623
        %2637 = vmatprep.subr.bf16.mxu0 0
        %2638 = vmatpush1.bf16.msra.mxu0 %v2624
        %2639 = vmatprep.subr.bf16.mxu0 0
        %2640 = vmatpush1.bf16.msra.mxu0 %v2625
        %2641 = vmatprep.subr.bf16.mxu0 0
        %2642 = vmatpush1.bf16.msra.mxu0 %v2626
        %2643 = vmatprep.subr.bf16.mxu0 0
        %2644 = vmatpush1.bf16.msra.mxu0 0
        %2645 = vmatprep.subr.bf16.mxu0 0
        %2646 = vmatpush1.bf16.msra.mxu0 0
        %2647 = vmatprep.subr.bf16.mxu0 0
        %2648 = vmatpush1.bf16.msra.mxu0 0
        %2649 = vmatprep.subr.bf16.mxu0 0
        %2650 = vmatpush1.bf16.msra.mxu0 0
        %2651 = vmatprep.subr.bf16.mxu0 0
        %2652 = vmatpush1.bf16.msra.mxu0 0
        %2653 = vmatprep.subr.bf16.mxu0 0
        %2654 = vmatpush1.bf16.msra.mxu0 0
        %2655 = vmatprep.subr.bf16.mxu0 0
        %2656 = vmatpush1.bf16.msra.mxu0 0
        %2657 = vmatprep.subr.bf16.mxu0 0
        %2658 = vmatpush1.bf16.msra.mxu0 0
        %2659 = vmatprep.subr.bf16.mxu0 0
        %2660 = vmatpush1.bf16.msra.mxu0 0
        %2661 = vmatprep.subr.bf16.mxu0 0
        %2662 = vmatpush1.bf16.msra.mxu0 0
        %2663 = vmatprep.subr.bf16.mxu0 0
        %2664 = vmatpush1.bf16.msra.mxu0 0
        %2665 = vmatprep.subr.bf16.mxu0 0
        %2666 = vmatpush1.bf16.msra.mxu0 0
        %2667 = vmatprep.mubr.bf16.mxu0 0
        %2668 = vmatmul.mubr.bf16.gmra.mrb[0].mxu0 %v2633
        %v2669 = vpop.f32.mrb[0].mxu0
        %v2670 = vadd.f32 %v2605, %v2669
        %v2671 = vpop.f32.mrb[0].mxu0
        %v2672 = vpop.f32.mrb[0].mxu0
        %v2673 = vadd.f32 %v2605, %v2672
        %v2674 = vpop.f32.mrb[0].mxu0
        %2675 = vdwg.mxu0
        %v2678 = vcombine.high %v2670, %v2670
        %v2679 = vcombine.high %v2673, %v2673
        %v2682 = vpack.c.bf16 %v2670, %v2670
        %v2683 = vpack.c.bf16 %v2678, %v2678
        %v2684 = vpack.c.bf16 %v2673, %v2673
        %v2685 = vpack.c.bf16 %v2679, %v2679
        %vm2686 = vcmask 254976
        %2687 = vst.msk [vmem:[%s207] sm:$0x3] %vm2686, %v2682
        %2688 = vst.msk [vmem:[%s207 + $0x2] sm:$0x3] %vm2686, %v2683
        %2689 = vst.msk [vmem:[%s207 + $0x4] sm:$0x3] %vm2686, %v2684
        %2690 = vst.msk [vmem:[%s207 + $0x6] sm:$0x3] %vm2686, %v2685
        %s2691 = sand.u32 %s112, 1
        %s2692 = scalar_lea.sflag [#allocation4], %s2691
        %s2693 = sand.u32 %s112, 1
        %s2694 = smul.addr %s2693, 8
        %s2695 = scalar_lea.vmem [#allocation5], %s2694
        // Predicated region
        $region37: #{tpu_custom_call.1} parent=31 // pred_check
          %p2696 = pneg %p122
        $region38: #{tpu_custom_call.1} parent=31 // pred_check_branch
          %2698 = sbr.rel (%p2696) target = $region40
        $region39: #{tpu_custom_call.1} parent=31 // pred_region
          %s2699 = smul.u32 4, %s25
          %s2701 = ssub.s32 128, 128
          %2702 = vsyncadd %s2692, %s2701
          %s2703 = smul.addr %s24, 4
          %s2704 = sadd.s32 %s2699, %s2703
          %s2705 = smul.addr %s2704, 32
          %s2706 = scalar_lea.hbm %s3, %s2705
          %s2707 = sshll.u32 %s2695, 4
          %s2708 = int_to_ptr.vmem [resolvable:$true] %s2707
          %2713 = dma.vmem_to_hbm [thread:$0]  %s2708, 128, %s2706, %s2692, 32, 32, 2
        $region40: #{tpu_custom_call.1} parent=31 // pred_fallthru
          _
      $region32: #{tpu_custom_call.1} parent=5 // pred_fallthru
        _
      %p2714 = scmp.le.s32.totalorder 2, %s15
      // Predicated region
      $region41: #{tpu_custom_call.1} parent=5 // pred_check
        %p2715 = pneg %p2714
      $region42: #{tpu_custom_call.1} parent=5 // pred_check_branch
        %2717 = sbr.rel (%p2715) target = $region44
      $region43: #{tpu_custom_call.1} parent=5 // pred_region
        %s2718 = ssub.s32 %s15, 2
        // Predicated region
        $region45: #{tpu_custom_call.1} parent=43 // pred_check
          %p2719 = pneg %p128
        $region46: #{tpu_custom_call.1} parent=43 // pred_check_branch
          %2721 = sbr.rel (%p2719) target = $region48
        $region47: #{tpu_custom_call.1} parent=43 // pred_region
          %s2722 = sand.u32 %s113, 1
          %s2723 = scalar_lea.sflag [#allocation4], %s2722
          %s2724 = sand.u32 %s113, 1
          %s2725 = smul.addr %s2724, 8
          %s2726 = scalar_lea.vmem [#allocation5], %s2725
          %2727 = dma.done %s2723, 128
        $region48: #{tpu_custom_call.1} parent=43 // pred_fallthru
          _
      $region44: #{tpu_custom_call.1} parent=5 // pred_fallthru
        _
    $region6: #{tpu_custom_call.1} parent=1 // loop_footer
      %s19 = sadd.s32 1, %s15
    $region7: #{tpu_custom_call.1} parent=1 // loop_footer_branch
      %14 = sbr.rel target = $region3
    $region8: #{tpu_custom_call.1} parent=1 // loop_exit
      _
    %2728 = vsyncpa [#allocation3], 1
    %s2729 = scalar_lea.sflag [#allocation3], 1
    %2730 = vsyncpa %s2729, 1
    %2731 = vsyncpa [#allocation4], 1
    %s2732 = scalar_lea.sflag [#allocation4], 1
    %2733 = vsyncpa %s2732, 1

// kernel: tpu_custom_call.1
$region0: #{tpu_custom_call.1}
  #allocation0 [shape = 'u32[]', space=smem, size = 0x4, offset = 0x4, fixed_abs, tag = 'smem constant byte address 0x4 - core index']
  #allocation1 [shape = 'u32[144,128]{1,0:T(1,128)}', space=vmem, size = 0x12000, scoped, tag = 'internal scratch']
  %s0 = inlined_call_operand.vmem [shape: bf16[32,64], index: 0, kind: input, shape index: {}]
  %s1 = inlined_call_operand.vmem [shape: bf16[64,32], index: 1, kind: input, shape index: {}]
  %s2 = inlined_call_operand.vmem [shape: f32[1,32], index: 2, kind: input, shape index: {}]
  %s3 = inlined_call_operand.hbm [shape: bf16[32,32], index: 3, kind: output, shape index: {}]
  %s4 = sld [smem:[#allocation0]]
  $region45: #{tpu_custom_call.1} parent=0
    _
  %s6 = ssub.s32 1, %s4
  %s7 = scalar_select 0, %s6, %s4
  $region1: #{tpu_custom_call.1} parent=0
    #allocation2 [shape = 'u8[8192]{0}', space=vmem, size = 0x2000, scoped, tag = 'output window, operand 0']
    #allocation3 [shape = 's32[2]{0}', space=sflag, size = 0x8, scoped, tag = 'scoped memory for tpu_custom_call.1']
    %8 = vsyncpa [#allocation3], 0
    %s9 = scalar_lea.sflag [#allocation3], 1
    %10 = vsyncpa %s9, 0
    loop: start=0, step=1, limit=4
    $region2: #{tpu_custom_call.1} parent=1 // loop_pre_header
      _
    $region3: #{tpu_custom_call.1} parent=1 // loop_header
      %s12 = sphi 0, %s16
      %p13 = scmp.ge.s32.totalorder %s12, 4
      %s22 = sphi 0, %s24
      %s25 = sphi 0, %s22
      %s26 = sphi 0, %s25
      %s42 = sphi 0, %s26
      %s46 = sphi 0, %s46
      %s48 = sphi 0, %s46
      %s49 = sphi 0, %s48
      %s63 = sphi 0, %s49
      %s67 = sphi 0, %s67
      %s69 = sphi 0, %s67
      %s70 = sphi 0, %s69
      %s84 = sphi 0, %s70
      %s90 = sphi 0, %s92
      %s93 = sphi 0, %s90
      %s94 = sphi 0, %s93
      %s110 = sphi 0, %s94
    $region4: #{tpu_custom_call.1} parent=1 // loop_header_branch
      %15 = sbr.rel (%p13) target = $region8
    $region5: #{tpu_custom_call.1} parent=1 // loop_body
      %s17 = ssub.s32 %s12, 1
      %s18 = ssub.s32 %s12, 2
      %s19 = sadd.s32 %s12, 1
      %s20 = ssub.s32 %s12, %s19
      %p21 = scmp.eq.s32.totalorder %s20, 0
      %s23 = sadd.s32 %s22, 1
      %s24 = scalar_select %p21, %s22, %s23
      %p27 = pneg %p21
      %p28 = scmp.eq.s32.totalorder %s12, 1
      %p29 = por %p27, %p28
      %p30 = scmp.ne.s32.totalorder %s22, %s25
      %p31 = scmp.eq.s32.totalorder %s12, 0
      %p32 = por %p30, %p31
      %p33 = scmp.ne.s32.totalorder %s22, %s25
      %p34 = scmp.eq.s32.totalorder %s17, 1
      %p35 = por %p33, %p34
      %p36 = scmp.ne.s32.totalorder %s25, %s26
      %p37 = scmp.eq.s32.totalorder %s17, 0
      %p38 = por %p36, %p37
      %p39 = scmp.ne.s32.totalorder %s25, %s26
      %p40 = scmp.eq.s32.totalorder %s18, 1
      %p41 = por %p39, %p40
      %p43 = scmp.ne.s32.totalorder %s26, %s42
      %p44 = scmp.eq.s32.totalorder %s18, 0
      %p45 = por %p43, %p44
      %s47 = sadd.s32 %s46, 1
      %p50 = scmp.eq.s32.totalorder %s12, 1
      %p51 = scmp.ne.s32.totalorder %s46, %s48
      %p52 = scmp.eq.s32.totalorder %s12, 0
      %p53 = por %p51, %p52
      %p54 = scmp.ne.s32.totalorder %s46, %s48
      %p55 = scmp.eq.s32.totalorder %s17, 1
      %p56 = por %p54, %p55
      %p57 = scmp.ne.s32.totalorder %s48, %s49
      %p58 = scmp.eq.s32.totalorder %s17, 0
      %p59 = por %p57, %p58
      %p60 = scmp.ne.s32.totalorder %s48, %s49
      %p61 = scmp.eq.s32.totalorder %s18, 1
      %p62 = por %p60, %p61
      %p64 = scmp.ne.s32.totalorder %s49, %s63
      %p65 = scmp.eq.s32.totalorder %s18, 0
      %p66 = por %p64, %p65
      %s68 = sadd.s32 %s67, 1
      %p71 = scmp.eq.s32.totalorder %s12, 1
      %p72 = scmp.ne.s32.totalorder %s67, %s69
      %p73 = scmp.eq.s32.totalorder %s12, 0
      %p74 = por %p72, %p73
      %p75 = scmp.ne.s32.totalorder %s67, %s69
      %p76 = scmp.eq.s32.totalorder %s17, 1
      %p77 = por %p75, %p76
      %p78 = scmp.ne.s32.totalorder %s69, %s70
      %p79 = scmp.eq.s32.totalorder %s17, 0
      %p80 = por %p78, %p79
      %p81 = scmp.ne.s32.totalorder %s69, %s70
      %p82 = scmp.eq.s32.totalorder %s18, 1
      %p83 = por %p81, %p82
      %p85 = scmp.ne.s32.totalorder %s70, %s84
      %p86 = scmp.eq.s32.totalorder %s18, 0
      %p87 = por %p85, %p86
      %s88 = ssub.s32 %s12, %s19
      %p89 = scmp.eq.s32.totalorder %s88, 0
      %s91 = sadd.s32 %s90, 1
      %s92 = scalar_select %p89, %s90, %s91
      %p95 = pneg %p89
      %p96 = scmp.eq.s32.totalorder %s12, 1
      %p97 = por %p95, %p96
      %p98 = scmp.ne.s32.totalorder %s90, %s93
      %p99 = scmp.eq.s32.totalorder %s12, 0
      %p100 = por %p98, %p99
      %p101 = scmp.ne.s32.totalorder %s90, %s93
      %p102 = scmp.eq.s32.totalorder %s17, 1
      %p103 = por %p101, %p102
      %p104 = scmp.ne.s32.totalorder %s93, %s94
      %p105 = scmp.eq.s32.totalorder %s17, 0
      %p106 = por %p104, %p105
      %p107 = scmp.ne.s32.totalorder %s93, %s94
      %p108 = scmp.eq.s32.totalorder %s18, 1
      %p109 = por %p107, %p108
      %p111 = scmp.ne.s32.totalorder %s94, %s110
      %p112 = scmp.eq.s32.totalorder %s18, 0
      %p113 = por %p111, %p112
      %p114 = scmp.le.s32.totalorder 1, %s12
      %p115 = scmp.lt.s32.totalorder %s12, 3
      %p116 = pnand %p114, %p115
      %p117 = pneg %p116
      // Predicated region
      $region9: #{tpu_custom_call.1} parent=5 // pred_check
        _
      $region10: #{tpu_custom_call.1} parent=5 // pred_check_branch
        %119 = sbr.rel (%p116) target = $region12
      $region11: #{tpu_custom_call.1} parent=5 // pred_region
        %s120 = ssub.s32 %s12, 1
        // Predicated region
        $region13: #{tpu_custom_call.1} parent=11 // pred_check
          %p121 = pneg %p59
        $region14: #{tpu_custom_call.1} parent=11 // pred_check_branch
          %123 = sbr.rel (%p121) target = $region16
        $region15: #{tpu_custom_call.1} parent=11 // pred_region
          _
        $region16: #{tpu_custom_call.1} parent=11 // pred_fallthru
          _
        // Predicated region
        $region17: #{tpu_custom_call.1} parent=11 // pred_check
          %p124 = pneg %p80
        $region18: #{tpu_custom_call.1} parent=11 // pred_check_branch
          %126 = sbr.rel (%p124) target = $region20
        $region19: #{tpu_custom_call.1} parent=11 // pred_region
          _
        $region20: #{tpu_custom_call.1} parent=11 // pred_fallthru
          _
      $region12: #{tpu_custom_call.1} parent=5 // pred_fallthru
        _
      %p127 = scmp.lt.s32.totalorder %s12, 2
      // Predicated region
      $region21: #{tpu_custom_call.1} parent=5 // pred_check
        %p128 = pneg %p127
      $region22: #{tpu_custom_call.1} parent=5 // pred_check_branch
        %130 = sbr.rel (%p128) target = $region24
      $region23: #{tpu_custom_call.1} parent=5 // pred_region
        // Predicated region
        $region25: #{tpu_custom_call.1} parent=23 // pred_check
          %p131 = pneg %p32
        $region26: #{tpu_custom_call.1} parent=23 // pred_check_branch
          %133 = sbr.rel (%p131) target = $region28
        $region27: #{tpu_custom_call.1} parent=23 // pred_region
          %s134 = smul.u32 2, %s12
          %p135 = scmp.lt.s32.totalorder %s134, 3
          %s136 = scalar_select %p135, %s134, 3
          %s137 = smul.addr %s136, 4
          %s138 = scalar_lea.vmem %s0, %s137
          %s139 = smul.u32 2, %s12
        $region28: #{tpu_custom_call.1} parent=23 // pred_fallthru
          _
      $region24: #{tpu_custom_call.1} parent=5 // pred_fallthru
        _
      %p140 = scmp.le.s32.totalorder 1, %s12
      %p141 = scmp.lt.s32.totalorder %s12, 3
      %p142 = pnand %p140, %p141
      %p143 = pneg %p142
      // Predicated region
      $region29: #{tpu_custom_call.1} parent=5 // pred_check
        _
      $region30: #{tpu_custom_call.1} parent=5 // pred_check_branch
        %145 = sbr.rel (%p142) target = $region32
      $region31: #{tpu_custom_call.1} parent=5 // pred_region
        %s146 = ssub.s32 %s12, 1
        %s147 = smul.u32 2, %s17
        %p148 = scmp.lt.s32.totalorder %s147, 3
        %s149 = scalar_select %p148, %s147, 3
        %s150 = smul.addr %s149, 4
        %s151 = scalar_lea.vmem %s0, %s150
        %p152 = pneg %p38
        %p153 = pneg %p35
        %p154 = pneg %p59
        %p155 = pneg %p56
        %p156 = pneg %p80
        %p157 = pneg %p77
        %p158 = pneg %p106
        %p159 = pneg %p103
        %s160 = sand.u32 %s93, 1
        %s161 = scalar_lea.sflag [#allocation3], %s160
        %s162 = sand.u32 %s93, 1
        %s163 = smul.addr %s162, 8
        %s164 = scalar_lea.vmem [#allocation2], %s163
        %s165 = smul.u32 2, %s17
        %p166 = scmp.lt.s32.totalorder %s165, 3
        %s167 = scalar_select %p166, %s165, 3
        %s168 = smul.addr %s167, 4
        %s169 = scalar_lea.vmem %s0, %s168
        %s170 = smul.u32 2, %s17
        %s171 = smul.u32 2, %s17
        %v173 = vld [vmem:[%s169] sm:$0xf]
        %v174 = vld [vmem:[%s169 + $0x4] sm:$0xf]
        %v175 = vld [vmem:[%s1] sm:$0xf]
        %v176 = vld [vmem:[%s1 + $0x4] sm:$0xf]
        %v177 = vld [vmem:[%s1 + $0x8] sm:$0xf]
        %v178 = vld [vmem:[%s1 + $0xc] sm:$0xf]
        %v179 = vld [vmem:[%s1 + $0x10] sm:$0xf]
        %v180 = vld [vmem:[%s1 + $0x14] sm:$0xf]
        %v181 = vld [vmem:[%s1 + $0x18] sm:$0xf]
        %v182 = vld [vmem:[%s1 + $0x1c] sm:$0xf]
        %v183 = vld [vmem:[%s2] sm:$0x1]
        %v185 = vlaneseq
        %v186 = vshrl.u32 %v185, 7
        %v187 = vsub.s32 0, %v186
        %v188 = vrot.slane %v183, %v187
        %v192 = vunpack.c.l.b16 %v173
        %v193 = vunpack.c.l.b16 %v174
        %v194 = vpack.c.b16 %v193, %v192
        %v203 = vunpack.c.l.b16 %v175
        %v204 = vunpack.c.l.b16 %v176
        %v205 = vunpack.c.l.b16 %v177
        %v206 = vunpack.c.l.b16 %v178
        %v207 = vunpack.c.l.b16 %v179
        %v208 = vunpack.c.l.b16 %v180
        %v209 = vunpack.c.l.b16 %v181
        %v210 = vunpack.c.l.b16 %v182
        %v211 = vpack.c.b16 %v204, %v203
        %v212 = vpack.c.b16 %v206, %v205
        %v213 = vpack.c.b16 %v208, %v207
        %v214 = vpack.c.b16 %v210, %v209
        %vm219 = vcmask 523264
        %v221 = vsel %vm219, %v194, 0
        %223 = vmatprep.subr.bf16.mxu0 0
        %224 = vmatpush1.bf16.msra.mxu0 %v211
        %225 = vmatprep.subr.bf16.mxu0 0
        %226 = vmatpush1.bf16.msra.mxu0 %v212
        %227 = vmatprep.subr.bf16.mxu0 0
        %228 = vmatpush1.bf16.msra.mxu0 %v213
        %229 = vmatprep.subr.bf16.mxu0 0
        %230 = vmatpush1.bf16.msra.mxu0 %v214
        %231 = vmatprep.subr.bf16.mxu0 0
        %232 = vmatpush1.bf16.msra.mxu0 0
        %233 = vmatprep.subr.bf16.mxu0 0
        %234 = vmatpush1.bf16.msra.mxu0 0
        %235 = vmatprep.subr.bf16.mxu0 0
        %236 = vmatpush1.bf16.msra.mxu0 0
        %237 = vmatprep.subr.bf16.mxu0 0
        %238 = vmatpush1.bf16.msra.mxu0 0
        %239 = vmatprep.subr.bf16.mxu0 0
        %240 = vmatpush1.bf16.msra.mxu0 0
        %241 = vmatprep.subr.bf16.mxu0 0
        %242 = vmatpush1.bf16.msra.mxu0 0
        %243 = vmatprep.subr.bf16.mxu0 0
        %244 = vmatpush1.bf16.msra.mxu0 0
        %245 = vmatprep.subr.bf16.mxu0 0
        %246 = vmatpush1.bf16.msra.mxu0 0
        %247 = vmatprep.subr.bf16.mxu0 0
        %248 = vmatpush1.bf16.msra.mxu0 0
        %249 = vmatprep.subr.bf16.mxu0 0
        %250 = vmatpush1.bf16.msra.mxu0 0
        %251 = vmatprep.subr.bf16.mxu0 0
        %252 = vmatpush1.bf16.msra.mxu0 0
        %253 = vmatprep.subr.bf16.mxu0 0
        %254 = vmatpush1.bf16.msra.mxu0 0
        %255 = vmatprep.mubr.bf16.mxu0 0
        %256 = vmatmul.mubr.bf16.gmra.mrb[0].mxu0 %v221
        %v257 = vpop.f32.mrb[0].mxu0
        %v258 = vadd.f32 %v188, %v257
        %v259 = vpop.f32.mrb[0].mxu0
        %v260 = vpop.f32.mrb[0].mxu0
        %v261 = vadd.f32 %v188, %v260
        %v262 = vpop.f32.mrb[0].mxu0
        %263 = vdwg.mxu0
        %v264 = vpack.c.bf16 %v261, %v258
        %v266 = vunpack.c.l.b16 %v264
        %v267 = vunpack.c.h.b16 %v264
        %v268 = vpack.c.b16 %v266, %v266
        %v269 = vpack.c.b16 %v267, %v267
        %vm272 = vcmask 257024
        %273 = vst.msk [vmem:[%s164] sm:$0xf] %vm272, %v268
        %274 = vst.msk [vmem:[%s164 + $0x4] sm:$0xf] %vm272, %v269
        %s275 = sand.u32 %s93, 1
        %s276 = scalar_lea.sflag [#allocation3], %s275
        %s277 = sand.u32 %s93, 1
        %s278 = smul.addr %s277, 8
        %s279 = scalar_lea.vmem [#allocation2], %s278
        // Predicated region
        $region33: #{tpu_custom_call.1} parent=31 // pred_check
          %p280 = pneg %p103
        $region34: #{tpu_custom_call.1} parent=31 // pred_check_branch
          %282 = sbr.rel (%p280) target = $region36
        $region35: #{tpu_custom_call.1} parent=31 // pred_region
          %s283 = smul.u32 2, %s17
          %s285 = ssub.s32 128, 128
          %286 = vsyncadd %s276, %s285
          %s287 = smul.addr %s283, 64
          %s288 = scalar_lea.hbm %s3, %s287
          %s289 = sshll.u32 %s279, 4
          %s290 = int_to_ptr.vmem [resolvable:$true] %s289
          %295 = dma.vmem_to_hbm [thread:$0]  %s290, 128, %s288, %s276, 64, 64, 4
        $region36: #{tpu_custom_call.1} parent=31 // pred_fallthru
          _
      $region32: #{tpu_custom_call.1} parent=5 // pred_fallthru
        _
      %p296 = scmp.le.s32.totalorder 2, %s12
      // Predicated region
      $region37: #{tpu_custom_call.1} parent=5 // pred_check
        %p297 = pneg %p296
      $region38: #{tpu_custom_call.1} parent=5 // pred_check_branch
        %299 = sbr.rel (%p297) target = $region40
      $region39: #{tpu_custom_call.1} parent=5 // pred_region
        %s300 = ssub.s32 %s12, 2
        // Predicated region
        $region41: #{tpu_custom_call.1} parent=39 // pred_check
          %p301 = pneg %p109
        $region42: #{tpu_custom_call.1} parent=39 // pred_check_branch
          %303 = sbr.rel (%p301) target = $region44
        $region43: #{tpu_custom_call.1} parent=39 // pred_region
          %s304 = sand.u32 %s94, 1
          %s305 = scalar_lea.sflag [#allocation3], %s304
          %s306 = sand.u32 %s94, 1
          %s307 = smul.addr %s306, 8
          %s308 = scalar_lea.vmem [#allocation2], %s307
          %309 = dma.done %s305, 128
        $region44: #{tpu_custom_call.1} parent=39 // pred_fallthru
          _
      $region40: #{tpu_custom_call.1} parent=5 // pred_fallthru
        _
    $region6: #{tpu_custom_call.1} parent=1 // loop_footer
      %s16 = sadd.s32 1, %s12
    $region7: #{tpu_custom_call.1} parent=1 // loop_footer_branch
      %11 = sbr.rel target = $region3
    $region8: #{tpu_custom_call.1} parent=1 // loop_exit
      _
    %310 = vsyncpa [#allocation3], 1
    %s311 = scalar_lea.sflag [#allocation3], 1
    %312 = vsyncpa %s311, 1

</llo_original>
